<compile_context>
chip_gen: v6e
topology: v6e:2x2x1
jax: 0.10.0
libtpu: 0.0.40
codegen_flags: <defaults>
</compile_context>

<pallas_src>
import jax
import jax.numpy as jnp
from jax.experimental import pallas as pl
from jax.experimental.pallas import tpu as pltpu


# ------------------------------- kernel ---------------------------------------
def _make_moodnet_kernel(L, T, B, B_pad, E, H, O, in_dims):
    """Single-invocation kernel: embedding gather + L-layer GRU + FC head."""
    D_seq = max(E, H)   # column width of the time-major sequence scratch

    def kernel(tok_ref, emb_ref, *args):
        # args = L packed layer slabs, fc slab, out_ref, seq scratch, gi scratch
        slab_refs = args[:L]
        fc_ref = args[L]
        out_ref = args[L + 1]
        seq_ref = args[L + 2]      # (T*B_pad, D_seq) time-major layer input/output
        gi_ref = args[L + 3]       # (T*B_pad, 3H)    hoisted gate-input projection

        # ---------------- embedding gather (fused into the kernel) -------------
        # Token ids are SMEM scalars; the table is (vocab, 1, E) so each row is its
        # own leading-axis tile -> plain dynamic leading-axis VMEM load.
        seq_ref[...] = jnp.zeros_like(seq_ref)          # also zeroes padded rows
        for t in range(T):
            for b in range(B):
                idx = tok_ref[b, t]
                seq_ref[pl.ds(t * B_pad + b, 1), pl.ds(0, E)] = emb_ref[idx]

        # ------------------------------ GRU stack -------------------------------
        h = jnp.zeros((B_pad, H), jnp.float32)
        for l in range(L):
            in_dim = in_dims[l]
            slab = slab_refs[l]
            w_ih = slab[0:in_dim, :]                       # (in_dim, 3H) gates r|z|n
            w_hh = slab[in_dim:in_dim + H, :]              # (H, 3H)
            bias = slab[in_dim + H:in_dim + H + 2, :]      # (2, 3H)
            b_gi = bias[0:1, :]                            # b_ir+b_hr|b_iz+b_hz|b_in
            b_hn = jnp.broadcast_to(bias[1:2, 2 * H:3 * H], (B_pad, H))  # hoisted

            # Gate-fused hoisted input projection for ALL timesteps: one matmul.
            gi_ref[...] = (
                jnp.dot(seq_ref[:, 0:in_dim], w_ih,
                        preferred_element_type=jnp.float32) + b_gi)

            # Serial recurrence: one gate-fused (B,H) x (H,3H) matmul per step.
            h = jnp.zeros((B_pad, H), jnp.float32)
            for t in range(T):
                lo = t * B_pad                             # static, sublane-aligned
                gh = jnp.dot(h, w_hh, preferred_element_type=jnp.float32)  # (B,3H)
                gi_t = gi_ref[lo:lo + B_pad, :]
                rz = jax.nn.sigmoid(gi_t[:, 0:2 * H] + gh[:, 0:2 * H])     # fused r|z
                r = rz[:, 0:H]
                z = rz[:, H:2 * H]
                n = jnp.tanh(gi_t[:, 2 * H:3 * H] + r * (gh[:, 2 * H:3 * H] + b_hn))
                h = (1.0 - z) * n + z * h
                if l + 1 < L:
                    # Next layer's time-major input, written in place.
                    seq_ref[lo:lo + B_pad, 0:H] = h

        # ------------------------ FC head (last timestep) -----------------------
        # fc1: Linear -> Dropout(0.5) [identity in eval] -> ReLU -> Linear
        # TODO(synk): training-mode stochastic dropout would use pltpu.prng_seed /
        # pltpu.prng_random_bits; eval-mode identity is intentional here.
        fc1_wT = fc_ref[0:H, 0:H]                          # (H, H)
        fc2_wT = fc_ref[H:2 * H, 0:O]                      # (H, O)
        fcb = fc_ref[2 * H:2 * H + 2, :]                   # (2, C)
        hid = jnp.maximum(
            jnp.dot(h, fc1_wT, preferred_element_type=jnp.float32) + fcb[0:1, 0:H],
            0.0)
        out_ref[...] = (
            jnp.dot(hid, fc2_wT, preferred_element_type=jnp.float32) + fcb[1:2, 0:O])

    return kernel


# ----------------------- one-time parameter preprocessing ---------------------
def prepare_params(params):
    """Pack gate-fused per-layer weight/bias slabs, one FC slab, and a 3-D
    embedding table laid out for dynamic leading-axis row loads.  Done once."""
    emb = jnp.asarray(params["embedding"], jnp.float32)       # (vocab, E)
    vocab, E = emb.shape
    H = params["fc1_w"].shape[1]
    O = params["fc2_w"].shape[0]

    layer_slabs = []
    in_dims = []
    for (w_ih, w_hh, b_ih, b_hh) in params["gru"]:
        w_ih = jnp.asarray(w_ih, jnp.float32)                 # (3H, in_dim) rows r|z|n
        w_hh = jnp.asarray(w_hh, jnp.float32)                 # (3H, H)
        b_ih = jnp.asarray(b_ih, jnp.float32)                 # (3H,)
        b_hh = jnp.asarray(b_hh, jnp.float32)                 # (3H,)
        in_dim = w_ih.shape[1]
        in_dims.append(in_dim)
        # Bias row added to the input projection: [b_ir+b_hr | b_iz+b_hz | b_in].
        b_gi = b_ih + jnp.concatenate([b_hh[:2 * H], jnp.zeros((H,), jnp.float32)])
        # b_hn must stay separate (used inside r * (gh_n + b_hn)); park in cols 2H:3H.
        b_hn_row = jnp.concatenate([jnp.zeros((2 * H,), jnp.float32), b_hh[2 * H:]])
        slab = jnp.concatenate(
            [w_ih.T, w_hh.T, b_gi[None, :], b_hn_row[None, :]], axis=0)
        layer_slabs.append(slab)                              # (in_dim + H + 2, 3H)

    C = max(H, O)
    fc1_wT = jnp.zeros((H, C), jnp.float32).at[:, :H].set(
        jnp.asarray(params["fc1_w"], jnp.float32).T)
    fc2_wT = jnp.zeros((H, C), jnp.float32).at[:, :O].set(
        jnp.asarray(params["fc2_w"], jnp.float32).T)
    fc1_b = jnp.zeros((1, C), jnp.float32).at[:, :H].set(
        jnp.asarray(params["fc1_b"], jnp.float32)[None, :])
    fc2_b = jnp.zeros((1, C), jnp.float32).at[:, :O].set(
        jnp.asarray(params["fc2_b"], jnp.float32)[None, :])
    fc_slab = jnp.concatenate([fc1_wT, fc2_wT, fc1_b, fc2_b], axis=0)  # (2H+2, C)

    return {
        "emb3d": emb.reshape(vocab, 1, E),
        "layer_slabs": layer_slabs,
        "fc_slab": fc_slab,
        "dims": {"vocab": vocab, "E": E, "H": H, "O": O,
                 "L": len(layer_slabs), "in_dims": tuple(in_dims)},
    }


# ------------------------------ forward wrapper --------------------------------
def moodnet_forward_pallas(token_ids, prepped):
    """token_ids: (B, T) int32.  prepped: output of prepare_params."""
    d = prepped["dims"]
    E, H, O, L = d["E"], d["H"], d["O"], d["L"]
    in_dims = d["in_dims"]
    B, T = token_ids.shape
    B_pad = ((B + 7) // 8) * 8        # f32 sublane count
    D_seq = max(E, H)

    kernel = _make_moodnet_kernel(L, T, B, B_pad, E, H, O, in_dims)

    # No grid: everything (<~400 KiB) is VMEM-resident in a single invocation.
    # TODO(synk): at production batch sizes, add a leading batch-tile grid axis with
    # dimension_semantics=("parallel", ...) so v7x's second TensorCore shares work.
    out = pl.pallas_call(
        kernel,
        out_shape=jax.ShapeDtypeStruct((B_pad, O), jnp.float32),
        in_specs=(
            [pl.BlockSpec(memory_space=pltpu.MemorySpace.SMEM)]            # token ids
            + [pl.BlockSpec(memory_space=pltpu.MemorySpace.VMEM)] * (L + 2)  # emb, slabs, fc
        ),
        out_specs=pl.BlockSpec(memory_space=pltpu.MemorySpace.VMEM),
        scratch_shapes=[
            pltpu.VMEM((T * B_pad, D_seq), jnp.float32),   # time-major sequence
            pltpu.VMEM((T * B_pad, 3 * H), jnp.float32),   # hoisted gate inputs
        ],
    )(token_ids.astype(jnp.int32), prepped["emb3d"],
      *prepped["layer_slabs"], prepped["fc_slab"])
    return out[:B]


# ------------------------------ reference (pure JAX) --------------------------
def moodnet_forward_ref(token_ids, params):
    emb = params["embedding"]
    gru_layers = params["gru"]
    fc1_w, fc1_b = params["fc1_w"], params["fc1_b"]
    fc2_w, fc2_b = params["fc2_w"], params["fc2_b"]

    B, T = token_ids.shape
    H = fc1_w.shape[1]
    L = len(gru_layers)

    embeds = emb[token_ids]                      # (B, T, E)
    h = [jnp.zeros((B, H), jnp.float32) for _ in range(L)]
    last = None
    for t in range(T):
        inp = embeds[:, t, :]
        for l in range(L):
            w_ih, w_hh, b_ih, b_hh = gru_layers[l]
            gi = inp @ w_ih.T + b_ih
            gh = h[l] @ w_hh.T + b_hh
            r = jax.nn.sigmoid(gi[:, :H] + gh[:, :H])
            z = jax.nn.sigmoid(gi[:, H:2 * H] + gh[:, H:2 * H])
            n = jnp.tanh(gi[:, 2 * H:] + r * gh[:, 2 * H:])
            h[l] = (1.0 - z) * n + z * h[l]
            inp = h[l]
        last = inp
    hid = jnp.maximum(last @ fc1_w.T + fc1_b, 0.0)   # Dropout == identity (eval)
    return hid @ fc2_w.T + fc2_b


# ------------------------------ param init ------------------------------------
def init_params(key, vocab_size, embedding_dim, hidden_dim, layer_dim, output_dim):
    keys = jax.random.split(key, 4 + 4 * layer_dim + 4)
    ki = iter(keys)

    def u(k, shape, scale=0.1):
        return (jax.random.uniform(k, shape, jnp.float32) * 2.0 - 1.0) * scale

    params = {"embedding": u(next(ki), (vocab_size, embedding_dim), 0.5)}
    gru = []
    for l in range(layer_dim):
        in_dim = embedding_dim if l == 0 else hidden_dim
        w_ih = u(next(ki), (3 * hidden_dim, in_dim))
        w_hh = u(next(ki), (3 * hidden_dim, hidden_dim))
        b_ih = u(next(ki), (3 * hidden_dim,))
        b_hh = u(next(ki), (3 * hidden_dim,))
        gru.append((w_ih, w_hh, b_ih, b_hh))
    params["gru"] = gru
    params["fc1_w"] = u(next(ki), (hidden_dim, hidden_dim))
    params["fc1_b"] = u(next(ki), (hidden_dim,))
    params["fc2_w"] = u(next(ki), (output_dim, hidden_dim))
    params["fc2_b"] = u(next(ki), (output_dim,))
    return params


if __name__ == "__main__":
    VOCAB, E, H, L, O = 50, 32, 32, 2, 2
    B, T = 2, 8

    key = jax.random.PRNGKey(0)
    k_par, k_tok = jax.random.split(key)
    params = init_params(k_par, VOCAB, E, H, L, O)
    token_ids = jax.random.randint(k_tok, (B, T), 0, VOCAB, dtype=jnp.int32)

    prepped = prepare_params(params)
    out = moodnet_forward_pallas(token_ids, prepped)
    out = jax.block_until_ready(out)

    ref = moodnet_forward_ref(token_ids, params)
    assert out.shape == (B, O), out.shape
    assert jnp.allclose(out, ref, atol=1e-4, rtol=1e-4), (out, ref)

    print("KERNEL_OK")
</pallas_src>

<mosaic_0001>
module attributes {stable_mosaic.version = 11 : i64} {
  func.func @kernel(%arg0: memref<2x8xi32, #tpu.memory_space<smem>>, %arg1: memref<50x1x32xf32, #tpu.memory_space<vmem>>, %arg2: memref<66x96xf32, #tpu.memory_space<vmem>>, %arg3: memref<66x96xf32, #tpu.memory_space<vmem>>, %arg4: memref<66x32xf32, #tpu.memory_space<vmem>>, %arg5: memref<8x2xf32, #tpu.memory_space<vmem>>, %arg6: memref<64x32xf32, #tpu.memory_space<vmem>>, %arg7: memref<64x96xf32, #tpu.memory_space<vmem>>) attributes {dimension_semantics = [], scalar_prefetch = 0 : i64, scratch_operands = 2 : i64, tpu.core_type = #tpu.core_type<tc>} {
    %cst = arith.constant 0.000000e+00 : f32
    %0 = vector.broadcast %cst : f32 to vector<64x32xf32>
    %c0 = arith.constant 0 : index
    %c0_0 = arith.constant 0 : index
    %1 = vector.load %arg6[%c0, %c0_0] : memref<64x32xf32, #tpu.memory_space<vmem>>, vector<64x32xf32>
    tpu.vector_store %arg6[%c0, %c0_0], %0 {strides = array<i32>} : memref<64x32xf32, #tpu.memory_space<vmem>>, vector<64x32xf32>,
    %c0_1 = arith.constant 0 : index
    %c0_2 = arith.constant 0 : index
    %2 = memref.load %arg0[%c0_1, %c0_2] : memref<2x8xi32, #tpu.memory_space<smem>>
    %3 = arith.index_cast %2 : i32 to index
    %c0_3 = arith.constant 0 : index
    %c0_4 = arith.constant 0 : index
    %4 = vector.load %arg1[%3, %c0_3, %c0_4] : memref<50x1x32xf32, #tpu.memory_space<vmem>>, vector<1x1x32xf32>
    %5 = vector.shape_cast %4 : vector<1x1x32xf32> to vector<1x32xf32>
    %c0_5 = arith.constant 0 : index
    %c0_6 = arith.constant 0 : index
    %6 = vector.load %arg6[%c0_5, %c0_6] : memref<64x32xf32, #tpu.memory_space<vmem>>, vector<1x32xf32>
    tpu.vector_store %arg6[%c0_5, %c0_6], %5 {strides = array<i32>} : memref<64x32xf32, #tpu.memory_space<vmem>>, vector<1x32xf32>,
    %c1 = arith.constant 1 : index
    %c0_7 = arith.constant 0 : index
    %7 = memref.load %arg0[%c1, %c0_7] : memref<2x8xi32, #tpu.memory_space<smem>>
    %8 = arith.index_cast %7 : i32 to index
    %c0_8 = arith.constant 0 : index
    %c0_9 = arith.constant 0 : index
    %9 = vector.load %arg1[%8, %c0_8, %c0_9] : memref<50x1x32xf32, #tpu.memory_space<vmem>>, vector<1x1x32xf32>
    %10 = vector.shape_cast %9 : vector<1x1x32xf32> to vector<1x32xf32>
    %c1_10 = arith.constant 1 : index
    %c0_11 = arith.constant 0 : index
    %11 = vector.load %arg6[%c1_10, %c0_11] : memref<64x32xf32, #tpu.memory_space<vmem>>, vector<1x32xf32>
    tpu.vector_store %arg6[%c1_10, %c0_11], %10 {strides = array<i32>} : memref<64x32xf32, #tpu.memory_space<vmem>>, vector<1x32xf32>,
    %c0_12 = arith.constant 0 : index
    %c1_13 = arith.constant 1 : index
    %12 = memref.load %arg0[%c0_12, %c1_13] : memref<2x8xi32, #tpu.memory_space<smem>>
    %13 = arith.index_cast %12 : i32 to index
    %c0_14 = arith.constant 0 : index
    %c0_15 = arith.constant 0 : index
    %14 = vector.load %arg1[%13, %c0_14, %c0_15] : memref<50x1x32xf32, #tpu.memory_space<vmem>>, vector<1x1x32xf32>
    %15 = vector.shape_cast %14 : vector<1x1x32xf32> to vector<1x32xf32>
    %c8 = arith.constant 8 : index
    %c0_16 = arith.constant 0 : index
    %16 = vector.load %arg6[%c8, %c0_16] : memref<64x32xf32, #tpu.memory_space<vmem>>, vector<1x32xf32>
    tpu.vector_store %arg6[%c8, %c0_16], %15 {strides = array<i32>} : memref<64x32xf32, #tpu.memory_space<vmem>>, vector<1x32xf32>,
    %c1_17 = arith.constant 1 : index
    %c1_18 = arith.constant 1 : index
    %17 = memref.load %arg0[%c1_17, %c1_18] : memref<2x8xi32, #tpu.memory_space<smem>>
    %18 = arith.index_cast %17 : i32 to index
    %c0_19 = arith.constant 0 : index
    %c0_20 = arith.constant 0 : index
    %19 = vector.load %arg1[%18, %c0_19, %c0_20] : memref<50x1x32xf32, #tpu.memory_space<vmem>>, vector<1x1x32xf32>
    %20 = vector.shape_cast %19 : vector<1x1x32xf32> to vector<1x32xf32>
    %c9 = arith.constant 9 : index
    %c0_21 = arith.constant 0 : index
    %21 = vector.load %arg6[%c9, %c0_21] : memref<64x32xf32, #tpu.memory_space<vmem>>, vector<1x32xf32>
    tpu.vector_store %arg6[%c9, %c0_21], %20 {strides = array<i32>} : memref<64x32xf32, #tpu.memory_space<vmem>>, vector<1x32xf32>,
    %c0_22 = arith.constant 0 : index
    %c2 = arith.constant 2 : index
    %22 = memref.load %arg0[%c0_22, %c2] : memref<2x8xi32, #tpu.memory_space<smem>>
    %23 = arith.index_cast %22 : i32 to index
    %c0_23 = arith.constant 0 : index
    %c0_24 = arith.constant 0 : index
    %24 = vector.load %arg1[%23, %c0_23, %c0_24] : memref<50x1x32xf32, #tpu.memory_space<vmem>>, vector<1x1x32xf32>
    %25 = vector.shape_cast %24 : vector<1x1x32xf32> to vector<1x32xf32>
    %c16 = arith.constant 16 : index
    %c0_25 = arith.constant 0 : index
    %26 = vector.load %arg6[%c16, %c0_25] : memref<64x32xf32, #tpu.memory_space<vmem>>, vector<1x32xf32>
    tpu.vector_store %arg6[%c16, %c0_25], %25 {strides = array<i32>} : memref<64x32xf32, #tpu.memory_space<vmem>>, vector<1x32xf32>,
    %c1_26 = arith.constant 1 : index
    %c2_27 = arith.constant 2 : index
    %27 = memref.load %arg0[%c1_26, %c2_27] : memref<2x8xi32, #tpu.memory_space<smem>>
    %28 = arith.index_cast %27 : i32 to index
    %c0_28 = arith.constant 0 : index
    %c0_29 = arith.constant 0 : index
    %29 = vector.load %arg1[%28, %c0_28, %c0_29] : memref<50x1x32xf32, #tpu.memory_space<vmem>>, vector<1x1x32xf32>
    %30 = vector.shape_cast %29 : vector<1x1x32xf32> to vector<1x32xf32>
    %c17 = arith.constant 17 : index
    %c0_30 = arith.constant 0 : index
    %31 = vector.load %arg6[%c17, %c0_30] : memref<64x32xf32, #tpu.memory_space<vmem>>, vector<1x32xf32>
    tpu.vector_store %arg6[%c17, %c0_30], %30 {strides = array<i32>} : memref<64x32xf32, #tpu.memory_space<vmem>>, vector<1x32xf32>,
    %c0_31 = arith.constant 0 : index
    %c3 = arith.constant 3 : index
    %32 = memref.load %arg0[%c0_31, %c3] : memref<2x8xi32, #tpu.memory_space<smem>>
    %33 = arith.index_cast %32 : i32 to index
    %c0_32 = arith.constant 0 : index
    %c0_33 = arith.constant 0 : index
    %34 = vector.load %arg1[%33, %c0_32, %c0_33] : memref<50x1x32xf32, #tpu.memory_space<vmem>>, vector<1x1x32xf32>
    %35 = vector.shape_cast %34 : vector<1x1x32xf32> to vector<1x32xf32>
    %c24 = arith.constant 24 : index
    %c0_34 = arith.constant 0 : index
    %36 = vector.load %arg6[%c24, %c0_34] : memref<64x32xf32, #tpu.memory_space<vmem>>, vector<1x32xf32>
    tpu.vector_store %arg6[%c24, %c0_34], %35 {strides = array<i32>} : memref<64x32xf32, #tpu.memory_space<vmem>>, vector<1x32xf32>,
    %c1_35 = arith.constant 1 : index
    %c3_36 = arith.constant 3 : index
    %37 = memref.load %arg0[%c1_35, %c3_36] : memref<2x8xi32, #tpu.memory_space<smem>>
    %38 = arith.index_cast %37 : i32 to index
    %c0_37 = arith.constant 0 : index
    %c0_38 = arith.constant 0 : index
    %39 = vector.load %arg1[%38, %c0_37, %c0_38] : memref<50x1x32xf32, #tpu.memory_space<vmem>>, vector<1x1x32xf32>
    %40 = vector.shape_cast %39 : vector<1x1x32xf32> to vector<1x32xf32>
    %c25 = arith.constant 25 : index
    %c0_39 = arith.constant 0 : index
    %41 = vector.load %arg6[%c25, %c0_39] : memref<64x32xf32, #tpu.memory_space<vmem>>, vector<1x32xf32>
    tpu.vector_store %arg6[%c25, %c0_39], %40 {strides = array<i32>} : memref<64x32xf32, #tpu.memory_space<vmem>>, vector<1x32xf32>,
    %c0_40 = arith.constant 0 : index
    %c4 = arith.constant 4 : index
    %42 = memref.load %arg0[%c0_40, %c4] : memref<2x8xi32, #tpu.memory_space<smem>>
    %43 = arith.index_cast %42 : i32 to index
    %c0_41 = arith.constant 0 : index
    %c0_42 = arith.constant 0 : index
    %44 = vector.load %arg1[%43, %c0_41, %c0_42] : memref<50x1x32xf32, #tpu.memory_space<vmem>>, vector<1x1x32xf32>
    %45 = vector.shape_cast %44 : vector<1x1x32xf32> to vector<1x32xf32>
    %c32 = arith.constant 32 : index
    %c0_43 = arith.constant 0 : index
    %46 = vector.load %arg6[%c32, %c0_43] : memref<64x32xf32, #tpu.memory_space<vmem>>, vector<1x32xf32>
    tpu.vector_store %arg6[%c32, %c0_43], %45 {strides = array<i32>} : memref<64x32xf32, #tpu.memory_space<vmem>>, vector<1x32xf32>,
    %c1_44 = arith.constant 1 : index
    %c4_45 = arith.constant 4 : index
    %47 = memref.load %arg0[%c1_44, %c4_45] : memref<2x8xi32, #tpu.memory_space<smem>>
    %48 = arith.index_cast %47 : i32 to index
    %c0_46 = arith.constant 0 : index
    %c0_47 = arith.constant 0 : index
    %49 = vector.load %arg1[%48, %c0_46, %c0_47] : memref<50x1x32xf32, #tpu.memory_space<vmem>>, vector<1x1x32xf32>
    %50 = vector.shape_cast %49 : vector<1x1x32xf32> to vector<1x32xf32>
    %c33 = arith.constant 33 : index
    %c0_48 = arith.constant 0 : index
    %51 = vector.load %arg6[%c33, %c0_48] : memref<64x32xf32, #tpu.memory_space<vmem>>, vector<1x32xf32>
    tpu.vector_store %arg6[%c33, %c0_48], %50 {strides = array<i32>} : memref<64x32xf32, #tpu.memory_space<vmem>>, vector<1x32xf32>,
    %c0_49 = arith.constant 0 : index
    %c5 = arith.constant 5 : index
    %52 = memref.load %arg0[%c0_49, %c5] : memref<2x8xi32, #tpu.memory_space<smem>>
    %53 = arith.index_cast %52 : i32 to index
    %c0_50 = arith.constant 0 : index
    %c0_51 = arith.constant 0 : index
    %54 = vector.load %arg1[%53, %c0_50, %c0_51] : memref<50x1x32xf32, #tpu.memory_space<vmem>>, vector<1x1x32xf32>
    %55 = vector.shape_cast %54 : vector<1x1x32xf32> to vector<1x32xf32>
    %c40 = arith.constant 40 : index
    %c0_52 = arith.constant 0 : index
    %56 = vector.load %arg6[%c40, %c0_52] : memref<64x32xf32, #tpu.memory_space<vmem>>, vector<1x32xf32>
    tpu.vector_store %arg6[%c40, %c0_52], %55 {strides = array<i32>} : memref<64x32xf32, #tpu.memory_space<vmem>>, vector<1x32xf32>,
    %c1_53 = arith.constant 1 : index
    %c5_54 = arith.constant 5 : index
    %57 = memref.load %arg0[%c1_53, %c5_54] : memref<2x8xi32, #tpu.memory_space<smem>>
    %58 = arith.index_cast %57 : i32 to index
    %c0_55 = arith.constant 0 : index
    %c0_56 = arith.constant 0 : index
    %59 = vector.load %arg1[%58, %c0_55, %c0_56] : memref<50x1x32xf32, #tpu.memory_space<vmem>>, vector<1x1x32xf32>
    %60 = vector.shape_cast %59 : vector<1x1x32xf32> to vector<1x32xf32>
    %c41 = arith.constant 41 : index
    %c0_57 = arith.constant 0 : index
    %61 = vector.load %arg6[%c41, %c0_57] : memref<64x32xf32, #tpu.memory_space<vmem>>, vector<1x32xf32>
    tpu.vector_store %arg6[%c41, %c0_57], %60 {strides = array<i32>} : memref<64x32xf32, #tpu.memory_space<vmem>>, vector<1x32xf32>,
    %c0_58 = arith.constant 0 : index
    %c6 = arith.constant 6 : index
    %62 = memref.load %arg0[%c0_58, %c6] : memref<2x8xi32, #tpu.memory_space<smem>>
    %63 = arith.index_cast %62 : i32 to index
    %c0_59 = arith.constant 0 : index
    %c0_60 = arith.constant 0 : index
    %64 = vector.load %arg1[%63, %c0_59, %c0_60] : memref<50x1x32xf32, #tpu.memory_space<vmem>>, vector<1x1x32xf32>
    %65 = vector.shape_cast %64 : vector<1x1x32xf32> to vector<1x32xf32>
    %c48 = arith.constant 48 : index
    %c0_61 = arith.constant 0 : index
    %66 = vector.load %arg6[%c48, %c0_61] : memref<64x32xf32, #tpu.memory_space<vmem>>, vector<1x32xf32>
    tpu.vector_store %arg6[%c48, %c0_61], %65 {strides = array<i32>} : memref<64x32xf32, #tpu.memory_space<vmem>>, vector<1x32xf32>,
    %c1_62 = arith.constant 1 : index
    %c6_63 = arith.constant 6 : index
    %67 = memref.load %arg0[%c1_62, %c6_63] : memref<2x8xi32, #tpu.memory_space<smem>>
    %68 = arith.index_cast %67 : i32 to index
    %c0_64 = arith.constant 0 : index
    %c0_65 = arith.constant 0 : index
    %69 = vector.load %arg1[%68, %c0_64, %c0_65] : memref<50x1x32xf32, #tpu.memory_space<vmem>>, vector<1x1x32xf32>
    %70 = vector.shape_cast %69 : vector<1x1x32xf32> to vector<1x32xf32>
    %c49 = arith.constant 49 : index
    %c0_66 = arith.constant 0 : index
    %71 = vector.load %arg6[%c49, %c0_66] : memref<64x32xf32, #tpu.memory_space<vmem>>, vector<1x32xf32>
    tpu.vector_store %arg6[%c49, %c0_66], %70 {strides = array<i32>} : memref<64x32xf32, #tpu.memory_space<vmem>>, vector<1x32xf32>,
    %c0_67 = arith.constant 0 : index
    %c7 = arith.constant 7 : index
    %72 = memref.load %arg0[%c0_67, %c7] : memref<2x8xi32, #tpu.memory_space<smem>>
    %73 = arith.index_cast %72 : i32 to index
    %c0_68 = arith.constant 0 : index
    %c0_69 = arith.constant 0 : index
    %74 = vector.load %arg1[%73, %c0_68, %c0_69] : memref<50x1x32xf32, #tpu.memory_space<vmem>>, vector<1x1x32xf32>
    %75 = vector.shape_cast %74 : vector<1x1x32xf32> to vector<1x32xf32>
    %c56 = arith.constant 56 : index
    %c0_70 = arith.constant 0 : index
    %76 = vector.load %arg6[%c56, %c0_70] : memref<64x32xf32, #tpu.memory_space<vmem>>, vector<1x32xf32>
    tpu.vector_store %arg6[%c56, %c0_70], %75 {strides = array<i32>} : memref<64x32xf32, #tpu.memory_space<vmem>>, vector<1x32xf32>,
    %c1_71 = arith.constant 1 : index
    %c7_72 = arith.constant 7 : index
    %77 = memref.load %arg0[%c1_71, %c7_72] : memref<2x8xi32, #tpu.memory_space<smem>>
    %78 = arith.index_cast %77 : i32 to index
    %c0_73 = arith.constant 0 : index
    %c0_74 = arith.constant 0 : index
    %79 = vector.load %arg1[%78, %c0_73, %c0_74] : memref<50x1x32xf32, #tpu.memory_space<vmem>>, vector<1x1x32xf32>
    %80 = vector.shape_cast %79 : vector<1x1x32xf32> to vector<1x32xf32>
    %c57 = arith.constant 57 : index
    %c0_75 = arith.constant 0 : index
    %81 = vector.load %arg6[%c57, %c0_75] : memref<64x32xf32, #tpu.memory_space<vmem>>, vector<1x32xf32>
    tpu.vector_store %arg6[%c57, %c0_75], %80 {strides = array<i32>} : memref<64x32xf32, #tpu.memory_space<vmem>>, vector<1x32xf32>,
    %c0_76 = arith.constant 0 : index
    %c0_77 = arith.constant 0 : index
    %82 = vector.load %arg2[%c0_76, %c0_77] : memref<66x96xf32, #tpu.memory_space<vmem>>, vector<32x96xf32>
    %c32_78 = arith.constant 32 : index
    %c0_79 = arith.constant 0 : index
    %83 = vector.load %arg2[%c32_78, %c0_79] : memref<66x96xf32, #tpu.memory_space<vmem>>, vector<32x96xf32>
    %c64 = arith.constant 64 : index
    %c0_80 = arith.constant 0 : index
    %84 = vector.load %arg2[%c64, %c0_80] : memref<66x96xf32, #tpu.memory_space<vmem>>, vector<2x96xf32>
    %85 = vector.extract_strided_slice %84 {offsets = [0, 0], sizes = [1, 96], strides = [1, 1]} : vector<2x96xf32> to vector<1x96xf32>
    %86 = vector.extract_strided_slice %84 {offsets = [1, 64], sizes = [1, 32], strides = [1, 1]} : vector<2x96xf32> to vector<1x32xf32>
    %87 = vector.shape_cast %86 : vector<1x32xf32> to vector<1x32xf32>
    %88 = vector.broadcast %87 : vector<1x32xf32> to vector<8x32xf32>
    %c0_81 = arith.constant 0 : index
    %c0_82 = arith.constant 0 : index
    %89 = vector.load %arg6[%c0_81, %c0_82] : memref<64x32xf32, #tpu.memory_space<vmem>>, vector<64x32xf32>
    %cst_83 = arith.constant dense<0.000000e+00> : vector<64x96xf32>
    %90 = tpu.matmul %89, %82, %cst_83 {dimension_numbers = #tpu.dot_dimension_numbers<[1], [0], [0], [1], [0, 0, 1, 1], [], []>} : vector<64x32xf32>, vector<32x96xf32>, vector<64x96xf32> -> vector<64x96xf32>
    %91 = vector.broadcast %85 : vector<1x96xf32> to vector<64x96xf32>
    %92 = arith.addf %90, %91 : vector<64x96xf32>
    %c0_84 = arith.constant 0 : index
    %c0_85 = arith.constant 0 : index
    %93 = vector.load %arg7[%c0_84, %c0_85] : memref<64x96xf32, #tpu.memory_space<vmem>>, vector<64x96xf32>
    tpu.vector_store %arg7[%c0_84, %c0_85], %92 {strides = array<i32>} : memref<64x96xf32, #tpu.memory_space<vmem>>, vector<64x96xf32>,
    %cst_86 = arith.constant 0.000000e+00 : f32
    %94 = vector.broadcast %cst_86 : f32 to vector<8x32xf32>
    %cst_87 = arith.constant dense<0.000000e+00> : vector<8x96xf32>
    %95 = tpu.matmul %94, %83, %cst_87 {dimension_numbers = #tpu.dot_dimension_numbers<[1], [0], [0], [1], [0, 0, 1, 1], [], []>} : vector<8x32xf32>, vector<32x96xf32>, vector<8x96xf32> -> vector<8x96xf32>
    %c0_88 = arith.constant 0 : index
    %c0_89 = arith.constant 0 : index
    %96 = vector.load %arg7[%c0_88, %c0_89] : memref<64x96xf32, #tpu.memory_space<vmem>>, vector<8x96xf32>
    %97 = vector.extract_strided_slice %96 {offsets = [0, 0], sizes = [8, 64], strides = [1, 1]} : vector<8x96xf32> to vector<8x64xf32>
    %98 = vector.extract_strided_slice %95 {offsets = [0, 0], sizes = [8, 64], strides = [1, 1]} : vector<8x96xf32> to vector<8x64xf32>
    %99 = arith.addf %97, %98 : vector<8x64xf32>
    %100 = arith.negf %99 : vector<8x64xf32>
    %101 = math.exp %100 : vector<8x64xf32>
    %cst_90 = arith.constant 1.000000e+00 : f32
    %102 = vector.broadcast %cst_90 : f32 to vector<8x64xf32>
    %103 = arith.addf %102, %101 : vector<8x64xf32>
    %104 = arith.divf %102, %103 : vector<8x64xf32>
    %105 = vector.extract_strided_slice %104 {offsets = [0, 0], sizes = [8, 32], strides = [1, 1]} : vector<8x64xf32> to vector<8x32xf32>
    %106 = vector.extract_strided_slice %104 {offsets = [0, 32], sizes = [8, 32], strides = [1, 1]} : vector<8x64xf32> to vector<8x32xf32>
    %107 = vector.extract_strided_slice %96 {offsets = [0, 64], sizes = [8, 32], strides = [1, 1]} : vector<8x96xf32> to vector<8x32xf32>
    %108 = vector.extract_strided_slice %95 {offsets = [0, 64], sizes = [8, 32], strides = [1, 1]} : vector<8x96xf32> to vector<8x32xf32>
    %109 = arith.addf %108, %88 : vector<8x32xf32>
    %110 = arith.mulf %105, %109 : vector<8x32xf32>
    %111 = arith.addf %107, %110 : vector<8x32xf32>
    %112 = math.tanh %111 : vector<8x32xf32>
    %cst_91 = arith.constant 1.000000e+00 : f32
    %113 = vector.broadcast %cst_91 : f32 to vector<8x32xf32>
    %114 = arith.subf %113, %106 : vector<8x32xf32>
    %115 = arith.mulf %114, %112 : vector<8x32xf32>
    %116 = arith.mulf %106, %94 : vector<8x32xf32>
    %117 = arith.addf %115, %116 : vector<8x32xf32>
    %c0_92 = arith.constant 0 : index
    %c0_93 = arith.constant 0 : index
    %118 = vector.load %arg6[%c0_92, %c0_93] : memref<64x32xf32, #tpu.memory_space<vmem>>, vector<8x32xf32>
    tpu.vector_store %arg6[%c0_92, %c0_93], %117 {strides = array<i32>} : memref<64x32xf32, #tpu.memory_space<vmem>>, vector<8x32xf32>,
    %cst_94 = arith.constant dense<0.000000e+00> : vector<8x96xf32>
    %119 = tpu.matmul %117, %83, %cst_94 {dimension_numbers = #tpu.dot_dimension_numbers<[1], [0], [0], [1], [0, 0, 1, 1], [], []>} : vector<8x32xf32>, vector<32x96xf32>, vector<8x96xf32> -> vector<8x96xf32>
    %c8_95 = arith.constant 8 : index
    %c0_96 = arith.constant 0 : index
    %120 = vector.load %arg7[%c8_95, %c0_96] : memref<64x96xf32, #tpu.memory_space<vmem>>, vector<8x96xf32>
    %121 = vector.extract_strided_slice %120 {offsets = [0, 0], sizes = [8, 64], strides = [1, 1]} : vector<8x96xf32> to vector<8x64xf32>
    %122 = vector.extract_strided_slice %119 {offsets = [0, 0], sizes = [8, 64], strides = [1, 1]} : vector<8x96xf32> to vector<8x64xf32>
    %123 = arith.addf %121, %122 : vector<8x64xf32>
    %124 = arith.negf %123 : vector<8x64xf32>
    %125 = math.exp %124 : vector<8x64xf32>
    %cst_97 = arith.constant 1.000000e+00 : f32
    %126 = vector.broadcast %cst_97 : f32 to vector<8x64xf32>
    %127 = arith.addf %126, %125 : vector<8x64xf32>
    %128 = arith.divf %126, %127 : vector<8x64xf32>
    %129 = vector.extract_strided_slice %128 {offsets = [0, 0], sizes = [8, 32], strides = [1, 1]} : vector<8x64xf32> to vector<8x32xf32>
    %130 = vector.extract_strided_slice %128 {offsets = [0, 32], sizes = [8, 32], strides = [1, 1]} : vector<8x64xf32> to vector<8x32xf32>
    %131 = vector.extract_strided_slice %120 {offsets = [0, 64], sizes = [8, 32], strides = [1, 1]} : vector<8x96xf32> to vector<8x32xf32>
    %132 = vector.extract_strided_slice %119 {offsets = [0, 64], sizes = [8, 32], strides = [1, 1]} : vector<8x96xf32> to vector<8x32xf32>
    %133 = arith.addf %132, %88 : vector<8x32xf32>
    %134 = arith.mulf %129, %133 : vector<8x32xf32>
    %135 = arith.addf %131, %134 : vector<8x32xf32>
    %136 = math.tanh %135 : vector<8x32xf32>
    %cst_98 = arith.constant 1.000000e+00 : f32
    %137 = vector.broadcast %cst_98 : f32 to vector<8x32xf32>
    %138 = arith.subf %137, %130 : vector<8x32xf32>
    %139 = arith.mulf %138, %136 : vector<8x32xf32>
    %140 = arith.mulf %130, %117 : vector<8x32xf32>
    %141 = arith.addf %139, %140 : vector<8x32xf32>
    %c8_99 = arith.constant 8 : index
    %c0_100 = arith.constant 0 : index
    %142 = vector.load %arg6[%c8_99, %c0_100] : memref<64x32xf32, #tpu.memory_space<vmem>>, vector<8x32xf32>
    tpu.vector_store %arg6[%c8_99, %c0_100], %141 {strides = array<i32>} : memref<64x32xf32, #tpu.memory_space<vmem>>, vector<8x32xf32>,
    %cst_101 = arith.constant dense<0.000000e+00> : vector<8x96xf32>
    %143 = tpu.matmul %141, %83, %cst_101 {dimension_numbers = #tpu.dot_dimension_numbers<[1], [0], [0], [1], [0, 0, 1, 1], [], []>} : vector<8x32xf32>, vector<32x96xf32>, vector<8x96xf32> -> vector<8x96xf32>
    %c16_102 = arith.constant 16 : index
    %c0_103 = arith.constant 0 : index
    %144 = vector.load %arg7[%c16_102, %c0_103] : memref<64x96xf32, #tpu.memory_space<vmem>>, vector<8x96xf32>
    %145 = vector.extract_strided_slice %144 {offsets = [0, 0], sizes = [8, 64], strides = [1, 1]} : vector<8x96xf32> to vector<8x64xf32>
    %146 = vector.extract_strided_slice %143 {offsets = [0, 0], sizes = [8, 64], strides = [1, 1]} : vector<8x96xf32> to vector<8x64xf32>
    %147 = arith.addf %145, %146 : vector<8x64xf32>
    %148 = arith.negf %147 : vector<8x64xf32>
    %149 = math.exp %148 : vector<8x64xf32>
    %cst_104 = arith.constant 1.000000e+00 : f32
    %150 = vector.broadcast %cst_104 : f32 to vector<8x64xf32>
    %151 = arith.addf %150, %149 : vector<8x64xf32>
    %152 = arith.divf %150, %151 : vector<8x64xf32>
    %153 = vector.extract_strided_slice %152 {offsets = [0, 0], sizes = [8, 32], strides = [1, 1]} : vector<8x64xf32> to vector<8x32xf32>
    %154 = vector.extract_strided_slice %152 {offsets = [0, 32], sizes = [8, 32], strides = [1, 1]} : vector<8x64xf32> to vector<8x32xf32>
    %155 = vector.extract_strided_slice %144 {offsets = [0, 64], sizes = [8, 32], strides = [1, 1]} : vector<8x96xf32> to vector<8x32xf32>
    %156 = vector.extract_strided_slice %143 {offsets = [0, 64], sizes = [8, 32], strides = [1, 1]} : vector<8x96xf32> to vector<8x32xf32>
    %157 = arith.addf %156, %88 : vector<8x32xf32>
    %158 = arith.mulf %153, %157 : vector<8x32xf32>
    %159 = arith.addf %155, %158 : vector<8x32xf32>
    %160 = math.tanh %159 : vector<8x32xf32>
    %cst_105 = arith.constant 1.000000e+00 : f32
    %161 = vector.broadcast %cst_105 : f32 to vector<8x32xf32>
    %162 = arith.subf %161, %154 : vector<8x32xf32>
    %163 = arith.mulf %162, %160 : vector<8x32xf32>
    %164 = arith.mulf %154, %141 : vector<8x32xf32>
    %165 = arith.addf %163, %164 : vector<8x32xf32>
    %c16_106 = arith.constant 16 : index
    %c0_107 = arith.constant 0 : index
    %166 = vector.load %arg6[%c16_106, %c0_107] : memref<64x32xf32, #tpu.memory_space<vmem>>, vector<8x32xf32>
    tpu.vector_store %arg6[%c16_106, %c0_107], %165 {strides = array<i32>} : memref<64x32xf32, #tpu.memory_space<vmem>>, vector<8x32xf32>,
    %cst_108 = arith.constant dense<0.000000e+00> : vector<8x96xf32>
    %167 = tpu.matmul %165, %83, %cst_108 {dimension_numbers = #tpu.dot_dimension_numbers<[1], [0], [0], [1], [0, 0, 1, 1], [], []>} : vector<8x32xf32>, vector<32x96xf32>, vector<8x96xf32> -> vector<8x96xf32>
    %c24_109 = arith.constant 24 : index
    %c0_110 = arith.constant 0 : index
    %168 = vector.load %arg7[%c24_109, %c0_110] : memref<64x96xf32, #tpu.memory_space<vmem>>, vector<8x96xf32>
    %169 = vector.extract_strided_slice %168 {offsets = [0, 0], sizes = [8, 64], strides = [1, 1]} : vector<8x96xf32> to vector<8x64xf32>
    %170 = vector.extract_strided_slice %167 {offsets = [0, 0], sizes = [8, 64], strides = [1, 1]} : vector<8x96xf32> to vector<8x64xf32>
    %171 = arith.addf %169, %170 : vector<8x64xf32>
    %172 = arith.negf %171 : vector<8x64xf32>
    %173 = math.exp %172 : vector<8x64xf32>
    %cst_111 = arith.constant 1.000000e+00 : f32
    %174 = vector.broadcast %cst_111 : f32 to vector<8x64xf32>
    %175 = arith.addf %174, %173 : vector<8x64xf32>
    %176 = arith.divf %174, %175 : vector<8x64xf32>
    %177 = vector.extract_strided_slice %176 {offsets = [0, 0], sizes = [8, 32], strides = [1, 1]} : vector<8x64xf32> to vector<8x32xf32>
    %178 = vector.extract_strided_slice %176 {offsets = [0, 32], sizes = [8, 32], strides = [1, 1]} : vector<8x64xf32> to vector<8x32xf32>
    %179 = vector.extract_strided_slice %168 {offsets = [0, 64], sizes = [8, 32], strides = [1, 1]} : vector<8x96xf32> to vector<8x32xf32>
    %180 = vector.extract_strided_slice %167 {offsets = [0, 64], sizes = [8, 32], strides = [1, 1]} : vector<8x96xf32> to vector<8x32xf32>
    %181 = arith.addf %180, %88 : vector<8x32xf32>
    %182 = arith.mulf %177, %181 : vector<8x32xf32>
    %183 = arith.addf %179, %182 : vector<8x32xf32>
    %184 = math.tanh %183 : vector<8x32xf32>
    %cst_112 = arith.constant 1.000000e+00 : f32
    %185 = vector.broadcast %cst_112 : f32 to vector<8x32xf32>
    %186 = arith.subf %185, %178 : vector<8x32xf32>
    %187 = arith.mulf %186, %184 : vector<8x32xf32>
    %188 = arith.mulf %178, %165 : vector<8x32xf32>
    %189 = arith.addf %187, %188 : vector<8x32xf32>
    %c24_113 = arith.constant 24 : index
    %c0_114 = arith.constant 0 : index
    %190 = vector.load %arg6[%c24_113, %c0_114] : memref<64x32xf32, #tpu.memory_space<vmem>>, vector<8x32xf32>
    tpu.vector_store %arg6[%c24_113, %c0_114], %189 {strides = array<i32>} : memref<64x32xf32, #tpu.memory_space<vmem>>, vector<8x32xf32>,
    %cst_115 = arith.constant dense<0.000000e+00> : vector<8x96xf32>
    %191 = tpu.matmul %189, %83, %cst_115 {dimension_numbers = #tpu.dot_dimension_numbers<[1], [0], [0], [1], [0, 0, 1, 1], [], []>} : vector<8x32xf32>, vector<32x96xf32>, vector<8x96xf32> -> vector<8x96xf32>
    %c32_116 = arith.constant 32 : index
    %c0_117 = arith.constant 0 : index
    %192 = vector.load %arg7[%c32_116, %c0_117] : memref<64x96xf32, #tpu.memory_space<vmem>>, vector<8x96xf32>
    %193 = vector.extract_strided_slice %192 {offsets = [0, 0], sizes = [8, 64], strides = [1, 1]} : vector<8x96xf32> to vector<8x64xf32>
    %194 = vector.extract_strided_slice %191 {offsets = [0, 0], sizes = [8, 64], strides = [1, 1]} : vector<8x96xf32> to vector<8x64xf32>
    %195 = arith.addf %193, %194 : vector<8x64xf32>
    %196 = arith.negf %195 : vector<8x64xf32>
    %197 = math.exp %196 : vector<8x64xf32>
    %cst_118 = arith.constant 1.000000e+00 : f32
    %198 = vector.broadcast %cst_118 : f32 to vector<8x64xf32>
    %199 = arith.addf %198, %197 : vector<8x64xf32>
    %200 = arith.divf %198, %199 : vector<8x64xf32>
    %201 = vector.extract_strided_slice %200 {offsets = [0, 0], sizes = [8, 32], strides = [1, 1]} : vector<8x64xf32> to vector<8x32xf32>
    %202 = vector.extract_strided_slice %200 {offsets = [0, 32], sizes = [8, 32], strides = [1, 1]} : vector<8x64xf32> to vector<8x32xf32>
    %203 = vector.extract_strided_slice %192 {offsets = [0, 64], sizes = [8, 32], strides = [1, 1]} : vector<8x96xf32> to vector<8x32xf32>
    %204 = vector.extract_strided_slice %191 {offsets = [0, 64], sizes = [8, 32], strides = [1, 1]} : vector<8x96xf32> to vector<8x32xf32>
    %205 = arith.addf %204, %88 : vector<8x32xf32>
    %206 = arith.mulf %201, %205 : vector<8x32xf32>
    %207 = arith.addf %203, %206 : vector<8x32xf32>
    %208 = math.tanh %207 : vector<8x32xf32>
    %cst_119 = arith.constant 1.000000e+00 : f32
    %209 = vector.broadcast %cst_119 : f32 to vector<8x32xf32>
    %210 = arith.subf %209, %202 : vector<8x32xf32>
    %211 = arith.mulf %210, %208 : vector<8x32xf32>
    %212 = arith.mulf %202, %189 : vector<8x32xf32>
    %213 = arith.addf %211, %212 : vector<8x32xf32>
    %c32_120 = arith.constant 32 : index
    %c0_121 = arith.constant 0 : index
    %214 = vector.load %arg6[%c32_120, %c0_121] : memref<64x32xf32, #tpu.memory_space<vmem>>, vector<8x32xf32>
    tpu.vector_store %arg6[%c32_120, %c0_121], %213 {strides = array<i32>} : memref<64x32xf32, #tpu.memory_space<vmem>>, vector<8x32xf32>,
    %cst_122 = arith.constant dense<0.000000e+00> : vector<8x96xf32>
    %215 = tpu.matmul %213, %83, %cst_122 {dimension_numbers = #tpu.dot_dimension_numbers<[1], [0], [0], [1], [0, 0, 1, 1], [], []>} : vector<8x32xf32>, vector<32x96xf32>, vector<8x96xf32> -> vector<8x96xf32>
    %c40_123 = arith.constant 40 : index
    %c0_124 = arith.constant 0 : index
    %216 = vector.load %arg7[%c40_123, %c0_124] : memref<64x96xf32, #tpu.memory_space<vmem>>, vector<8x96xf32>
    %217 = vector.extract_strided_slice %216 {offsets = [0, 0], sizes = [8, 64], strides = [1, 1]} : vector<8x96xf32> to vector<8x64xf32>
    %218 = vector.extract_strided_slice %215 {offsets = [0, 0], sizes = [8, 64], strides = [1, 1]} : vector<8x96xf32> to vector<8x64xf32>
    %219 = arith.addf %217, %218 : vector<8x64xf32>
    %220 = arith.negf %219 : vector<8x64xf32>
    %221 = math.exp %220 : vector<8x64xf32>
    %cst_125 = arith.constant 1.000000e+00 : f32
    %222 = vector.broadcast %cst_125 : f32 to vector<8x64xf32>
    %223 = arith.addf %222, %221 : vector<8x64xf32>
    %224 = arith.divf %222, %223 : vector<8x64xf32>
    %225 = vector.extract_strided_slice %224 {offsets = [0, 0], sizes = [8, 32], strides = [1, 1]} : vector<8x64xf32> to vector<8x32xf32>
    %226 = vector.extract_strided_slice %224 {offsets = [0, 32], sizes = [8, 32], strides = [1, 1]} : vector<8x64xf32> to vector<8x32xf32>
    %227 = vector.extract_strided_slice %216 {offsets = [0, 64], sizes = [8, 32], strides = [1, 1]} : vector<8x96xf32> to vector<8x32xf32>
    %228 = vector.extract_strided_slice %215 {offsets = [0, 64], sizes = [8, 32], strides = [1, 1]} : vector<8x96xf32> to vector<8x32xf32>
    %229 = arith.addf %228, %88 : vector<8x32xf32>
    %230 = arith.mulf %225, %229 : vector<8x32xf32>
    %231 = arith.addf %227, %230 : vector<8x32xf32>
    %232 = math.tanh %231 : vector<8x32xf32>
    %cst_126 = arith.constant 1.000000e+00 : f32
    %233 = vector.broadcast %cst_126 : f32 to vector<8x32xf32>
    %234 = arith.subf %233, %226 : vector<8x32xf32>
    %235 = arith.mulf %234, %232 : vector<8x32xf32>
    %236 = arith.mulf %226, %213 : vector<8x32xf32>
    %237 = arith.addf %235, %236 : vector<8x32xf32>
    %c40_127 = arith.constant 40 : index
    %c0_128 = arith.constant 0 : index
    %238 = vector.load %arg6[%c40_127, %c0_128] : memref<64x32xf32, #tpu.memory_space<vmem>>, vector<8x32xf32>
    tpu.vector_store %arg6[%c40_127, %c0_128], %237 {strides = array<i32>} : memref<64x32xf32, #tpu.memory_space<vmem>>, vector<8x32xf32>,
    %cst_129 = arith.constant dense<0.000000e+00> : vector<8x96xf32>
    %239 = tpu.matmul %237, %83, %cst_129 {dimension_numbers = #tpu.dot_dimension_numbers<[1], [0], [0], [1], [0, 0, 1, 1], [], []>} : vector<8x32xf32>, vector<32x96xf32>, vector<8x96xf32> -> vector<8x96xf32>
    %c48_130 = arith.constant 48 : index
    %c0_131 = arith.constant 0 : index
    %240 = vector.load %arg7[%c48_130, %c0_131] : memref<64x96xf32, #tpu.memory_space<vmem>>, vector<8x96xf32>
    %241 = vector.extract_strided_slice %240 {offsets = [0, 0], sizes = [8, 64], strides = [1, 1]} : vector<8x96xf32> to vector<8x64xf32>
    %242 = vector.extract_strided_slice %239 {offsets = [0, 0], sizes = [8, 64], strides = [1, 1]} : vector<8x96xf32> to vector<8x64xf32>
    %243 = arith.addf %241, %242 : vector<8x64xf32>
    %244 = arith.negf %243 : vector<8x64xf32>
    %245 = math.exp %244 : vector<8x64xf32>
    %cst_132 = arith.constant 1.000000e+00 : f32
    %246 = vector.broadcast %cst_132 : f32 to vector<8x64xf32>
    %247 = arith.addf %246, %245 : vector<8x64xf32>
    %248 = arith.divf %246, %247 : vector<8x64xf32>
    %249 = vector.extract_strided_slice %248 {offsets = [0, 0], sizes = [8, 32], strides = [1, 1]} : vector<8x64xf32> to vector<8x32xf32>
    %250 = vector.extract_strided_slice %248 {offsets = [0, 32], sizes = [8, 32], strides = [1, 1]} : vector<8x64xf32> to vector<8x32xf32>
    %251 = vector.extract_strided_slice %240 {offsets = [0, 64], sizes = [8, 32], strides = [1, 1]} : vector<8x96xf32> to vector<8x32xf32>
    %252 = vector.extract_strided_slice %239 {offsets = [0, 64], sizes = [8, 32], strides = [1, 1]} : vector<8x96xf32> to vector<8x32xf32>
    %253 = arith.addf %252, %88 : vector<8x32xf32>
    %254 = arith.mulf %249, %253 : vector<8x32xf32>
    %255 = arith.addf %251, %254 : vector<8x32xf32>
    %256 = math.tanh %255 : vector<8x32xf32>
    %cst_133 = arith.constant 1.000000e+00 : f32
    %257 = vector.broadcast %cst_133 : f32 to vector<8x32xf32>
    %258 = arith.subf %257, %250 : vector<8x32xf32>
    %259 = arith.mulf %258, %256 : vector<8x32xf32>
    %260 = arith.mulf %250, %237 : vector<8x32xf32>
    %261 = arith.addf %259, %260 : vector<8x32xf32>
    %c48_134 = arith.constant 48 : index
    %c0_135 = arith.constant 0 : index
    %262 = vector.load %arg6[%c48_134, %c0_135] : memref<64x32xf32, #tpu.memory_space<vmem>>, vector<8x32xf32>
    tpu.vector_store %arg6[%c48_134, %c0_135], %261 {strides = array<i32>} : memref<64x32xf32, #tpu.memory_space<vmem>>, vector<8x32xf32>,
    %cst_136 = arith.constant dense<0.000000e+00> : vector<8x96xf32>
    %263 = tpu.matmul %261, %83, %cst_136 {dimension_numbers = #tpu.dot_dimension_numbers<[1], [0], [0], [1], [0, 0, 1, 1], [], []>} : vector<8x32xf32>, vector<32x96xf32>, vector<8x96xf32> -> vector<8x96xf32>
    %c56_137 = arith.constant 56 : index
    %c0_138 = arith.constant 0 : index
    %264 = vector.load %arg7[%c56_137, %c0_138] : memref<64x96xf32, #tpu.memory_space<vmem>>, vector<8x96xf32>
    %265 = vector.extract_strided_slice %264 {offsets = [0, 0], sizes = [8, 64], strides = [1, 1]} : vector<8x96xf32> to vector<8x64xf32>
    %266 = vector.extract_strided_slice %263 {offsets = [0, 0], sizes = [8, 64], strides = [1, 1]} : vector<8x96xf32> to vector<8x64xf32>
    %267 = arith.addf %265, %266 : vector<8x64xf32>
    %268 = arith.negf %267 : vector<8x64xf32>
    %269 = math.exp %268 : vector<8x64xf32>
    %cst_139 = arith.constant 1.000000e+00 : f32
    %270 = vector.broadcast %cst_139 : f32 to vector<8x64xf32>
    %271 = arith.addf %270, %269 : vector<8x64xf32>
    %272 = arith.divf %270, %271 : vector<8x64xf32>
    %273 = vector.extract_strided_slice %272 {offsets = [0, 0], sizes = [8, 32], strides = [1, 1]} : vector<8x64xf32> to vector<8x32xf32>
    %274 = vector.extract_strided_slice %272 {offsets = [0, 32], sizes = [8, 32], strides = [1, 1]} : vector<8x64xf32> to vector<8x32xf32>
    %275 = vector.extract_strided_slice %264 {offsets = [0, 64], sizes = [8, 32], strides = [1, 1]} : vector<8x96xf32> to vector<8x32xf32>
    %276 = vector.extract_strided_slice %263 {offsets = [0, 64], sizes = [8, 32], strides = [1, 1]} : vector<8x96xf32> to vector<8x32xf32>
    %277 = arith.addf %276, %88 : vector<8x32xf32>
    %278 = arith.mulf %273, %277 : vector<8x32xf32>
    %279 = arith.addf %275, %278 : vector<8x32xf32>
    %280 = math.tanh %279 : vector<8x32xf32>
    %cst_140 = arith.constant 1.000000e+00 : f32
    %281 = vector.broadcast %cst_140 : f32 to vector<8x32xf32>
    %282 = arith.subf %281, %274 : vector<8x32xf32>
    %283 = arith.mulf %282, %280 : vector<8x32xf32>
    %284 = arith.mulf %274, %261 : vector<8x32xf32>
    %285 = arith.addf %283, %284 : vector<8x32xf32>
    %c56_141 = arith.constant 56 : index
    %c0_142 = arith.constant 0 : index
    %286 = vector.load %arg6[%c56_141, %c0_142] : memref<64x32xf32, #tpu.memory_space<vmem>>, vector<8x32xf32>
    tpu.vector_store %arg6[%c56_141, %c0_142], %285 {strides = array<i32>} : memref<64x32xf32, #tpu.memory_space<vmem>>, vector<8x32xf32>,
    %c0_143 = arith.constant 0 : index
    %c0_144 = arith.constant 0 : index
    %287 = vector.load %arg3[%c0_143, %c0_144] : memref<66x96xf32, #tpu.memory_space<vmem>>, vector<32x96xf32>
    %c32_145 = arith.constant 32 : index
    %c0_146 = arith.constant 0 : index
    %288 = vector.load %arg3[%c32_145, %c0_146] : memref<66x96xf32, #tpu.memory_space<vmem>>, vector<32x96xf32>
    %c64_147 = arith.constant 64 : index
    %c0_148 = arith.constant 0 : index
    %289 = vector.load %arg3[%c64_147, %c0_148] : memref<66x96xf32, #tpu.memory_space<vmem>>, vector<2x96xf32>
    %290 = vector.extract_strided_slice %289 {offsets = [0, 0], sizes = [1, 96], strides = [1, 1]} : vector<2x96xf32> to vector<1x96xf32>
    %291 = vector.extract_strided_slice %289 {offsets = [1, 64], sizes = [1, 32], strides = [1, 1]} : vector<2x96xf32> to vector<1x32xf32>
    %292 = vector.shape_cast %291 : vector<1x32xf32> to vector<1x32xf32>
    %293 = vector.broadcast %292 : vector<1x32xf32> to vector<8x32xf32>
    %c0_149 = arith.constant 0 : index
    %c0_150 = arith.constant 0 : index
    %294 = vector.load %arg6[%c0_149, %c0_150] : memref<64x32xf32, #tpu.memory_space<vmem>>, vector<64x32xf32>
    %cst_151 = arith.constant dense<0.000000e+00> : vector<64x96xf32>
    %295 = tpu.matmul %294, %287, %cst_151 {dimension_numbers = #tpu.dot_dimension_numbers<[1], [0], [0], [1], [0, 0, 1, 1], [], []>} : vector<64x32xf32>, vector<32x96xf32>, vector<64x96xf32> -> vector<64x96xf32>
    %296 = vector.broadcast %290 : vector<1x96xf32> to vector<64x96xf32>
    %297 = arith.addf %295, %296 : vector<64x96xf32>
    %c0_152 = arith.constant 0 : index
    %c0_153 = arith.constant 0 : index
    %298 = vector.load %arg7[%c0_152, %c0_153] : memref<64x96xf32, #tpu.memory_space<vmem>>, vector<64x96xf32>
    tpu.vector_store %arg7[%c0_152, %c0_153], %297 {strides = array<i32>} : memref<64x96xf32, #tpu.memory_space<vmem>>, vector<64x96xf32>,
    %cst_154 = arith.constant 0.000000e+00 : f32
    %299 = vector.broadcast %cst_154 : f32 to vector<8x32xf32>
    %cst_155 = arith.constant dense<0.000000e+00> : vector<8x96xf32>
    %300 = tpu.matmul %299, %288, %cst_155 {dimension_numbers = #tpu.dot_dimension_numbers<[1], [0], [0], [1], [0, 0, 1, 1], [], []>} : vector<8x32xf32>, vector<32x96xf32>, vector<8x96xf32> -> vector<8x96xf32>
    %c0_156 = arith.constant 0 : index
    %c0_157 = arith.constant 0 : index
    %301 = vector.load %arg7[%c0_156, %c0_157] : memref<64x96xf32, #tpu.memory_space<vmem>>, vector<8x96xf32>
    %302 = vector.extract_strided_slice %301 {offsets = [0, 0], sizes = [8, 64], strides = [1, 1]} : vector<8x96xf32> to vector<8x64xf32>
    %303 = vector.extract_strided_slice %300 {offsets = [0, 0], sizes = [8, 64], strides = [1, 1]} : vector<8x96xf32> to vector<8x64xf32>
    %304 = arith.addf %302, %303 : vector<8x64xf32>
    %305 = arith.negf %304 : vector<8x64xf32>
    %306 = math.exp %305 : vector<8x64xf32>
    %cst_158 = arith.constant 1.000000e+00 : f32
    %307 = vector.broadcast %cst_158 : f32 to vector<8x64xf32>
    %308 = arith.addf %307, %306 : vector<8x64xf32>
    %309 = arith.divf %307, %308 : vector<8x64xf32>
    %310 = vector.extract_strided_slice %309 {offsets = [0, 0], sizes = [8, 32], strides = [1, 1]} : vector<8x64xf32> to vector<8x32xf32>
    %311 = vector.extract_strided_slice %309 {offsets = [0, 32], sizes = [8, 32], strides = [1, 1]} : vector<8x64xf32> to vector<8x32xf32>
    %312 = vector.extract_strided_slice %301 {offsets = [0, 64], sizes = [8, 32], strides = [1, 1]} : vector<8x96xf32> to vector<8x32xf32>
    %313 = vector.extract_strided_slice %300 {offsets = [0, 64], sizes = [8, 32], strides = [1, 1]} : vector<8x96xf32> to vector<8x32xf32>
    %314 = arith.addf %313, %293 : vector<8x32xf32>
    %315 = arith.mulf %310, %314 : vector<8x32xf32>
    %316 = arith.addf %312, %315 : vector<8x32xf32>
    %317 = math.tanh %316 : vector<8x32xf32>
    %cst_159 = arith.constant 1.000000e+00 : f32
    %318 = vector.broadcast %cst_159 : f32 to vector<8x32xf32>
    %319 = arith.subf %318, %311 : vector<8x32xf32>
    %320 = arith.mulf %319, %317 : vector<8x32xf32>
    %321 = arith.mulf %311, %299 : vector<8x32xf32>
    %322 = arith.addf %320, %321 : vector<8x32xf32>
    %cst_160 = arith.constant dense<0.000000e+00> : vector<8x96xf32>
    %323 = tpu.matmul %322, %288, %cst_160 {dimension_numbers = #tpu.dot_dimension_numbers<[1], [0], [0], [1], [0, 0, 1, 1], [], []>} : vector<8x32xf32>, vector<32x96xf32>, vector<8x96xf32> -> vector<8x96xf32>
    %c8_161 = arith.constant 8 : index
    %c0_162 = arith.constant 0 : index
    %324 = vector.load %arg7[%c8_161, %c0_162] : memref<64x96xf32, #tpu.memory_space<vmem>>, vector<8x96xf32>
    %325 = vector.extract_strided_slice %324 {offsets = [0, 0], sizes = [8, 64], strides = [1, 1]} : vector<8x96xf32> to vector<8x64xf32>
    %326 = vector.extract_strided_slice %323 {offsets = [0, 0], sizes = [8, 64], strides = [1, 1]} : vector<8x96xf32> to vector<8x64xf32>
    %327 = arith.addf %325, %326 : vector<8x64xf32>
    %328 = arith.negf %327 : vector<8x64xf32>
    %329 = math.exp %328 : vector<8x64xf32>
    %cst_163 = arith.constant 1.000000e+00 : f32
    %330 = vector.broadcast %cst_163 : f32 to vector<8x64xf32>
    %331 = arith.addf %330, %329 : vector<8x64xf32>
    %332 = arith.divf %330, %331 : vector<8x64xf32>
    %333 = vector.extract_strided_slice %332 {offsets = [0, 0], sizes = [8, 32], strides = [1, 1]} : vector<8x64xf32> to vector<8x32xf32>
    %334 = vector.extract_strided_slice %332 {offsets = [0, 32], sizes = [8, 32], strides = [1, 1]} : vector<8x64xf32> to vector<8x32xf32>
    %335 = vector.extract_strided_slice %324 {offsets = [0, 64], sizes = [8, 32], strides = [1, 1]} : vector<8x96xf32> to vector<8x32xf32>
    %336 = vector.extract_strided_slice %323 {offsets = [0, 64], sizes = [8, 32], strides = [1, 1]} : vector<8x96xf32> to vector<8x32xf32>
    %337 = arith.addf %336, %293 : vector<8x32xf32>
    %338 = arith.mulf %333, %337 : vector<8x32xf32>
    %339 = arith.addf %335, %338 : vector<8x32xf32>
    %340 = math.tanh %339 : vector<8x32xf32>
    %cst_164 = arith.constant 1.000000e+00 : f32
    %341 = vector.broadcast %cst_164 : f32 to vector<8x32xf32>
    %342 = arith.subf %341, %334 : vector<8x32xf32>
    %343 = arith.mulf %342, %340 : vector<8x32xf32>
    %344 = arith.mulf %334, %322 : vector<8x32xf32>
    %345 = arith.addf %343, %344 : vector<8x32xf32>
    %cst_165 = arith.constant dense<0.000000e+00> : vector<8x96xf32>
    %346 = tpu.matmul %345, %288, %cst_165 {dimension_numbers = #tpu.dot_dimension_numbers<[1], [0], [0], [1], [0, 0, 1, 1], [], []>} : vector<8x32xf32>, vector<32x96xf32>, vector<8x96xf32> -> vector<8x96xf32>
    %c16_166 = arith.constant 16 : index
    %c0_167 = arith.constant 0 : index
    %347 = vector.load %arg7[%c16_166, %c0_167] : memref<64x96xf32, #tpu.memory_space<vmem>>, vector<8x96xf32>
    %348 = vector.extract_strided_slice %347 {offsets = [0, 0], sizes = [8, 64], strides = [1, 1]} : vector<8x96xf32> to vector<8x64xf32>
    %349 = vector.extract_strided_slice %346 {offsets = [0, 0], sizes = [8, 64], strides = [1, 1]} : vector<8x96xf32> to vector<8x64xf32>
    %350 = arith.addf %348, %349 : vector<8x64xf32>
    %351 = arith.negf %350 : vector<8x64xf32>
    %352 = math.exp %351 : vector<8x64xf32>
    %cst_168 = arith.constant 1.000000e+00 : f32
    %353 = vector.broadcast %cst_168 : f32 to vector<8x64xf32>
    %354 = arith.addf %353, %352 : vector<8x64xf32>
    %355 = arith.divf %353, %354 : vector<8x64xf32>
    %356 = vector.extract_strided_slice %355 {offsets = [0, 0], sizes = [8, 32], strides = [1, 1]} : vector<8x64xf32> to vector<8x32xf32>
    %357 = vector.extract_strided_slice %355 {offsets = [0, 32], sizes = [8, 32], strides = [1, 1]} : vector<8x64xf32> to vector<8x32xf32>
    %358 = vector.extract_strided_slice %347 {offsets = [0, 64], sizes = [8, 32], strides = [1, 1]} : vector<8x96xf32> to vector<8x32xf32>
    %359 = vector.extract_strided_slice %346 {offsets = [0, 64], sizes = [8, 32], strides = [1, 1]} : vector<8x96xf32> to vector<8x32xf32>
    %360 = arith.addf %359, %293 : vector<8x32xf32>
    %361 = arith.mulf %356, %360 : vector<8x32xf32>
    %362 = arith.addf %358, %361 : vector<8x32xf32>
    %363 = math.tanh %362 : vector<8x32xf32>
    %cst_169 = arith.constant 1.000000e+00 : f32
    %364 = vector.broadcast %cst_169 : f32 to vector<8x32xf32>
    %365 = arith.subf %364, %357 : vector<8x32xf32>
    %366 = arith.mulf %365, %363 : vector<8x32xf32>
    %367 = arith.mulf %357, %345 : vector<8x32xf32>
    %368 = arith.addf %366, %367 : vector<8x32xf32>
    %cst_170 = arith.constant dense<0.000000e+00> : vector<8x96xf32>
    %369 = tpu.matmul %368, %288, %cst_170 {dimension_numbers = #tpu.dot_dimension_numbers<[1], [0], [0], [1], [0, 0, 1, 1], [], []>} : vector<8x32xf32>, vector<32x96xf32>, vector<8x96xf32> -> vector<8x96xf32>
    %c24_171 = arith.constant 24 : index
    %c0_172 = arith.constant 0 : index
    %370 = vector.load %arg7[%c24_171, %c0_172] : memref<64x96xf32, #tpu.memory_space<vmem>>, vector<8x96xf32>
    %371 = vector.extract_strided_slice %370 {offsets = [0, 0], sizes = [8, 64], strides = [1, 1]} : vector<8x96xf32> to vector<8x64xf32>
    %372 = vector.extract_strided_slice %369 {offsets = [0, 0], sizes = [8, 64], strides = [1, 1]} : vector<8x96xf32> to vector<8x64xf32>
    %373 = arith.addf %371, %372 : vector<8x64xf32>
    %374 = arith.negf %373 : vector<8x64xf32>
    %375 = math.exp %374 : vector<8x64xf32>
    %cst_173 = arith.constant 1.000000e+00 : f32
    %376 = vector.broadcast %cst_173 : f32 to vector<8x64xf32>
    %377 = arith.addf %376, %375 : vector<8x64xf32>
    %378 = arith.divf %376, %377 : vector<8x64xf32>
    %379 = vector.extract_strided_slice %378 {offsets = [0, 0], sizes = [8, 32], strides = [1, 1]} : vector<8x64xf32> to vector<8x32xf32>
    %380 = vector.extract_strided_slice %378 {offsets = [0, 32], sizes = [8, 32], strides = [1, 1]} : vector<8x64xf32> to vector<8x32xf32>
    %381 = vector.extract_strided_slice %370 {offsets = [0, 64], sizes = [8, 32], strides = [1, 1]} : vector<8x96xf32> to vector<8x32xf32>
    %382 = vector.extract_strided_slice %369 {offsets = [0, 64], sizes = [8, 32], strides = [1, 1]} : vector<8x96xf32> to vector<8x32xf32>
    %383 = arith.addf %382, %293 : vector<8x32xf32>
    %384 = arith.mulf %379, %383 : vector<8x32xf32>
    %385 = arith.addf %381, %384 : vector<8x32xf32>
    %386 = math.tanh %385 : vector<8x32xf32>
    %cst_174 = arith.constant 1.000000e+00 : f32
    %387 = vector.broadcast %cst_174 : f32 to vector<8x32xf32>
    %388 = arith.subf %387, %380 : vector<8x32xf32>
    %389 = arith.mulf %388, %386 : vector<8x32xf32>
    %390 = arith.mulf %380, %368 : vector<8x32xf32>
    %391 = arith.addf %389, %390 : vector<8x32xf32>
    %cst_175 = arith.constant dense<0.000000e+00> : vector<8x96xf32>
    %392 = tpu.matmul %391, %288, %cst_175 {dimension_numbers = #tpu.dot_dimension_numbers<[1], [0], [0], [1], [0, 0, 1, 1], [], []>} : vector<8x32xf32>, vector<32x96xf32>, vector<8x96xf32> -> vector<8x96xf32>
    %c32_176 = arith.constant 32 : index
    %c0_177 = arith.constant 0 : index
    %393 = vector.load %arg7[%c32_176, %c0_177] : memref<64x96xf32, #tpu.memory_space<vmem>>, vector<8x96xf32>
    %394 = vector.extract_strided_slice %393 {offsets = [0, 0], sizes = [8, 64], strides = [1, 1]} : vector<8x96xf32> to vector<8x64xf32>
    %395 = vector.extract_strided_slice %392 {offsets = [0, 0], sizes = [8, 64], strides = [1, 1]} : vector<8x96xf32> to vector<8x64xf32>
    %396 = arith.addf %394, %395 : vector<8x64xf32>
    %397 = arith.negf %396 : vector<8x64xf32>
    %398 = math.exp %397 : vector<8x64xf32>
    %cst_178 = arith.constant 1.000000e+00 : f32
    %399 = vector.broadcast %cst_178 : f32 to vector<8x64xf32>
    %400 = arith.addf %399, %398 : vector<8x64xf32>
    %401 = arith.divf %399, %400 : vector<8x64xf32>
    %402 = vector.extract_strided_slice %401 {offsets = [0, 0], sizes = [8, 32], strides = [1, 1]} : vector<8x64xf32> to vector<8x32xf32>
    %403 = vector.extract_strided_slice %401 {offsets = [0, 32], sizes = [8, 32], strides = [1, 1]} : vector<8x64xf32> to vector<8x32xf32>
    %404 = vector.extract_strided_slice %393 {offsets = [0, 64], sizes = [8, 32], strides = [1, 1]} : vector<8x96xf32> to vector<8x32xf32>
    %405 = vector.extract_strided_slice %392 {offsets = [0, 64], sizes = [8, 32], strides = [1, 1]} : vector<8x96xf32> to vector<8x32xf32>
    %406 = arith.addf %405, %293 : vector<8x32xf32>
    %407 = arith.mulf %402, %406 : vector<8x32xf32>
    %408 = arith.addf %404, %407 : vector<8x32xf32>
    %409 = math.tanh %408 : vector<8x32xf32>
    %cst_179 = arith.constant 1.000000e+00 : f32
    %410 = vector.broadcast %cst_179 : f32 to vector<8x32xf32>
    %411 = arith.subf %410, %403 : vector<8x32xf32>
    %412 = arith.mulf %411, %409 : vector<8x32xf32>
    %413 = arith.mulf %403, %391 : vector<8x32xf32>
    %414 = arith.addf %412, %413 : vector<8x32xf32>
    %cst_180 = arith.constant dense<0.000000e+00> : vector<8x96xf32>
    %415 = tpu.matmul %414, %288, %cst_180 {dimension_numbers = #tpu.dot_dimension_numbers<[1], [0], [0], [1], [0, 0, 1, 1], [], []>} : vector<8x32xf32>, vector<32x96xf32>, vector<8x96xf32> -> vector<8x96xf32>
    %c40_181 = arith.constant 40 : index
    %c0_182 = arith.constant 0 : index
    %416 = vector.load %arg7[%c40_181, %c0_182] : memref<64x96xf32, #tpu.memory_space<vmem>>, vector<8x96xf32>
    %417 = vector.extract_strided_slice %416 {offsets = [0, 0], sizes = [8, 64], strides = [1, 1]} : vector<8x96xf32> to vector<8x64xf32>
    %418 = vector.extract_strided_slice %415 {offsets = [0, 0], sizes = [8, 64], strides = [1, 1]} : vector<8x96xf32> to vector<8x64xf32>
    %419 = arith.addf %417, %418 : vector<8x64xf32>
    %420 = arith.negf %419 : vector<8x64xf32>
    %421 = math.exp %420 : vector<8x64xf32>
    %cst_183 = arith.constant 1.000000e+00 : f32
    %422 = vector.broadcast %cst_183 : f32 to vector<8x64xf32>
    %423 = arith.addf %422, %421 : vector<8x64xf32>
    %424 = arith.divf %422, %423 : vector<8x64xf32>
    %425 = vector.extract_strided_slice %424 {offsets = [0, 0], sizes = [8, 32], strides = [1, 1]} : vector<8x64xf32> to vector<8x32xf32>
    %426 = vector.extract_strided_slice %424 {offsets = [0, 32], sizes = [8, 32], strides = [1, 1]} : vector<8x64xf32> to vector<8x32xf32>
    %427 = vector.extract_strided_slice %416 {offsets = [0, 64], sizes = [8, 32], strides = [1, 1]} : vector<8x96xf32> to vector<8x32xf32>
    %428 = vector.extract_strided_slice %415 {offsets = [0, 64], sizes = [8, 32], strides = [1, 1]} : vector<8x96xf32> to vector<8x32xf32>
    %429 = arith.addf %428, %293 : vector<8x32xf32>
    %430 = arith.mulf %425, %429 : vector<8x32xf32>
    %431 = arith.addf %427, %430 : vector<8x32xf32>
    %432 = math.tanh %431 : vector<8x32xf32>
    %cst_184 = arith.constant 1.000000e+00 : f32
    %433 = vector.broadcast %cst_184 : f32 to vector<8x32xf32>
    %434 = arith.subf %433, %426 : vector<8x32xf32>
    %435 = arith.mulf %434, %432 : vector<8x32xf32>
    %436 = arith.mulf %426, %414 : vector<8x32xf32>
    %437 = arith.addf %435, %436 : vector<8x32xf32>
    %cst_185 = arith.constant dense<0.000000e+00> : vector<8x96xf32>
    %438 = tpu.matmul %437, %288, %cst_185 {dimension_numbers = #tpu.dot_dimension_numbers<[1], [0], [0], [1], [0, 0, 1, 1], [], []>} : vector<8x32xf32>, vector<32x96xf32>, vector<8x96xf32> -> vector<8x96xf32>
    %c48_186 = arith.constant 48 : index
    %c0_187 = arith.constant 0 : index
    %439 = vector.load %arg7[%c48_186, %c0_187] : memref<64x96xf32, #tpu.memory_space<vmem>>, vector<8x96xf32>
    %440 = vector.extract_strided_slice %439 {offsets = [0, 0], sizes = [8, 64], strides = [1, 1]} : vector<8x96xf32> to vector<8x64xf32>
    %441 = vector.extract_strided_slice %438 {offsets = [0, 0], sizes = [8, 64], strides = [1, 1]} : vector<8x96xf32> to vector<8x64xf32>
    %442 = arith.addf %440, %441 : vector<8x64xf32>
    %443 = arith.negf %442 : vector<8x64xf32>
    %444 = math.exp %443 : vector<8x64xf32>
    %cst_188 = arith.constant 1.000000e+00 : f32
    %445 = vector.broadcast %cst_188 : f32 to vector<8x64xf32>
    %446 = arith.addf %445, %444 : vector<8x64xf32>
    %447 = arith.divf %445, %446 : vector<8x64xf32>
    %448 = vector.extract_strided_slice %447 {offsets = [0, 0], sizes = [8, 32], strides = [1, 1]} : vector<8x64xf32> to vector<8x32xf32>
    %449 = vector.extract_strided_slice %447 {offsets = [0, 32], sizes = [8, 32], strides = [1, 1]} : vector<8x64xf32> to vector<8x32xf32>
    %450 = vector.extract_strided_slice %439 {offsets = [0, 64], sizes = [8, 32], strides = [1, 1]} : vector<8x96xf32> to vector<8x32xf32>
    %451 = vector.extract_strided_slice %438 {offsets = [0, 64], sizes = [8, 32], strides = [1, 1]} : vector<8x96xf32> to vector<8x32xf32>
    %452 = arith.addf %451, %293 : vector<8x32xf32>
    %453 = arith.mulf %448, %452 : vector<8x32xf32>
    %454 = arith.addf %450, %453 : vector<8x32xf32>
    %455 = math.tanh %454 : vector<8x32xf32>
    %cst_189 = arith.constant 1.000000e+00 : f32
    %456 = vector.broadcast %cst_189 : f32 to vector<8x32xf32>
    %457 = arith.subf %456, %449 : vector<8x32xf32>
    %458 = arith.mulf %457, %455 : vector<8x32xf32>
    %459 = arith.mulf %449, %437 : vector<8x32xf32>
    %460 = arith.addf %458, %459 : vector<8x32xf32>
    %cst_190 = arith.constant dense<0.000000e+00> : vector<8x96xf32>
    %461 = tpu.matmul %460, %288, %cst_190 {dimension_numbers = #tpu.dot_dimension_numbers<[1], [0], [0], [1], [0, 0, 1, 1], [], []>} : vector<8x32xf32>, vector<32x96xf32>, vector<8x96xf32> -> vector<8x96xf32>
    %c56_191 = arith.constant 56 : index
    %c0_192 = arith.constant 0 : index
    %462 = vector.load %arg7[%c56_191, %c0_192] : memref<64x96xf32, #tpu.memory_space<vmem>>, vector<8x96xf32>
    %463 = vector.extract_strided_slice %462 {offsets = [0, 0], sizes = [8, 64], strides = [1, 1]} : vector<8x96xf32> to vector<8x64xf32>
    %464 = vector.extract_strided_slice %461 {offsets = [0, 0], sizes = [8, 64], strides = [1, 1]} : vector<8x96xf32> to vector<8x64xf32>
    %465 = arith.addf %463, %464 : vector<8x64xf32>
    %466 = arith.negf %465 : vector<8x64xf32>
    %467 = math.exp %466 : vector<8x64xf32>
    %cst_193 = arith.constant 1.000000e+00 : f32
    %468 = vector.broadcast %cst_193 : f32 to vector<8x64xf32>
    %469 = arith.addf %468, %467 : vector<8x64xf32>
    %470 = arith.divf %468, %469 : vector<8x64xf32>
    %471 = vector.extract_strided_slice %470 {offsets = [0, 0], sizes = [8, 32], strides = [1, 1]} : vector<8x64xf32> to vector<8x32xf32>
    %472 = vector.extract_strided_slice %470 {offsets = [0, 32], sizes = [8, 32], strides = [1, 1]} : vector<8x64xf32> to vector<8x32xf32>
    %473 = vector.extract_strided_slice %462 {offsets = [0, 64], sizes = [8, 32], strides = [1, 1]} : vector<8x96xf32> to vector<8x32xf32>
    %474 = vector.extract_strided_slice %461 {offsets = [0, 64], sizes = [8, 32], strides = [1, 1]} : vector<8x96xf32> to vector<8x32xf32>
    %475 = arith.addf %474, %293 : vector<8x32xf32>
    %476 = arith.mulf %471, %475 : vector<8x32xf32>
    %477 = arith.addf %473, %476 : vector<8x32xf32>
    %478 = math.tanh %477 : vector<8x32xf32>
    %cst_194 = arith.constant 1.000000e+00 : f32
    %479 = vector.broadcast %cst_194 : f32 to vector<8x32xf32>
    %480 = arith.subf %479, %472 : vector<8x32xf32>
    %481 = arith.mulf %480, %478 : vector<8x32xf32>
    %482 = arith.mulf %472, %460 : vector<8x32xf32>
    %483 = arith.addf %481, %482 : vector<8x32xf32>
    %c0_195 = arith.constant 0 : index
    %c0_196 = arith.constant 0 : index
    %484 = vector.load %arg4[%c0_195, %c0_196] : memref<66x32xf32, #tpu.memory_space<vmem>>, vector<32x32xf32>
    %c32_197 = arith.constant 32 : index
    %c0_198 = arith.constant 0 : index
    %485 = vector.load %arg4[%c32_197, %c0_198] : memref<66x32xf32, #tpu.memory_space<vmem>>, vector<32x2xf32>
    %c64_199 = arith.constant 64 : index
    %c0_200 = arith.constant 0 : index
    %486 = vector.load %arg4[%c64_199, %c0_200] : memref<66x32xf32, #tpu.memory_space<vmem>>, vector<2x32xf32>
    %cst_201 = arith.constant dense<0.000000e+00> : vector<8x32xf32>
    %487 = tpu.matmul %483, %484, %cst_201 {dimension_numbers = #tpu.dot_dimension_numbers<[1], [0], [0], [1], [0, 0, 1, 1], [], []>} : vector<8x32xf32>, vector<32x32xf32>, vector<8x32xf32> -> vector<8x32xf32>
    %488 = vector.extract_strided_slice %486 {offsets = [0, 0], sizes = [1, 32], strides = [1, 1]} : vector<2x32xf32> to vector<1x32xf32>
    %489 = vector.broadcast %488 : vector<1x32xf32> to vector<8x32xf32>
    %490 = arith.addf %487, %489 : vector<8x32xf32>
    %cst_202 = arith.constant 0.000000e+00 : f32
    %491 = vector.broadcast %cst_202 : f32 to vector<8x32xf32>
    %492 = arith.maximumf %490, %491 : vector<8x32xf32>
    %cst_203 = arith.constant dense<0.000000e+00> : vector<8x2xf32>
    %493 = tpu.matmul %492, %485, %cst_203 {dimension_numbers = #tpu.dot_dimension_numbers<[1], [0], [0], [1], [0, 0, 1, 1], [], []>} : vector<8x32xf32>, vector<32x2xf32>, vector<8x2xf32> -> vector<8x2xf32>
    %494 = vector.extract_strided_slice %486 {offsets = [1, 0], sizes = [1, 2], strides = [1, 1]} : vector<2x32xf32> to vector<1x2xf32>
    %495 = vector.broadcast %494 : vector<1x2xf32> to vector<8x2xf32>
    %496 = arith.addf %493, %495 : vector<8x2xf32>
    %c0_204 = arith.constant 0 : index
    %c0_205 = arith.constant 0 : index
    %497 = vector.load %arg5[%c0_204, %c0_205] : memref<8x2xf32, #tpu.memory_space<vmem>>, vector<8x2xf32>
    tpu.vector_store %arg5[%c0_204, %c0_205], %496 {strides = array<i32>} : memref<8x2xf32, #tpu.memory_space<vmem>>, vector<8x2xf32>,
    return
  }
}

</mosaic_0001>

<llo_original>
// kernel: tpu_custom_call.1
$region0: #{tpu_custom_call.1}
  #allocation0 [shape = 'u32[]', space=smem, size = 0x4, offset = 0x4, fixed_abs, tag = 'smem constant byte address 0x4 - core index']
  #allocation1 [shape = 'u32[144,128]{1,0:T(1,128)}', space=vmem, size = 0x12000, scoped, tag = 'internal scratch']
  #allocation2 [shape = 'f32[64,32]{1,0:T(8,128)}', space=vmem, size = 0x8000, scoped, tag = 'scratch operand']
  #allocation3 [shape = 'f32[64,96]{1,0:T(8,128)}', space=vmem, size = 0x8000, scoped, tag = 'scratch operand']
  %s0 = inlined_call_operand.vmem [shape: s32[2,8], index: 0, kind: input, shape index: {}]
  %s1 = inlined_call_operand.vmem [shape: f32[50,1,32], index: 1, kind: input, shape index: {}]
  %s2 = inlined_call_operand.vmem [shape: f32[66,96], index: 2, kind: input, shape index: {}]
  %s3 = inlined_call_operand.vmem [shape: f32[66,96], index: 3, kind: input, shape index: {}]
  %s4 = inlined_call_operand.vmem [shape: f32[66,32], index: 4, kind: input, shape index: {}]
  %s5 = inlined_call_operand.vmem [shape: f32[8,2], index: 5, kind: output, shape index: {}]
  %s6 = sld [smem:[#allocation0]]
  $region34: #{tpu_custom_call.1} parent=0
    _
  %s8 = ssub.s32 1, %s6
  %s9 = scalar_select 0, %s8, %s6
  $region1: #{tpu_custom_call.1} parent=0
    #allocation4 [shape = 'u8[1024]{0}', space=smem, size = 0x400, scoped, tag = 'input window, operand 0, single buffered']
    #allocation5 [shape = 's32[1]{0}', space=sflag, size = 0x4, scoped, tag = 'scoped memory for tpu_custom_call.1']
    %10 = vsyncpa [#allocation5], 0
    // Predicated region
    $region2: #{tpu_custom_call.1} parent=1 // pred_check
      _
    $region3: #{tpu_custom_call.1} parent=1 // pred_check_branch
      %12 = sbr.rel (0) target = $region5
    $region4: #{tpu_custom_call.1} parent=1 // pred_region
      %s14 = ssub.s32 32, 32
      %15 = vsyncadd [#allocation5], %s14
      %s17 = sshll.u32 %s0, 4
      %s18 = int_to_ptr.vmem [resolvable:$true] %s17
      %20 = dma.vmem_to_smem %s18, 32, [#allocation4], [#allocation5]
    $region5: #{tpu_custom_call.1} parent=1 // pred_fallthru
      _
    // Predicated region
    $region6: #{tpu_custom_call.1} parent=1 // pred_check
      _
    $region7: #{tpu_custom_call.1} parent=1 // pred_check_branch
      %22 = sbr.rel (0) target = $region9
    $region8: #{tpu_custom_call.1} parent=1 // pred_region
      _
    $region9: #{tpu_custom_call.1} parent=1 // pred_fallthru
      _
    // Predicated region
    $region10: #{tpu_custom_call.1} parent=1 // pred_check
      _
    $region11: #{tpu_custom_call.1} parent=1 // pred_check_branch
      %24 = sbr.rel (0) target = $region13
    $region12: #{tpu_custom_call.1} parent=1 // pred_region
      _
    $region13: #{tpu_custom_call.1} parent=1 // pred_fallthru
      _
    // Predicated region
    $region14: #{tpu_custom_call.1} parent=1 // pred_check
      _
    $region15: #{tpu_custom_call.1} parent=1 // pred_check_branch
      %26 = sbr.rel (0) target = $region17
    $region16: #{tpu_custom_call.1} parent=1 // pred_region
      _
    $region17: #{tpu_custom_call.1} parent=1 // pred_fallthru
      _
    // Predicated region
    $region18: #{tpu_custom_call.1} parent=1 // pred_check
      _
    $region19: #{tpu_custom_call.1} parent=1 // pred_check_branch
      %28 = sbr.rel (0) target = $region21
    $region20: #{tpu_custom_call.1} parent=1 // pred_region
      _
    $region21: #{tpu_custom_call.1} parent=1 // pred_fallthru
      _
    // Predicated region
    $region22: #{tpu_custom_call.1} parent=1 // pred_check
      _
    $region23: #{tpu_custom_call.1} parent=1 // pred_check_branch
      %30 = sbr.rel (0) target = $region25
    $region24: #{tpu_custom_call.1} parent=1 // pred_region
      %31 = dma.done [#allocation5], 32
    $region25: #{tpu_custom_call.1} parent=1 // pred_fallthru
      _
    %32 = sfence
    %vm33 = vcmask 261120
    %34 = vst.msk [vmem:[#allocation2] sm:$0xff] %vm33, 0.0
    %35 = vst.msk [vmem:[#allocation2 + $0x8] sm:$0xff] %vm33, 0.0
    %36 = vst.msk [vmem:[#allocation2 + $0x10] sm:$0xff] %vm33, 0.0
    %37 = vst.msk [vmem:[#allocation2 + $0x18] sm:$0xff] %vm33, 0.0
    %38 = vst.msk [vmem:[#allocation2 + $0x20] sm:$0xff] %vm33, 0.0
    %39 = vst.msk [vmem:[#allocation2 + $0x28] sm:$0xff] %vm33, 0.0
    %40 = vst.msk [vmem:[#allocation2 + $0x30] sm:$0xff] %vm33, 0.0
    %41 = vst.msk [vmem:[#allocation2 + $0x38] sm:$0xff] %vm33, 0.0
    %s42 = sld [smem:[#allocation4]]
    %s43 = scalar_lea.vmem %s1, %s42
    %v44 = vld [vmem:[%s43] sm:$0x1]
    %vm45 = vcmask 253952
    %46 = vst.msk [vmem:[#allocation2] sm:$0x1] %vm45, %v44
    %s47 = sld [smem:[#allocation4 + $0x80]]
    %s48 = scalar_lea.vmem %s1, %s47
    %v49 = vld [vmem:[%s48] sm:$0x1]
    %50 = vst.msk [vmem:[#allocation2 + $0x1] sm:$0x1] %vm45, %v49
    %s51 = sld [smem:[#allocation4 + $0x1]]
    %s52 = scalar_lea.vmem %s1, %s51
    %v53 = vld [vmem:[%s52] sm:$0x1]
    %54 = vst.msk [vmem:[#allocation2 + $0x8] sm:$0x1] %vm45, %v53
    %s55 = sld [smem:[#allocation4 + $0x81]]
    %s56 = scalar_lea.vmem %s1, %s55
    %v57 = vld [vmem:[%s56] sm:$0x1]
    %58 = vst.msk [vmem:[#allocation2 + $0x9] sm:$0x1] %vm45, %v57
    %s59 = sld [smem:[#allocation4 + $0x2]]
    %s60 = scalar_lea.vmem %s1, %s59
    %v61 = vld [vmem:[%s60] sm:$0x1]
    %62 = vst.msk [vmem:[#allocation2 + $0x10] sm:$0x1] %vm45, %v61
    %s63 = sld [smem:[#allocation4 + $0x82]]
    %s64 = scalar_lea.vmem %s1, %s63
    %v65 = vld [vmem:[%s64] sm:$0x1]
    %66 = vst.msk [vmem:[#allocation2 + $0x11] sm:$0x1] %vm45, %v65
    %s67 = sld [smem:[#allocation4 + $0x3]]
    %s68 = scalar_lea.vmem %s1, %s67
    %v69 = vld [vmem:[%s68] sm:$0x1]
    %70 = vst.msk [vmem:[#allocation2 + $0x18] sm:$0x1] %vm45, %v69
    %s71 = sld [smem:[#allocation4 + $0x83]]
    %s72 = scalar_lea.vmem %s1, %s71
    %v73 = vld [vmem:[%s72] sm:$0x1]
    %74 = vst.msk [vmem:[#allocation2 + $0x19] sm:$0x1] %vm45, %v73
    %s75 = sld [smem:[#allocation4 + $0x4]]
    %s76 = scalar_lea.vmem %s1, %s75
    %v77 = vld [vmem:[%s76] sm:$0x1]
    %78 = vst.msk [vmem:[#allocation2 + $0x20] sm:$0x1] %vm45, %v77
    %s79 = sld [smem:[#allocation4 + $0x84]]
    %s80 = scalar_lea.vmem %s1, %s79
    %v81 = vld [vmem:[%s80] sm:$0x1]
    %82 = vst.msk [vmem:[#allocation2 + $0x21] sm:$0x1] %vm45, %v81
    %s83 = sld [smem:[#allocation4 + $0x5]]
    %s84 = scalar_lea.vmem %s1, %s83
    %v85 = vld [vmem:[%s84] sm:$0x1]
    %86 = vst.msk [vmem:[#allocation2 + $0x28] sm:$0x1] %vm45, %v85
    %s87 = sld [smem:[#allocation4 + $0x85]]
    %s88 = scalar_lea.vmem %s1, %s87
    %v89 = vld [vmem:[%s88] sm:$0x1]
    %90 = vst.msk [vmem:[#allocation2 + $0x29] sm:$0x1] %vm45, %v89
    %s91 = sld [smem:[#allocation4 + $0x6]]
    %s92 = scalar_lea.vmem %s1, %s91
    %v93 = vld [vmem:[%s92] sm:$0x1]
    %94 = vst.msk [vmem:[#allocation2 + $0x30] sm:$0x1] %vm45, %v93
    %s95 = sld [smem:[#allocation4 + $0x86]]
    %s96 = scalar_lea.vmem %s1, %s95
    %v97 = vld [vmem:[%s96] sm:$0x1]
    %98 = vst.msk [vmem:[#allocation2 + $0x31] sm:$0x1] %vm45, %v97
    %s99 = sld [smem:[#allocation4 + $0x7]]
    %s100 = scalar_lea.vmem %s1, %s99
    %v101 = vld [vmem:[%s100] sm:$0x1]
    %102 = vst.msk [vmem:[#allocation2 + $0x38] sm:$0x1] %vm45, %v101
    %s103 = sld [smem:[#allocation4 + $0x87]]
    %s104 = scalar_lea.vmem %s1, %s103
    %v105 = vld [vmem:[%s104] sm:$0x1]
    %106 = vst.msk [vmem:[#allocation2 + $0x39] sm:$0x1] %vm45, %v105
    %v107 = vld [vmem:[%s2] sm:$0xff]
    %v108 = vld [vmem:[%s2 + $0x8] sm:$0xff]
    %v109 = vld [vmem:[%s2 + $0x10] sm:$0xff]
    %v110 = vld [vmem:[%s2 + $0x18] sm:$0xff]
    %v111 = vld [vmem:[%s2 + $0x20] sm:$0xff]
    %v112 = vld [vmem:[%s2 + $0x28] sm:$0xff]
    %v113 = vld [vmem:[%s2 + $0x30] sm:$0xff]
    %v114 = vld [vmem:[%s2 + $0x38] sm:$0xff]
    %v115 = vld [vmem:[%s2 + $0x40] sm:$0x3]
    %v116 = vlaneseq
    %v117 = vshrl.u32 %v116, 7
    %v118 = vsub.s32 1, %v117
    %v119 = vrot.slane %v115, %v118
    %v120 = vld [vmem:[#allocation2] sm:$0xff]
    %v121 = vld [vmem:[#allocation2 + $0x8] sm:$0xff]
    %v122 = vld [vmem:[#allocation2 + $0x10] sm:$0xff]
    %v123 = vld [vmem:[#allocation2 + $0x18] sm:$0xff]
    %v124 = vld [vmem:[#allocation2 + $0x20] sm:$0xff]
    %v125 = vld [vmem:[#allocation2 + $0x28] sm:$0xff]
    %v126 = vld [vmem:[#allocation2 + $0x30] sm:$0xff]
    %v127 = vld [vmem:[#allocation2 + $0x38] sm:$0xff]
    %v128 = vlaneseq
    %v129 = vshrl.u32 %v128, 7
    %v130 = vsub.s32 0, %v129
    %v131 = vrot.slane %v115, %v130
    %v133 = vsel %vm33, %v120, 0
    %v136 = vsel %vm33, %v121, 0
    %v139 = vsel %vm33, %v122, 0
    %v142 = vsel %vm33, %v123, 0
    %v145 = vsel %vm33, %v124, 0
    %v148 = vsel %vm33, %v125, 0
    %v151 = vsel %vm33, %v126, 0
    %v154 = vsel %vm33, %v127, 0
    %156 = vmatprep.subr.mxu0 0.0
    %157 = vmatpush1.msra.mxu0 0.0
    %158 = vmatprep.subr.mxu0 0.0
    %159 = vmatpush1.msra.mxu0 0.0
    %160 = vmatprep.subr.mxu0 0.0
    %161 = vmatpush1.msra.mxu0 0.0
    %162 = vmatprep.subr.mxu0 0.0
    %163 = vmatpush1.msra.mxu0 0.0
    %164 = vmatprep.subr.mxu0 0.0
    %165 = vmatpush1.msra.mxu0 0.0
    %166 = vmatprep.subr.mxu0 0.0
    %167 = vmatpush1.msra.mxu0 0.0
    %168 = vmatprep.subr.mxu0 0.0
    %169 = vmatpush1.msra.mxu0 0.0
    %170 = vmatprep.subr.mxu0 0.0
    %171 = vmatpush1.msra.mxu0 0.0
    %172 = vmatprep.subr.mxu0 0.0
    %173 = vmatpush1.msra.mxu0 0.0
    %174 = vmatprep.subr.mxu0 0.0
    %175 = vmatpush1.msra.mxu0 0.0
    %176 = vmatprep.subr.mxu0 0.0
    %177 = vmatpush1.msra.mxu0 0.0
    %178 = vmatprep.subr.mxu0 0.0
    %179 = vmatpush1.msra.mxu0 0.0
    %180 = vmatprep.subr.mxu0 0.0
    %181 = vmatpush1.msra.mxu0 %v110
    %182 = vmatprep.subr.mxu0 0.0
    %183 = vmatpush1.msra.mxu0 %v109
    %184 = vmatprep.subr.mxu0 0.0
    %185 = vmatpush1.msra.mxu0 %v108
    %186 = vmatprep.subr.mxu0 0.0
    %187 = vmatpush1.msra.mxu0 %v107
    %188 = vmatprep.subr.mxu0 0.0
    %189 = vmatpush2.msra.mxu0 0.0
    %190 = vmatprep.subr.mxu0 0.0
    %191 = vmatpush2.msra.mxu0 0.0
    %192 = vmatprep.subr.mxu0 0.0
    %193 = vmatpush2.msra.mxu0 0.0
    %194 = vmatprep.subr.mxu0 0.0
    %195 = vmatpush2.msra.mxu0 0.0
    %196 = vmatprep.subr.mxu0 0.0
    %197 = vmatpush2.msra.mxu0 0.0
    %198 = vmatprep.subr.mxu0 0.0
    %199 = vmatpush2.msra.mxu0 0.0
    %200 = vmatprep.subr.mxu0 0.0
    %201 = vmatpush2.msra.mxu0 0.0
    %202 = vmatprep.subr.mxu0 0.0
    %203 = vmatpush2.msra.mxu0 0.0
    %204 = vmatprep.subr.mxu0 0.0
    %205 = vmatpush2.msra.mxu0 0.0
    %206 = vmatprep.subr.mxu0 0.0
    %207 = vmatpush2.msra.mxu0 0.0
    %208 = vmatprep.subr.mxu0 0.0
    %209 = vmatpush2.msra.mxu0 0.0
    %210 = vmatprep.subr.mxu0 0.0
    %211 = vmatpush2.msra.mxu0 0.0
    %212 = vmatprep.subr.mxu0 0.0
    %213 = vmatpush2.msra.mxu0 0.0
    %214 = vmatprep.subr.mxu0 0.0
    %215 = vmatpush2.msra.mxu0 0.0
    %216 = vmatprep.subr.mxu0 0.0
    %217 = vmatpush2.msra.mxu0 0.0
    %218 = vmatprep.subr.mxu0 0.0
    %219 = vmatpush2.msra.mxu0 0.0
    %220 = vmatprep.mubr.f32.mxu0 0.0
    %221 = vmatmul.mubr.f32.gmra.mxu0 %v133
    %v222 = vpop.f32.mrf.mxu0
    %v223 = vadd.f32 %v131, %v222
    %v224 = vpop.f32.mrf.mxu0
    %225 = vmatprep.mubr.f32.mxu0 0.0
    %226 = vmatmul.mubr.f32.gmra.mxu0 %v136
    %v227 = vpop.f32.mrf.mxu0
    %v228 = vadd.f32 %v131, %v227
    %v229 = vpop.f32.mrf.mxu0
    %230 = vmatprep.mubr.f32.mxu0 0.0
    %231 = vmatmul.mubr.f32.gmra.mxu0 %v139
    %v232 = vpop.f32.mrf.mxu0
    %v233 = vadd.f32 %v131, %v232
    %v234 = vpop.f32.mrf.mxu0
    %235 = vmatprep.mubr.f32.mxu0 0.0
    %236 = vmatmul.mubr.f32.gmra.mxu0 %v142
    %v237 = vpop.f32.mrf.mxu0
    %v238 = vadd.f32 %v131, %v237
    %v239 = vpop.f32.mrf.mxu0
    %240 = vmatprep.mubr.f32.mxu0 0.0
    %241 = vmatmul.mubr.f32.gmra.mxu0 %v145
    %v242 = vpop.f32.mrf.mxu0
    %v243 = vadd.f32 %v131, %v242
    %v244 = vpop.f32.mrf.mxu0
    %245 = vmatprep.mubr.f32.mxu0 0.0
    %246 = vmatmul.mubr.f32.gmra.mxu0 %v148
    %v247 = vpop.f32.mrf.mxu0
    %v248 = vadd.f32 %v131, %v247
    %v249 = vpop.f32.mrf.mxu0
    %250 = vmatprep.mubr.f32.mxu0 0.0
    %251 = vmatmul.mubr.f32.gmra.mxu0 %v151
    %v252 = vpop.f32.mrf.mxu0
    %v253 = vadd.f32 %v131, %v252
    %v254 = vpop.f32.mrf.mxu0
    %255 = vmatprep.mubr.f32.mxu0 0.0
    %256 = vmatmul.mubr.f32.gmra.mxu0 %v154
    %v257 = vpop.f32.mrf.mxu0
    %v258 = vadd.f32 %v131, %v257
    %v259 = vpop.f32.mrf.mxu0
    %260 = vdwg.mxu0
    %vm261 = vcmask 785408
    %262 = vst.msk [vmem:[#allocation3] sm:$0xff] %vm261, %v223
    %263 = vst.msk [vmem:[#allocation3 + $0x8] sm:$0xff] %vm261, %v228
    %264 = vst.msk [vmem:[#allocation3 + $0x10] sm:$0xff] %vm261, %v233
    %265 = vst.msk [vmem:[#allocation3 + $0x18] sm:$0xff] %vm261, %v238
    %266 = vst.msk [vmem:[#allocation3 + $0x20] sm:$0xff] %vm261, %v243
    %267 = vst.msk [vmem:[#allocation3 + $0x28] sm:$0xff] %vm261, %v248
    %268 = vst.msk [vmem:[#allocation3 + $0x30] sm:$0xff] %vm261, %v253
    %269 = vst.msk [vmem:[#allocation3 + $0x38] sm:$0xff] %vm261, %v258
    %v271 = vsel %vm33, 0.0, 0
    %273 = vmatprep.subr.mxu0 0.0
    %274 = vmatpush1.msra.mxu0 0.0
    %275 = vmatprep.subr.mxu0 0.0
    %276 = vmatpush1.msra.mxu0 0.0
    %277 = vmatprep.subr.mxu0 0.0
    %278 = vmatpush1.msra.mxu0 0.0
    %279 = vmatprep.subr.mxu0 0.0
    %280 = vmatpush1.msra.mxu0 0.0
    %281 = vmatprep.subr.mxu0 0.0
    %282 = vmatpush1.msra.mxu0 0.0
    %283 = vmatprep.subr.mxu0 0.0
    %284 = vmatpush1.msra.mxu0 0.0
    %285 = vmatprep.subr.mxu0 0.0
    %286 = vmatpush1.msra.mxu0 0.0
    %287 = vmatprep.subr.mxu0 0.0
    %288 = vmatpush1.msra.mxu0 0.0
    %289 = vmatprep.subr.mxu0 0.0
    %290 = vmatpush1.msra.mxu0 0.0
    %291 = vmatprep.subr.mxu0 0.0
    %292 = vmatpush1.msra.mxu0 0.0
    %293 = vmatprep.subr.mxu0 0.0
    %294 = vmatpush1.msra.mxu0 0.0
    %295 = vmatprep.subr.mxu0 0.0
    %296 = vmatpush1.msra.mxu0 0.0
    %297 = vmatprep.subr.mxu0 0.0
    %298 = vmatpush1.msra.mxu0 %v114
    %299 = vmatprep.subr.mxu0 0.0
    %300 = vmatpush1.msra.mxu0 %v113
    %301 = vmatprep.subr.mxu0 0.0
    %302 = vmatpush1.msra.mxu0 %v112
    %303 = vmatprep.subr.mxu0 0.0
    %304 = vmatpush1.msra.mxu0 %v111
    %305 = vmatprep.subr.mxu0 0.0
    %306 = vmatpush2.msra.mxu0 0.0
    %307 = vmatprep.subr.mxu0 0.0
    %308 = vmatpush2.msra.mxu0 0.0
    %309 = vmatprep.subr.mxu0 0.0
    %310 = vmatpush2.msra.mxu0 0.0
    %311 = vmatprep.subr.mxu0 0.0
    %312 = vmatpush2.msra.mxu0 0.0
    %313 = vmatprep.subr.mxu0 0.0
    %314 = vmatpush2.msra.mxu0 0.0
    %315 = vmatprep.subr.mxu0 0.0
    %316 = vmatpush2.msra.mxu0 0.0
    %317 = vmatprep.subr.mxu0 0.0
    %318 = vmatpush2.msra.mxu0 0.0
    %319 = vmatprep.subr.mxu0 0.0
    %320 = vmatpush2.msra.mxu0 0.0
    %321 = vmatprep.subr.mxu0 0.0
    %322 = vmatpush2.msra.mxu0 0.0
    %323 = vmatprep.subr.mxu0 0.0
    %324 = vmatpush2.msra.mxu0 0.0
    %325 = vmatprep.subr.mxu0 0.0
    %326 = vmatpush2.msra.mxu0 0.0
    %327 = vmatprep.subr.mxu0 0.0
    %328 = vmatpush2.msra.mxu0 0.0
    %329 = vmatprep.subr.mxu0 0.0
    %330 = vmatpush2.msra.mxu0 0.0
    %331 = vmatprep.subr.mxu0 0.0
    %332 = vmatpush2.msra.mxu0 0.0
    %333 = vmatprep.subr.mxu0 0.0
    %334 = vmatpush2.msra.mxu0 0.0
    %335 = vmatprep.subr.mxu0 0.0
    %336 = vmatpush2.msra.mxu0 0.0
    %337 = vmatprep.mubr.f32.mxu0 0.0
    %338 = vmatmul.mubr.f32.gmra.mxu0 %v271
    %v339 = vpop.f32.mrf.mxu0
    %v340 = vadd.f32 0.0, %v339
    %v341 = vpop.f32.mrf.mxu0
    %342 = vdwg.mxu0
    %v343 = vld [vmem:[#allocation3] sm:$0xff]
    %v344 = vadd.f32 %v343, %v340
    %v345 = vxor.u32 %v344, 2147483648
    %v346 = vmul.f32 %v345, 1.442695
    %v347 = vpow.pop %v346
    %v348 = vadd.f32 %v347, 1.0
    %v349 = vrcp.pop %v348
    %v350 = vmul.f32 1.0, %v349
    %v351 = vadd.f32 %v340, %v119
    %353 = vrot.lane.b32.xlu0 %v351, 64
    %v354 = vpop.permute.xlu0 %353
    %v356 = vmul.f32 %v350, %v354
    %358 = vrot.lane.b32.xlu0 %v356, 64
    %v359 = vpop.permute.xlu0 %358
    %v361 = vadd.f32 %v343, %v359
    %v362 = vtanh.pop %v361
    %v363 = vsub.f32 1.0, %v350
    %365 = vrot.lane.b32.xlu0 %v362, 96
    %v366 = vpop.permute.xlu0 %365
    %v368 = vmul.f32 %v363, %v366
    %v369 = vmul.f32 %v350, 0.0
    %v370 = vadd.f32 %v368, %v369
    %372 = vrot.lane.b32.xlu0 %v370, 96
    %v373 = vpop.permute.xlu0 %372
    %375 = vst.msk [vmem:[#allocation2] sm:$0xff] %vm33, %v373
    %v376 = vsel %vm33, %v373, 0
    %378 = vmatprep.subr.mxu0 0.0
    %379 = vmatpush1.msra.mxu0 0.0
    %380 = vmatprep.subr.mxu0 0.0
    %381 = vmatpush1.msra.mxu0 0.0
    %382 = vmatprep.subr.mxu0 0.0
    %383 = vmatpush1.msra.mxu0 0.0
    %384 = vmatprep.subr.mxu0 0.0
    %385 = vmatpush1.msra.mxu0 0.0
    %386 = vmatprep.subr.mxu0 0.0
    %387 = vmatpush1.msra.mxu0 0.0
    %388 = vmatprep.subr.mxu0 0.0
    %389 = vmatpush1.msra.mxu0 0.0
    %390 = vmatprep.subr.mxu0 0.0
    %391 = vmatpush1.msra.mxu0 0.0
    %392 = vmatprep.subr.mxu0 0.0
    %393 = vmatpush1.msra.mxu0 0.0
    %394 = vmatprep.subr.mxu0 0.0
    %395 = vmatpush1.msra.mxu0 0.0
    %396 = vmatprep.subr.mxu0 0.0
    %397 = vmatpush1.msra.mxu0 0.0
    %398 = vmatprep.subr.mxu0 0.0
    %399 = vmatpush1.msra.mxu0 0.0
    %400 = vmatprep.subr.mxu0 0.0
    %401 = vmatpush1.msra.mxu0 0.0
    %402 = vmatprep.subr.mxu0 0.0
    %403 = vmatpush1.msra.mxu0 %v114
    %404 = vmatprep.subr.mxu0 0.0
    %405 = vmatpush1.msra.mxu0 %v113
    %406 = vmatprep.subr.mxu0 0.0
    %407 = vmatpush1.msra.mxu0 %v112
    %408 = vmatprep.subr.mxu0 0.0
    %409 = vmatpush1.msra.mxu0 %v111
    %410 = vmatprep.subr.mxu0 0.0
    %411 = vmatpush2.msra.mxu0 0.0
    %412 = vmatprep.subr.mxu0 0.0
    %413 = vmatpush2.msra.mxu0 0.0
    %414 = vmatprep.subr.mxu0 0.0
    %415 = vmatpush2.msra.mxu0 0.0
    %416 = vmatprep.subr.mxu0 0.0
    %417 = vmatpush2.msra.mxu0 0.0
    %418 = vmatprep.subr.mxu0 0.0
    %419 = vmatpush2.msra.mxu0 0.0
    %420 = vmatprep.subr.mxu0 0.0
    %421 = vmatpush2.msra.mxu0 0.0
    %422 = vmatprep.subr.mxu0 0.0
    %423 = vmatpush2.msra.mxu0 0.0
    %424 = vmatprep.subr.mxu0 0.0
    %425 = vmatpush2.msra.mxu0 0.0
    %426 = vmatprep.subr.mxu0 0.0
    %427 = vmatpush2.msra.mxu0 0.0
    %428 = vmatprep.subr.mxu0 0.0
    %429 = vmatpush2.msra.mxu0 0.0
    %430 = vmatprep.subr.mxu0 0.0
    %431 = vmatpush2.msra.mxu0 0.0
    %432 = vmatprep.subr.mxu0 0.0
    %433 = vmatpush2.msra.mxu0 0.0
    %434 = vmatprep.subr.mxu0 0.0
    %435 = vmatpush2.msra.mxu0 0.0
    %436 = vmatprep.subr.mxu0 0.0
    %437 = vmatpush2.msra.mxu0 0.0
    %438 = vmatprep.subr.mxu0 0.0
    %439 = vmatpush2.msra.mxu0 0.0
    %440 = vmatprep.subr.mxu0 0.0
    %441 = vmatpush2.msra.mxu0 0.0
    %442 = vmatprep.mubr.f32.mxu0 0.0
    %443 = vmatmul.mubr.f32.gmra.mxu0 %v376
    %v444 = vpop.f32.mrf.mxu0
    %v445 = vadd.f32 0.0, %v444
    %v446 = vpop.f32.mrf.mxu0
    %447 = vdwg.mxu0
    %v448 = vld [vmem:[#allocation3 + $0x8] sm:$0xff]
    %v449 = vadd.f32 %v448, %v445
    %v450 = vxor.u32 %v449, 2147483648
    %v451 = vmul.f32 %v450, 1.442695
    %v452 = vpow.pop %v451
    %v453 = vadd.f32 %v452, 1.0
    %v454 = vrcp.pop %v453
    %v455 = vmul.f32 1.0, %v454
    %v456 = vadd.f32 %v445, %v119
    %458 = vrot.lane.b32.xlu0 %v456, 64
    %v459 = vpop.permute.xlu0 %458
    %v461 = vmul.f32 %v455, %v459
    %463 = vrot.lane.b32.xlu0 %v461, 64
    %v464 = vpop.permute.xlu0 %463
    %v466 = vadd.f32 %v448, %v464
    %v467 = vtanh.pop %v466
    %v468 = vsub.f32 1.0, %v455
    %470 = vrot.lane.b32.xlu0 %v467, 96
    %v471 = vpop.permute.xlu0 %470
    %v473 = vmul.f32 %v468, %v471
    %v474 = vmul.f32 %v455, %v370
    %v475 = vadd.f32 %v473, %v474
    %477 = vrot.lane.b32.xlu0 %v475, 96
    %v478 = vpop.permute.xlu0 %477
    %480 = vst.msk [vmem:[#allocation2 + $0x8] sm:$0xff] %vm33, %v478
    %v481 = vsel %vm33, %v478, 0
    %483 = vmatprep.subr.mxu0 0.0
    %484 = vmatpush1.msra.mxu0 0.0
    %485 = vmatprep.subr.mxu0 0.0
    %486 = vmatpush1.msra.mxu0 0.0
    %487 = vmatprep.subr.mxu0 0.0
    %488 = vmatpush1.msra.mxu0 0.0
    %489 = vmatprep.subr.mxu0 0.0
    %490 = vmatpush1.msra.mxu0 0.0
    %491 = vmatprep.subr.mxu0 0.0
    %492 = vmatpush1.msra.mxu0 0.0
    %493 = vmatprep.subr.mxu0 0.0
    %494 = vmatpush1.msra.mxu0 0.0
    %495 = vmatprep.subr.mxu0 0.0
    %496 = vmatpush1.msra.mxu0 0.0
    %497 = vmatprep.subr.mxu0 0.0
    %498 = vmatpush1.msra.mxu0 0.0
    %499 = vmatprep.subr.mxu0 0.0
    %500 = vmatpush1.msra.mxu0 0.0
    %501 = vmatprep.subr.mxu0 0.0
    %502 = vmatpush1.msra.mxu0 0.0
    %503 = vmatprep.subr.mxu0 0.0
    %504 = vmatpush1.msra.mxu0 0.0
    %505 = vmatprep.subr.mxu0 0.0
    %506 = vmatpush1.msra.mxu0 0.0
    %507 = vmatprep.subr.mxu0 0.0
    %508 = vmatpush1.msra.mxu0 %v114
    %509 = vmatprep.subr.mxu0 0.0
    %510 = vmatpush1.msra.mxu0 %v113
    %511 = vmatprep.subr.mxu0 0.0
    %512 = vmatpush1.msra.mxu0 %v112
    %513 = vmatprep.subr.mxu0 0.0
    %514 = vmatpush1.msra.mxu0 %v111
    %515 = vmatprep.subr.mxu0 0.0
    %516 = vmatpush2.msra.mxu0 0.0
    %517 = vmatprep.subr.mxu0 0.0
    %518 = vmatpush2.msra.mxu0 0.0
    %519 = vmatprep.subr.mxu0 0.0
    %520 = vmatpush2.msra.mxu0 0.0
    %521 = vmatprep.subr.mxu0 0.0
    %522 = vmatpush2.msra.mxu0 0.0
    %523 = vmatprep.subr.mxu0 0.0
    %524 = vmatpush2.msra.mxu0 0.0
    %525 = vmatprep.subr.mxu0 0.0
    %526 = vmatpush2.msra.mxu0 0.0
    %527 = vmatprep.subr.mxu0 0.0
    %528 = vmatpush2.msra.mxu0 0.0
    %529 = vmatprep.subr.mxu0 0.0
    %530 = vmatpush2.msra.mxu0 0.0
    %531 = vmatprep.subr.mxu0 0.0
    %532 = vmatpush2.msra.mxu0 0.0
    %533 = vmatprep.subr.mxu0 0.0
    %534 = vmatpush2.msra.mxu0 0.0
    %535 = vmatprep.subr.mxu0 0.0
    %536 = vmatpush2.msra.mxu0 0.0
    %537 = vmatprep.subr.mxu0 0.0
    %538 = vmatpush2.msra.mxu0 0.0
    %539 = vmatprep.subr.mxu0 0.0
    %540 = vmatpush2.msra.mxu0 0.0
    %541 = vmatprep.subr.mxu0 0.0
    %542 = vmatpush2.msra.mxu0 0.0
    %543 = vmatprep.subr.mxu0 0.0
    %544 = vmatpush2.msra.mxu0 0.0
    %545 = vmatprep.subr.mxu0 0.0
    %546 = vmatpush2.msra.mxu0 0.0
    %547 = vmatprep.mubr.f32.mxu0 0.0
    %548 = vmatmul.mubr.f32.gmra.mxu0 %v481
    %v549 = vpop.f32.mrf.mxu0
    %v550 = vadd.f32 0.0, %v549
    %v551 = vpop.f32.mrf.mxu0
    %552 = vdwg.mxu0
    %v553 = vld [vmem:[#allocation3 + $0x10] sm:$0xff]
    %v554 = vadd.f32 %v553, %v550
    %v555 = vxor.u32 %v554, 2147483648
    %v556 = vmul.f32 %v555, 1.442695
    %v557 = vpow.pop %v556
    %v558 = vadd.f32 %v557, 1.0
    %v559 = vrcp.pop %v558
    %v560 = vmul.f32 1.0, %v559
    %v561 = vadd.f32 %v550, %v119
    %563 = vrot.lane.b32.xlu0 %v561, 64
    %v564 = vpop.permute.xlu0 %563
    %v566 = vmul.f32 %v560, %v564
    %568 = vrot.lane.b32.xlu0 %v566, 64
    %v569 = vpop.permute.xlu0 %568
    %v571 = vadd.f32 %v553, %v569
    %v572 = vtanh.pop %v571
    %v573 = vsub.f32 1.0, %v560
    %575 = vrot.lane.b32.xlu0 %v572, 96
    %v576 = vpop.permute.xlu0 %575
    %v578 = vmul.f32 %v573, %v576
    %v579 = vmul.f32 %v560, %v475
    %v580 = vadd.f32 %v578, %v579
    %582 = vrot.lane.b32.xlu0 %v580, 96
    %v583 = vpop.permute.xlu0 %582
    %585 = vst.msk [vmem:[#allocation2 + $0x10] sm:$0xff] %vm33, %v583
    %v586 = vsel %vm33, %v583, 0
    %588 = vmatprep.subr.mxu0 0.0
    %589 = vmatpush1.msra.mxu0 0.0
    %590 = vmatprep.subr.mxu0 0.0
    %591 = vmatpush1.msra.mxu0 0.0
    %592 = vmatprep.subr.mxu0 0.0
    %593 = vmatpush1.msra.mxu0 0.0
    %594 = vmatprep.subr.mxu0 0.0
    %595 = vmatpush1.msra.mxu0 0.0
    %596 = vmatprep.subr.mxu0 0.0
    %597 = vmatpush1.msra.mxu0 0.0
    %598 = vmatprep.subr.mxu0 0.0
    %599 = vmatpush1.msra.mxu0 0.0
    %600 = vmatprep.subr.mxu0 0.0
    %601 = vmatpush1.msra.mxu0 0.0
    %602 = vmatprep.subr.mxu0 0.0
    %603 = vmatpush1.msra.mxu0 0.0
    %604 = vmatprep.subr.mxu0 0.0
    %605 = vmatpush1.msra.mxu0 0.0
    %606 = vmatprep.subr.mxu0 0.0
    %607 = vmatpush1.msra.mxu0 0.0
    %608 = vmatprep.subr.mxu0 0.0
    %609 = vmatpush1.msra.mxu0 0.0
    %610 = vmatprep.subr.mxu0 0.0
    %611 = vmatpush1.msra.mxu0 0.0
    %612 = vmatprep.subr.mxu0 0.0
    %613 = vmatpush1.msra.mxu0 %v114
    %614 = vmatprep.subr.mxu0 0.0
    %615 = vmatpush1.msra.mxu0 %v113
    %616 = vmatprep.subr.mxu0 0.0
    %617 = vmatpush1.msra.mxu0 %v112
    %618 = vmatprep.subr.mxu0 0.0
    %619 = vmatpush1.msra.mxu0 %v111
    %620 = vmatprep.subr.mxu0 0.0
    %621 = vmatpush2.msra.mxu0 0.0
    %622 = vmatprep.subr.mxu0 0.0
    %623 = vmatpush2.msra.mxu0 0.0
    %624 = vmatprep.subr.mxu0 0.0
    %625 = vmatpush2.msra.mxu0 0.0
    %626 = vmatprep.subr.mxu0 0.0
    %627 = vmatpush2.msra.mxu0 0.0
    %628 = vmatprep.subr.mxu0 0.0
    %629 = vmatpush2.msra.mxu0 0.0
    %630 = vmatprep.subr.mxu0 0.0
    %631 = vmatpush2.msra.mxu0 0.0
    %632 = vmatprep.subr.mxu0 0.0
    %633 = vmatpush2.msra.mxu0 0.0
    %634 = vmatprep.subr.mxu0 0.0
    %635 = vmatpush2.msra.mxu0 0.0
    %636 = vmatprep.subr.mxu0 0.0
    %637 = vmatpush2.msra.mxu0 0.0
    %638 = vmatprep.subr.mxu0 0.0
    %639 = vmatpush2.msra.mxu0 0.0
    %640 = vmatprep.subr.mxu0 0.0
    %641 = vmatpush2.msra.mxu0 0.0
    %642 = vmatprep.subr.mxu0 0.0
    %643 = vmatpush2.msra.mxu0 0.0
    %644 = vmatprep.subr.mxu0 0.0
    %645 = vmatpush2.msra.mxu0 0.0
    %646 = vmatprep.subr.mxu0 0.0
    %647 = vmatpush2.msra.mxu0 0.0
    %648 = vmatprep.subr.mxu0 0.0
    %649 = vmatpush2.msra.mxu0 0.0
    %650 = vmatprep.subr.mxu0 0.0
    %651 = vmatpush2.msra.mxu0 0.0
    %652 = vmatprep.mubr.f32.mxu0 0.0
    %653 = vmatmul.mubr.f32.gmra.mxu0 %v586
    %v654 = vpop.f32.mrf.mxu0
    %v655 = vadd.f32 0.0, %v654
    %v656 = vpop.f32.mrf.mxu0
    %657 = vdwg.mxu0
    %v658 = vld [vmem:[#allocation3 + $0x18] sm:$0xff]
    %v659 = vadd.f32 %v658, %v655
    %v660 = vxor.u32 %v659, 2147483648
    %v661 = vmul.f32 %v660, 1.442695
    %v662 = vpow.pop %v661
    %v663 = vadd.f32 %v662, 1.0
    %v664 = vrcp.pop %v663
    %v665 = vmul.f32 1.0, %v664
    %v666 = vadd.f32 %v655, %v119
    %668 = vrot.lane.b32.xlu0 %v666, 64
    %v669 = vpop.permute.xlu0 %668
    %v671 = vmul.f32 %v665, %v669
    %673 = vrot.lane.b32.xlu0 %v671, 64
    %v674 = vpop.permute.xlu0 %673
    %v676 = vadd.f32 %v658, %v674
    %v677 = vtanh.pop %v676
    %v678 = vsub.f32 1.0, %v665
    %680 = vrot.lane.b32.xlu0 %v677, 96
    %v681 = vpop.permute.xlu0 %680
    %v683 = vmul.f32 %v678, %v681
    %v684 = vmul.f32 %v665, %v580
    %v685 = vadd.f32 %v683, %v684
    %687 = vrot.lane.b32.xlu0 %v685, 96
    %v688 = vpop.permute.xlu0 %687
    %690 = vst.msk [vmem:[#allocation2 + $0x18] sm:$0xff] %vm33, %v688
    %v691 = vsel %vm33, %v688, 0
    %693 = vmatprep.subr.mxu0 0.0
    %694 = vmatpush1.msra.mxu0 0.0
    %695 = vmatprep.subr.mxu0 0.0
    %696 = vmatpush1.msra.mxu0 0.0
    %697 = vmatprep.subr.mxu0 0.0
    %698 = vmatpush1.msra.mxu0 0.0
    %699 = vmatprep.subr.mxu0 0.0
    %700 = vmatpush1.msra.mxu0 0.0
    %701 = vmatprep.subr.mxu0 0.0
    %702 = vmatpush1.msra.mxu0 0.0
    %703 = vmatprep.subr.mxu0 0.0
    %704 = vmatpush1.msra.mxu0 0.0
    %705 = vmatprep.subr.mxu0 0.0
    %706 = vmatpush1.msra.mxu0 0.0
    %707 = vmatprep.subr.mxu0 0.0
    %708 = vmatpush1.msra.mxu0 0.0
    %709 = vmatprep.subr.mxu0 0.0
    %710 = vmatpush1.msra.mxu0 0.0
    %711 = vmatprep.subr.mxu0 0.0
    %712 = vmatpush1.msra.mxu0 0.0
    %713 = vmatprep.subr.mxu0 0.0
    %714 = vmatpush1.msra.mxu0 0.0
    %715 = vmatprep.subr.mxu0 0.0
    %716 = vmatpush1.msra.mxu0 0.0
    %717 = vmatprep.subr.mxu0 0.0
    %718 = vmatpush1.msra.mxu0 %v114
    %719 = vmatprep.subr.mxu0 0.0
    %720 = vmatpush1.msra.mxu0 %v113
    %721 = vmatprep.subr.mxu0 0.0
    %722 = vmatpush1.msra.mxu0 %v112
    %723 = vmatprep.subr.mxu0 0.0
    %724 = vmatpush1.msra.mxu0 %v111
    %725 = vmatprep.subr.mxu0 0.0
    %726 = vmatpush2.msra.mxu0 0.0
    %727 = vmatprep.subr.mxu0 0.0
    %728 = vmatpush2.msra.mxu0 0.0
    %729 = vmatprep.subr.mxu0 0.0
    %730 = vmatpush2.msra.mxu0 0.0
    %731 = vmatprep.subr.mxu0 0.0
    %732 = vmatpush2.msra.mxu0 0.0
    %733 = vmatprep.subr.mxu0 0.0
    %734 = vmatpush2.msra.mxu0 0.0
    %735 = vmatprep.subr.mxu0 0.0
    %736 = vmatpush2.msra.mxu0 0.0
    %737 = vmatprep.subr.mxu0 0.0
    %738 = vmatpush2.msra.mxu0 0.0
    %739 = vmatprep.subr.mxu0 0.0
    %740 = vmatpush2.msra.mxu0 0.0
    %741 = vmatprep.subr.mxu0 0.0
    %742 = vmatpush2.msra.mxu0 0.0
    %743 = vmatprep.subr.mxu0 0.0
    %744 = vmatpush2.msra.mxu0 0.0
    %745 = vmatprep.subr.mxu0 0.0
    %746 = vmatpush2.msra.mxu0 0.0
    %747 = vmatprep.subr.mxu0 0.0
    %748 = vmatpush2.msra.mxu0 0.0
    %749 = vmatprep.subr.mxu0 0.0
    %750 = vmatpush2.msra.mxu0 0.0
    %751 = vmatprep.subr.mxu0 0.0
    %752 = vmatpush2.msra.mxu0 0.0
    %753 = vmatprep.subr.mxu0 0.0
    %754 = vmatpush2.msra.mxu0 0.0
    %755 = vmatprep.subr.mxu0 0.0
    %756 = vmatpush2.msra.mxu0 0.0
    %757 = vmatprep.mubr.f32.mxu0 0.0
    %758 = vmatmul.mubr.f32.gmra.mxu0 %v691
    %v759 = vpop.f32.mrf.mxu0
    %v760 = vadd.f32 0.0, %v759
    %v761 = vpop.f32.mrf.mxu0
    %762 = vdwg.mxu0
    %v763 = vld [vmem:[#allocation3 + $0x20] sm:$0xff]
    %v764 = vadd.f32 %v763, %v760
    %v765 = vxor.u32 %v764, 2147483648
    %v766 = vmul.f32 %v765, 1.442695
    %v767 = vpow.pop %v766
    %v768 = vadd.f32 %v767, 1.0
    %v769 = vrcp.pop %v768
    %v770 = vmul.f32 1.0, %v769
    %v771 = vadd.f32 %v760, %v119
    %773 = vrot.lane.b32.xlu0 %v771, 64
    %v774 = vpop.permute.xlu0 %773
    %v776 = vmul.f32 %v770, %v774
    %778 = vrot.lane.b32.xlu0 %v776, 64
    %v779 = vpop.permute.xlu0 %778
    %v781 = vadd.f32 %v763, %v779
    %v782 = vtanh.pop %v781
    %v783 = vsub.f32 1.0, %v770
    %785 = vrot.lane.b32.xlu0 %v782, 96
    %v786 = vpop.permute.xlu0 %785
    %v788 = vmul.f32 %v783, %v786
    %v789 = vmul.f32 %v770, %v685
    %v790 = vadd.f32 %v788, %v789
    %792 = vrot.lane.b32.xlu0 %v790, 96
    %v793 = vpop.permute.xlu0 %792
    %795 = vst.msk [vmem:[#allocation2 + $0x20] sm:$0xff] %vm33, %v793
    %v796 = vsel %vm33, %v793, 0
    %798 = vmatprep.subr.mxu0 0.0
    %799 = vmatpush1.msra.mxu0 0.0
    %800 = vmatprep.subr.mxu0 0.0
    %801 = vmatpush1.msra.mxu0 0.0
    %802 = vmatprep.subr.mxu0 0.0
    %803 = vmatpush1.msra.mxu0 0.0
    %804 = vmatprep.subr.mxu0 0.0
    %805 = vmatpush1.msra.mxu0 0.0
    %806 = vmatprep.subr.mxu0 0.0
    %807 = vmatpush1.msra.mxu0 0.0
    %808 = vmatprep.subr.mxu0 0.0
    %809 = vmatpush1.msra.mxu0 0.0
    %810 = vmatprep.subr.mxu0 0.0
    %811 = vmatpush1.msra.mxu0 0.0
    %812 = vmatprep.subr.mxu0 0.0
    %813 = vmatpush1.msra.mxu0 0.0
    %814 = vmatprep.subr.mxu0 0.0
    %815 = vmatpush1.msra.mxu0 0.0
    %816 = vmatprep.subr.mxu0 0.0
    %817 = vmatpush1.msra.mxu0 0.0
    %818 = vmatprep.subr.mxu0 0.0
    %819 = vmatpush1.msra.mxu0 0.0
    %820 = vmatprep.subr.mxu0 0.0
    %821 = vmatpush1.msra.mxu0 0.0
    %822 = vmatprep.subr.mxu0 0.0
    %823 = vmatpush1.msra.mxu0 %v114
    %824 = vmatprep.subr.mxu0 0.0
    %825 = vmatpush1.msra.mxu0 %v113
    %826 = vmatprep.subr.mxu0 0.0
    %827 = vmatpush1.msra.mxu0 %v112
    %828 = vmatprep.subr.mxu0 0.0
    %829 = vmatpush1.msra.mxu0 %v111
    %830 = vmatprep.subr.mxu0 0.0
    %831 = vmatpush2.msra.mxu0 0.0
    %832 = vmatprep.subr.mxu0 0.0
    %833 = vmatpush2.msra.mxu0 0.0
    %834 = vmatprep.subr.mxu0 0.0
    %835 = vmatpush2.msra.mxu0 0.0
    %836 = vmatprep.subr.mxu0 0.0
    %837 = vmatpush2.msra.mxu0 0.0
    %838 = vmatprep.subr.mxu0 0.0
    %839 = vmatpush2.msra.mxu0 0.0
    %840 = vmatprep.subr.mxu0 0.0
    %841 = vmatpush2.msra.mxu0 0.0
    %842 = vmatprep.subr.mxu0 0.0
    %843 = vmatpush2.msra.mxu0 0.0
    %844 = vmatprep.subr.mxu0 0.0
    %845 = vmatpush2.msra.mxu0 0.0
    %846 = vmatprep.subr.mxu0 0.0
    %847 = vmatpush2.msra.mxu0 0.0
    %848 = vmatprep.subr.mxu0 0.0
    %849 = vmatpush2.msra.mxu0 0.0
    %850 = vmatprep.subr.mxu0 0.0
    %851 = vmatpush2.msra.mxu0 0.0
    %852 = vmatprep.subr.mxu0 0.0
    %853 = vmatpush2.msra.mxu0 0.0
    %854 = vmatprep.subr.mxu0 0.0
    %855 = vmatpush2.msra.mxu0 0.0
    %856 = vmatprep.subr.mxu0 0.0
    %857 = vmatpush2.msra.mxu0 0.0
    %858 = vmatprep.subr.mxu0 0.0
    %859 = vmatpush2.msra.mxu0 0.0
    %860 = vmatprep.subr.mxu0 0.0
    %861 = vmatpush2.msra.mxu0 0.0
    %862 = vmatprep.mubr.f32.mxu0 0.0
    %863 = vmatmul.mubr.f32.gmra.mxu0 %v796
    %v864 = vpop.f32.mrf.mxu0
    %v865 = vadd.f32 0.0, %v864
    %v866 = vpop.f32.mrf.mxu0
    %867 = vdwg.mxu0
    %v868 = vld [vmem:[#allocation3 + $0x28] sm:$0xff]
    %v869 = vadd.f32 %v868, %v865
    %v870 = vxor.u32 %v869, 2147483648
    %v871 = vmul.f32 %v870, 1.442695
    %v872 = vpow.pop %v871
    %v873 = vadd.f32 %v872, 1.0
    %v874 = vrcp.pop %v873
    %v875 = vmul.f32 1.0, %v874
    %v876 = vadd.f32 %v865, %v119
    %878 = vrot.lane.b32.xlu0 %v876, 64
    %v879 = vpop.permute.xlu0 %878
    %v881 = vmul.f32 %v875, %v879
    %883 = vrot.lane.b32.xlu0 %v881, 64
    %v884 = vpop.permute.xlu0 %883
    %v886 = vadd.f32 %v868, %v884
    %v887 = vtanh.pop %v886
    %v888 = vsub.f32 1.0, %v875
    %890 = vrot.lane.b32.xlu0 %v887, 96
    %v891 = vpop.permute.xlu0 %890
    %v893 = vmul.f32 %v888, %v891
    %v894 = vmul.f32 %v875, %v790
    %v895 = vadd.f32 %v893, %v894
    %897 = vrot.lane.b32.xlu0 %v895, 96
    %v898 = vpop.permute.xlu0 %897
    %900 = vst.msk [vmem:[#allocation2 + $0x28] sm:$0xff] %vm33, %v898
    %v901 = vsel %vm33, %v898, 0
    %903 = vmatprep.subr.mxu0 0.0
    %904 = vmatpush1.msra.mxu0 0.0
    %905 = vmatprep.subr.mxu0 0.0
    %906 = vmatpush1.msra.mxu0 0.0
    %907 = vmatprep.subr.mxu0 0.0
    %908 = vmatpush1.msra.mxu0 0.0
    %909 = vmatprep.subr.mxu0 0.0
    %910 = vmatpush1.msra.mxu0 0.0
    %911 = vmatprep.subr.mxu0 0.0
    %912 = vmatpush1.msra.mxu0 0.0
    %913 = vmatprep.subr.mxu0 0.0
    %914 = vmatpush1.msra.mxu0 0.0
    %915 = vmatprep.subr.mxu0 0.0
    %916 = vmatpush1.msra.mxu0 0.0
    %917 = vmatprep.subr.mxu0 0.0
    %918 = vmatpush1.msra.mxu0 0.0
    %919 = vmatprep.subr.mxu0 0.0
    %920 = vmatpush1.msra.mxu0 0.0
    %921 = vmatprep.subr.mxu0 0.0
    %922 = vmatpush1.msra.mxu0 0.0
    %923 = vmatprep.subr.mxu0 0.0
    %924 = vmatpush1.msra.mxu0 0.0
    %925 = vmatprep.subr.mxu0 0.0
    %926 = vmatpush1.msra.mxu0 0.0
    %927 = vmatprep.subr.mxu0 0.0
    %928 = vmatpush1.msra.mxu0 %v114
    %929 = vmatprep.subr.mxu0 0.0
    %930 = vmatpush1.msra.mxu0 %v113
    %931 = vmatprep.subr.mxu0 0.0
    %932 = vmatpush1.msra.mxu0 %v112
    %933 = vmatprep.subr.mxu0 0.0
    %934 = vmatpush1.msra.mxu0 %v111
    %935 = vmatprep.subr.mxu0 0.0
    %936 = vmatpush2.msra.mxu0 0.0
    %937 = vmatprep.subr.mxu0 0.0
    %938 = vmatpush2.msra.mxu0 0.0
    %939 = vmatprep.subr.mxu0 0.0
    %940 = vmatpush2.msra.mxu0 0.0
    %941 = vmatprep.subr.mxu0 0.0
    %942 = vmatpush2.msra.mxu0 0.0
    %943 = vmatprep.subr.mxu0 0.0
    %944 = vmatpush2.msra.mxu0 0.0
    %945 = vmatprep.subr.mxu0 0.0
    %946 = vmatpush2.msra.mxu0 0.0
    %947 = vmatprep.subr.mxu0 0.0
    %948 = vmatpush2.msra.mxu0 0.0
    %949 = vmatprep.subr.mxu0 0.0
    %950 = vmatpush2.msra.mxu0 0.0
    %951 = vmatprep.subr.mxu0 0.0
    %952 = vmatpush2.msra.mxu0 0.0
    %953 = vmatprep.subr.mxu0 0.0
    %954 = vmatpush2.msra.mxu0 0.0
    %955 = vmatprep.subr.mxu0 0.0
    %956 = vmatpush2.msra.mxu0 0.0
    %957 = vmatprep.subr.mxu0 0.0
    %958 = vmatpush2.msra.mxu0 0.0
    %959 = vmatprep.subr.mxu0 0.0
    %960 = vmatpush2.msra.mxu0 0.0
    %961 = vmatprep.subr.mxu0 0.0
    %962 = vmatpush2.msra.mxu0 0.0
    %963 = vmatprep.subr.mxu0 0.0
    %964 = vmatpush2.msra.mxu0 0.0
    %965 = vmatprep.subr.mxu0 0.0
    %966 = vmatpush2.msra.mxu0 0.0
    %967 = vmatprep.mubr.f32.mxu0 0.0
    %968 = vmatmul.mubr.f32.gmra.mxu0 %v901
    %v969 = vpop.f32.mrf.mxu0
    %v970 = vadd.f32 0.0, %v969
    %v971 = vpop.f32.mrf.mxu0
    %972 = vdwg.mxu0
    %v973 = vld [vmem:[#allocation3 + $0x30] sm:$0xff]
    %v974 = vadd.f32 %v973, %v970
    %v975 = vxor.u32 %v974, 2147483648
    %v976 = vmul.f32 %v975, 1.442695
    %v977 = vpow.pop %v976
    %v978 = vadd.f32 %v977, 1.0
    %v979 = vrcp.pop %v978
    %v980 = vmul.f32 1.0, %v979
    %v981 = vadd.f32 %v970, %v119
    %983 = vrot.lane.b32.xlu0 %v981, 64
    %v984 = vpop.permute.xlu0 %983
    %v986 = vmul.f32 %v980, %v984
    %988 = vrot.lane.b32.xlu0 %v986, 64
    %v989 = vpop.permute.xlu0 %988
    %v991 = vadd.f32 %v973, %v989
    %v992 = vtanh.pop %v991
    %v993 = vsub.f32 1.0, %v980
    %995 = vrot.lane.b32.xlu0 %v992, 96
    %v996 = vpop.permute.xlu0 %995
    %v998 = vmul.f32 %v993, %v996
    %v999 = vmul.f32 %v980, %v895
    %v1000 = vadd.f32 %v998, %v999
    %1002 = vrot.lane.b32.xlu0 %v1000, 96
    %v1003 = vpop.permute.xlu0 %1002
    %1005 = vst.msk [vmem:[#allocation2 + $0x30] sm:$0xff] %vm33, %v1003
    %v1006 = vsel %vm33, %v1003, 0
    %1008 = vmatprep.subr.mxu0 0.0
    %1009 = vmatpush1.msra.mxu0 0.0
    %1010 = vmatprep.subr.mxu0 0.0
    %1011 = vmatpush1.msra.mxu0 0.0
    %1012 = vmatprep.subr.mxu0 0.0
    %1013 = vmatpush1.msra.mxu0 0.0
    %1014 = vmatprep.subr.mxu0 0.0
    %1015 = vmatpush1.msra.mxu0 0.0
    %1016 = vmatprep.subr.mxu0 0.0
    %1017 = vmatpush1.msra.mxu0 0.0
    %1018 = vmatprep.subr.mxu0 0.0
    %1019 = vmatpush1.msra.mxu0 0.0
    %1020 = vmatprep.subr.mxu0 0.0
    %1021 = vmatpush1.msra.mxu0 0.0
    %1022 = vmatprep.subr.mxu0 0.0
    %1023 = vmatpush1.msra.mxu0 0.0
    %1024 = vmatprep.subr.mxu0 0.0
    %1025 = vmatpush1.msra.mxu0 0.0
    %1026 = vmatprep.subr.mxu0 0.0
    %1027 = vmatpush1.msra.mxu0 0.0
    %1028 = vmatprep.subr.mxu0 0.0
    %1029 = vmatpush1.msra.mxu0 0.0
    %1030 = vmatprep.subr.mxu0 0.0
    %1031 = vmatpush1.msra.mxu0 0.0
    %1032 = vmatprep.subr.mxu0 0.0
    %1033 = vmatpush1.msra.mxu0 %v114
    %1034 = vmatprep.subr.mxu0 0.0
    %1035 = vmatpush1.msra.mxu0 %v113
    %1036 = vmatprep.subr.mxu0 0.0
    %1037 = vmatpush1.msra.mxu0 %v112
    %1038 = vmatprep.subr.mxu0 0.0
    %1039 = vmatpush1.msra.mxu0 %v111
    %1040 = vmatprep.subr.mxu0 0.0
    %1041 = vmatpush2.msra.mxu0 0.0
    %1042 = vmatprep.subr.mxu0 0.0
    %1043 = vmatpush2.msra.mxu0 0.0
    %1044 = vmatprep.subr.mxu0 0.0
    %1045 = vmatpush2.msra.mxu0 0.0
    %1046 = vmatprep.subr.mxu0 0.0
    %1047 = vmatpush2.msra.mxu0 0.0
    %1048 = vmatprep.subr.mxu0 0.0
    %1049 = vmatpush2.msra.mxu0 0.0
    %1050 = vmatprep.subr.mxu0 0.0
    %1051 = vmatpush2.msra.mxu0 0.0
    %1052 = vmatprep.subr.mxu0 0.0
    %1053 = vmatpush2.msra.mxu0 0.0
    %1054 = vmatprep.subr.mxu0 0.0
    %1055 = vmatpush2.msra.mxu0 0.0
    %1056 = vmatprep.subr.mxu0 0.0
    %1057 = vmatpush2.msra.mxu0 0.0
    %1058 = vmatprep.subr.mxu0 0.0
    %1059 = vmatpush2.msra.mxu0 0.0
    %1060 = vmatprep.subr.mxu0 0.0
    %1061 = vmatpush2.msra.mxu0 0.0
    %1062 = vmatprep.subr.mxu0 0.0
    %1063 = vmatpush2.msra.mxu0 0.0
    %1064 = vmatprep.subr.mxu0 0.0
    %1065 = vmatpush2.msra.mxu0 0.0
    %1066 = vmatprep.subr.mxu0 0.0
    %1067 = vmatpush2.msra.mxu0 0.0
    %1068 = vmatprep.subr.mxu0 0.0
    %1069 = vmatpush2.msra.mxu0 0.0
    %1070 = vmatprep.subr.mxu0 0.0
    %1071 = vmatpush2.msra.mxu0 0.0
    %1072 = vmatprep.mubr.f32.mxu0 0.0
    %1073 = vmatmul.mubr.f32.gmra.mxu0 %v1006
    %v1074 = vpop.f32.mrf.mxu0
    %v1075 = vadd.f32 0.0, %v1074
    %v1076 = vpop.f32.mrf.mxu0
    %1077 = vdwg.mxu0
    %v1078 = vld [vmem:[#allocation3 + $0x38] sm:$0xff]
    %v1079 = vadd.f32 %v1078, %v1075
    %v1080 = vxor.u32 %v1079, 2147483648
    %v1081 = vmul.f32 %v1080, 1.442695
    %v1082 = vpow.pop %v1081
    %v1083 = vadd.f32 %v1082, 1.0
    %v1084 = vrcp.pop %v1083
    %v1085 = vmul.f32 1.0, %v1084
    %v1086 = vadd.f32 %v1075, %v119
    %1088 = vrot.lane.b32.xlu0 %v1086, 64
    %v1089 = vpop.permute.xlu0 %1088
    %v1091 = vmul.f32 %v1085, %v1089
    %1093 = vrot.lane.b32.xlu0 %v1091, 64
    %v1094 = vpop.permute.xlu0 %1093
    %v1096 = vadd.f32 %v1078, %v1094
    %v1097 = vtanh.pop %v1096
    %v1098 = vsub.f32 1.0, %v1085
    %1100 = vrot.lane.b32.xlu0 %v1097, 96
    %v1101 = vpop.permute.xlu0 %1100
    %v1103 = vmul.f32 %v1098, %v1101
    %v1104 = vmul.f32 %v1085, %v1000
    %v1105 = vadd.f32 %v1103, %v1104
    %1107 = vrot.lane.b32.xlu0 %v1105, 96
    %v1108 = vpop.permute.xlu0 %1107
    %1110 = vst.msk [vmem:[#allocation2 + $0x38] sm:$0xff] %vm33, %v1108
    %v1111 = vld [vmem:[%s3] sm:$0xff]
    %v1112 = vld [vmem:[%s3 + $0x8] sm:$0xff]
    %v1113 = vld [vmem:[%s3 + $0x10] sm:$0xff]
    %v1114 = vld [vmem:[%s3 + $0x18] sm:$0xff]
    %v1115 = vld [vmem:[%s3 + $0x20] sm:$0xff]
    %v1116 = vld [vmem:[%s3 + $0x28] sm:$0xff]
    %v1117 = vld [vmem:[%s3 + $0x30] sm:$0xff]
    %v1118 = vld [vmem:[%s3 + $0x38] sm:$0xff]
    %v1119 = vld [vmem:[%s3 + $0x40] sm:$0x3]
    %v1120 = vlaneseq
    %v1121 = vshrl.u32 %v1120, 7
    %v1122 = vsub.s32 1, %v1121
    %v1123 = vrot.slane %v1119, %v1122
    %v1124 = vld [vmem:[#allocation2] sm:$0xff]
    %v1125 = vld [vmem:[#allocation2 + $0x8] sm:$0xff]
    %v1126 = vld [vmem:[#allocation2 + $0x10] sm:$0xff]
    %v1127 = vld [vmem:[#allocation2 + $0x18] sm:$0xff]
    %v1128 = vld [vmem:[#allocation2 + $0x20] sm:$0xff]
    %v1129 = vld [vmem:[#allocation2 + $0x28] sm:$0xff]
    %v1130 = vld [vmem:[#allocation2 + $0x30] sm:$0xff]
    %v1131 = vld [vmem:[#allocation2 + $0x38] sm:$0xff]
    %v1132 = vlaneseq
    %v1133 = vshrl.u32 %v1132, 7
    %v1134 = vsub.s32 0, %v1133
    %v1135 = vrot.slane %v1119, %v1134
    %v1137 = vsel %vm33, %v1124, 0
    %v1140 = vsel %vm33, %v1125, 0
    %v1143 = vsel %vm33, %v1126, 0
    %v1146 = vsel %vm33, %v1127, 0
    %v1149 = vsel %vm33, %v1128, 0
    %v1152 = vsel %vm33, %v1129, 0
    %v1155 = vsel %vm33, %v1130, 0
    %v1158 = vsel %vm33, %v1131, 0
    %1160 = vmatprep.subr.mxu0 0.0
    %1161 = vmatpush1.msra.mxu0 0.0
    %1162 = vmatprep.subr.mxu0 0.0
    %1163 = vmatpush1.msra.mxu0 0.0
    %1164 = vmatprep.subr.mxu0 0.0
    %1165 = vmatpush1.msra.mxu0 0.0
    %1166 = vmatprep.subr.mxu0 0.0
    %1167 = vmatpush1.msra.mxu0 0.0
    %1168 = vmatprep.subr.mxu0 0.0
    %1169 = vmatpush1.msra.mxu0 0.0
    %1170 = vmatprep.subr.mxu0 0.0
    %1171 = vmatpush1.msra.mxu0 0.0
    %1172 = vmatprep.subr.mxu0 0.0
    %1173 = vmatpush1.msra.mxu0 0.0
    %1174 = vmatprep.subr.mxu0 0.0
    %1175 = vmatpush1.msra.mxu0 0.0
    %1176 = vmatprep.subr.mxu0 0.0
    %1177 = vmatpush1.msra.mxu0 0.0
    %1178 = vmatprep.subr.mxu0 0.0
    %1179 = vmatpush1.msra.mxu0 0.0
    %1180 = vmatprep.subr.mxu0 0.0
    %1181 = vmatpush1.msra.mxu0 0.0
    %1182 = vmatprep.subr.mxu0 0.0
    %1183 = vmatpush1.msra.mxu0 0.0
    %1184 = vmatprep.subr.mxu0 0.0
    %1185 = vmatpush1.msra.mxu0 %v1114
    %1186 = vmatprep.subr.mxu0 0.0
    %1187 = vmatpush1.msra.mxu0 %v1113
    %1188 = vmatprep.subr.mxu0 0.0
    %1189 = vmatpush1.msra.mxu0 %v1112
    %1190 = vmatprep.subr.mxu0 0.0
    %1191 = vmatpush1.msra.mxu0 %v1111
    %1192 = vmatprep.subr.mxu0 0.0
    %1193 = vmatpush2.msra.mxu0 0.0
    %1194 = vmatprep.subr.mxu0 0.0
    %1195 = vmatpush2.msra.mxu0 0.0
    %1196 = vmatprep.subr.mxu0 0.0
    %1197 = vmatpush2.msra.mxu0 0.0
    %1198 = vmatprep.subr.mxu0 0.0
    %1199 = vmatpush2.msra.mxu0 0.0
    %1200 = vmatprep.subr.mxu0 0.0
    %1201 = vmatpush2.msra.mxu0 0.0
    %1202 = vmatprep.subr.mxu0 0.0
    %1203 = vmatpush2.msra.mxu0 0.0
    %1204 = vmatprep.subr.mxu0 0.0
    %1205 = vmatpush2.msra.mxu0 0.0
    %1206 = vmatprep.subr.mxu0 0.0
    %1207 = vmatpush2.msra.mxu0 0.0
    %1208 = vmatprep.subr.mxu0 0.0
    %1209 = vmatpush2.msra.mxu0 0.0
    %1210 = vmatprep.subr.mxu0 0.0
    %1211 = vmatpush2.msra.mxu0 0.0
    %1212 = vmatprep.subr.mxu0 0.0
    %1213 = vmatpush2.msra.mxu0 0.0
    %1214 = vmatprep.subr.mxu0 0.0
    %1215 = vmatpush2.msra.mxu0 0.0
    %1216 = vmatprep.subr.mxu0 0.0
    %1217 = vmatpush2.msra.mxu0 0.0
    %1218 = vmatprep.subr.mxu0 0.0
    %1219 = vmatpush2.msra.mxu0 0.0
    %1220 = vmatprep.subr.mxu0 0.0
    %1221 = vmatpush2.msra.mxu0 0.0
    %1222 = vmatprep.subr.mxu0 0.0
    %1223 = vmatpush2.msra.mxu0 0.0
    %1224 = vmatprep.mubr.f32.mxu0 0.0
    %1225 = vmatmul.mubr.f32.gmra.mxu0 %v1137
    %v1226 = vpop.f32.mrf.mxu0
    %v1227 = vadd.f32 %v1135, %v1226
    %v1228 = vpop.f32.mrf.mxu0
    %1229 = vmatprep.mubr.f32.mxu0 0.0
    %1230 = vmatmul.mubr.f32.gmra.mxu0 %v1140
    %v1231 = vpop.f32.mrf.mxu0
    %v1232 = vadd.f32 %v1135, %v1231
    %v1233 = vpop.f32.mrf.mxu0
    %1234 = vmatprep.mubr.f32.mxu0 0.0
    %1235 = vmatmul.mubr.f32.gmra.mxu0 %v1143
    %v1236 = vpop.f32.mrf.mxu0
    %v1237 = vadd.f32 %v1135, %v1236
    %v1238 = vpop.f32.mrf.mxu0
    %1239 = vmatprep.mubr.f32.mxu0 0.0
    %1240 = vmatmul.mubr.f32.gmra.mxu0 %v1146
    %v1241 = vpop.f32.mrf.mxu0
    %v1242 = vadd.f32 %v1135, %v1241
    %v1243 = vpop.f32.mrf.mxu0
    %1244 = vmatprep.mubr.f32.mxu0 0.0
    %1245 = vmatmul.mubr.f32.gmra.mxu0 %v1149
    %v1246 = vpop.f32.mrf.mxu0
    %v1247 = vadd.f32 %v1135, %v1246
    %v1248 = vpop.f32.mrf.mxu0
    %1249 = vmatprep.mubr.f32.mxu0 0.0
    %1250 = vmatmul.mubr.f32.gmra.mxu0 %v1152
    %v1251 = vpop.f32.mrf.mxu0
    %v1252 = vadd.f32 %v1135, %v1251
    %v1253 = vpop.f32.mrf.mxu0
    %1254 = vmatprep.mubr.f32.mxu0 0.0
    %1255 = vmatmul.mubr.f32.gmra.mxu0 %v1155
    %v1256 = vpop.f32.mrf.mxu0
    %v1257 = vadd.f32 %v1135, %v1256
    %v1258 = vpop.f32.mrf.mxu0
    %1259 = vmatprep.mubr.f32.mxu0 0.0
    %1260 = vmatmul.mubr.f32.gmra.mxu0 %v1158
    %v1261 = vpop.f32.mrf.mxu0
    %v1262 = vadd.f32 %v1135, %v1261
    %v1263 = vpop.f32.mrf.mxu0
    %1264 = vdwg.mxu0
    %1265 = vst.msk [vmem:[#allocation3] sm:$0xff] %vm261, %v1227
    %1266 = vst.msk [vmem:[#allocation3 + $0x8] sm:$0xff] %vm261, %v1232
    %1267 = vst.msk [vmem:[#allocation3 + $0x10] sm:$0xff] %vm261, %v1237
    %1268 = vst.msk [vmem:[#allocation3 + $0x18] sm:$0xff] %vm261, %v1242
    %1269 = vst.msk [vmem:[#allocation3 + $0x20] sm:$0xff] %vm261, %v1247
    %1270 = vst.msk [vmem:[#allocation3 + $0x28] sm:$0xff] %vm261, %v1252
    %1271 = vst.msk [vmem:[#allocation3 + $0x30] sm:$0xff] %vm261, %v1257
    %1272 = vst.msk [vmem:[#allocation3 + $0x38] sm:$0xff] %vm261, %v1262
    %1273 = vmatprep.subr.mxu0 0.0
    %1274 = vmatpush1.msra.mxu0 0.0
    %1275 = vmatprep.subr.mxu0 0.0
    %1276 = vmatpush1.msra.mxu0 0.0
    %1277 = vmatprep.subr.mxu0 0.0
    %1278 = vmatpush1.msra.mxu0 0.0
    %1279 = vmatprep.subr.mxu0 0.0
    %1280 = vmatpush1.msra.mxu0 0.0
    %1281 = vmatprep.subr.mxu0 0.0
    %1282 = vmatpush1.msra.mxu0 0.0
    %1283 = vmatprep.subr.mxu0 0.0
    %1284 = vmatpush1.msra.mxu0 0.0
    %1285 = vmatprep.subr.mxu0 0.0
    %1286 = vmatpush1.msra.mxu0 0.0
    %1287 = vmatprep.subr.mxu0 0.0
    %1288 = vmatpush1.msra.mxu0 0.0
    %1289 = vmatprep.subr.mxu0 0.0
    %1290 = vmatpush1.msra.mxu0 0.0
    %1291 = vmatprep.subr.mxu0 0.0
    %1292 = vmatpush1.msra.mxu0 0.0
    %1293 = vmatprep.subr.mxu0 0.0
    %1294 = vmatpush1.msra.mxu0 0.0
    %1295 = vmatprep.subr.mxu0 0.0
    %1296 = vmatpush1.msra.mxu0 0.0
    %1297 = vmatprep.subr.mxu0 0.0
    %1298 = vmatpush1.msra.mxu0 %v1118
    %1299 = vmatprep.subr.mxu0 0.0
    %1300 = vmatpush1.msra.mxu0 %v1117
    %1301 = vmatprep.subr.mxu0 0.0
    %1302 = vmatpush1.msra.mxu0 %v1116
    %1303 = vmatprep.subr.mxu0 0.0
    %1304 = vmatpush1.msra.mxu0 %v1115
    %1305 = vmatprep.subr.mxu0 0.0
    %1306 = vmatpush2.msra.mxu0 0.0
    %1307 = vmatprep.subr.mxu0 0.0
    %1308 = vmatpush2.msra.mxu0 0.0
    %1309 = vmatprep.subr.mxu0 0.0
    %1310 = vmatpush2.msra.mxu0 0.0
    %1311 = vmatprep.subr.mxu0 0.0
    %1312 = vmatpush2.msra.mxu0 0.0
    %1313 = vmatprep.subr.mxu0 0.0
    %1314 = vmatpush2.msra.mxu0 0.0
    %1315 = vmatprep.subr.mxu0 0.0
    %1316 = vmatpush2.msra.mxu0 0.0
    %1317 = vmatprep.subr.mxu0 0.0
    %1318 = vmatpush2.msra.mxu0 0.0
    %1319 = vmatprep.subr.mxu0 0.0
    %1320 = vmatpush2.msra.mxu0 0.0
    %1321 = vmatprep.subr.mxu0 0.0
    %1322 = vmatpush2.msra.mxu0 0.0
    %1323 = vmatprep.subr.mxu0 0.0
    %1324 = vmatpush2.msra.mxu0 0.0
    %1325 = vmatprep.subr.mxu0 0.0
    %1326 = vmatpush2.msra.mxu0 0.0
    %1327 = vmatprep.subr.mxu0 0.0
    %1328 = vmatpush2.msra.mxu0 0.0
    %1329 = vmatprep.subr.mxu0 0.0
    %1330 = vmatpush2.msra.mxu0 0.0
    %1331 = vmatprep.subr.mxu0 0.0
    %1332 = vmatpush2.msra.mxu0 0.0
    %1333 = vmatprep.subr.mxu0 0.0
    %1334 = vmatpush2.msra.mxu0 0.0
    %1335 = vmatprep.subr.mxu0 0.0
    %1336 = vmatpush2.msra.mxu0 0.0
    %1337 = vmatprep.mubr.f32.mxu0 0.0
    %1338 = vmatmul.mubr.f32.gmra.mxu0 %v271
    %v1339 = vpop.f32.mrf.mxu0
    %v1340 = vadd.f32 0.0, %v1339
    %v1341 = vpop.f32.mrf.mxu0
    %1342 = vdwg.mxu0
    %v1343 = vld [vmem:[#allocation3] sm:$0xff]
    %v1344 = vadd.f32 %v1343, %v1340
    %v1345 = vxor.u32 %v1344, 2147483648
    %v1346 = vmul.f32 %v1345, 1.442695
    %v1347 = vpow.pop %v1346
    %v1348 = vadd.f32 %v1347, 1.0
    %v1349 = vrcp.pop %v1348
    %v1350 = vmul.f32 1.0, %v1349
    %v1351 = vadd.f32 %v1340, %v1123
    %1353 = vrot.lane.b32.xlu0 %v1351, 64
    %v1354 = vpop.permute.xlu0 %1353
    %v1356 = vmul.f32 %v1350, %v1354
    %1358 = vrot.lane.b32.xlu0 %v1356, 64
    %v1359 = vpop.permute.xlu0 %1358
    %v1361 = vadd.f32 %v1343, %v1359
    %v1362 = vtanh.pop %v1361
    %v1363 = vsub.f32 1.0, %v1350
    %1365 = vrot.lane.b32.xlu0 %v1362, 96
    %v1366 = vpop.permute.xlu0 %1365
    %v1368 = vmul.f32 %v1363, %v1366
    %v1369 = vmul.f32 %v1350, 0.0
    %v1370 = vadd.f32 %v1368, %v1369
    %1372 = vrot.lane.b32.xlu0 %v1370, 96
    %v1373 = vpop.permute.xlu0 %1372
    %v1374 = vsel %vm33, %v1373, 0
    %1376 = vmatprep.subr.mxu0 0.0
    %1377 = vmatpush1.msra.mxu0 0.0
    %1378 = vmatprep.subr.mxu0 0.0
    %1379 = vmatpush1.msra.mxu0 0.0
    %1380 = vmatprep.subr.mxu0 0.0
    %1381 = vmatpush1.msra.mxu0 0.0
    %1382 = vmatprep.subr.mxu0 0.0
    %1383 = vmatpush1.msra.mxu0 0.0
    %1384 = vmatprep.subr.mxu0 0.0
    %1385 = vmatpush1.msra.mxu0 0.0
    %1386 = vmatprep.subr.mxu0 0.0
    %1387 = vmatpush1.msra.mxu0 0.0
    %1388 = vmatprep.subr.mxu0 0.0
    %1389 = vmatpush1.msra.mxu0 0.0
    %1390 = vmatprep.subr.mxu0 0.0
    %1391 = vmatpush1.msra.mxu0 0.0
    %1392 = vmatprep.subr.mxu0 0.0
    %1393 = vmatpush1.msra.mxu0 0.0
    %1394 = vmatprep.subr.mxu0 0.0
    %1395 = vmatpush1.msra.mxu0 0.0
    %1396 = vmatprep.subr.mxu0 0.0
    %1397 = vmatpush1.msra.mxu0 0.0
    %1398 = vmatprep.subr.mxu0 0.0
    %1399 = vmatpush1.msra.mxu0 0.0
    %1400 = vmatprep.subr.mxu0 0.0
    %1401 = vmatpush1.msra.mxu0 %v1118
    %1402 = vmatprep.subr.mxu0 0.0
    %1403 = vmatpush1.msra.mxu0 %v1117
    %1404 = vmatprep.subr.mxu0 0.0
    %1405 = vmatpush1.msra.mxu0 %v1116
    %1406 = vmatprep.subr.mxu0 0.0
    %1407 = vmatpush1.msra.mxu0 %v1115
    %1408 = vmatprep.subr.mxu0 0.0
    %1409 = vmatpush2.msra.mxu0 0.0
    %1410 = vmatprep.subr.mxu0 0.0
    %1411 = vmatpush2.msra.mxu0 0.0
    %1412 = vmatprep.subr.mxu0 0.0
    %1413 = vmatpush2.msra.mxu0 0.0
    %1414 = vmatprep.subr.mxu0 0.0
    %1415 = vmatpush2.msra.mxu0 0.0
    %1416 = vmatprep.subr.mxu0 0.0
    %1417 = vmatpush2.msra.mxu0 0.0
    %1418 = vmatprep.subr.mxu0 0.0
    %1419 = vmatpush2.msra.mxu0 0.0
    %1420 = vmatprep.subr.mxu0 0.0
    %1421 = vmatpush2.msra.mxu0 0.0
    %1422 = vmatprep.subr.mxu0 0.0
    %1423 = vmatpush2.msra.mxu0 0.0
    %1424 = vmatprep.subr.mxu0 0.0
    %1425 = vmatpush2.msra.mxu0 0.0
    %1426 = vmatprep.subr.mxu0 0.0
    %1427 = vmatpush2.msra.mxu0 0.0
    %1428 = vmatprep.subr.mxu0 0.0
    %1429 = vmatpush2.msra.mxu0 0.0
    %1430 = vmatprep.subr.mxu0 0.0
    %1431 = vmatpush2.msra.mxu0 0.0
    %1432 = vmatprep.subr.mxu0 0.0
    %1433 = vmatpush2.msra.mxu0 0.0
    %1434 = vmatprep.subr.mxu0 0.0
    %1435 = vmatpush2.msra.mxu0 0.0
    %1436 = vmatprep.subr.mxu0 0.0
    %1437 = vmatpush2.msra.mxu0 0.0
    %1438 = vmatprep.subr.mxu0 0.0
    %1439 = vmatpush2.msra.mxu0 0.0
    %1440 = vmatprep.mubr.f32.mxu0 0.0
    %1441 = vmatmul.mubr.f32.gmra.mxu0 %v1374
    %v1442 = vpop.f32.mrf.mxu0
    %v1443 = vadd.f32 0.0, %v1442
    %v1444 = vpop.f32.mrf.mxu0
    %1445 = vdwg.mxu0
    %v1446 = vld [vmem:[#allocation3 + $0x8] sm:$0xff]
    %v1447 = vadd.f32 %v1446, %v1443
    %v1448 = vxor.u32 %v1447, 2147483648
    %v1449 = vmul.f32 %v1448, 1.442695
    %v1450 = vpow.pop %v1449
    %v1451 = vadd.f32 %v1450, 1.0
    %v1452 = vrcp.pop %v1451
    %v1453 = vmul.f32 1.0, %v1452
    %v1454 = vadd.f32 %v1443, %v1123
    %1456 = vrot.lane.b32.xlu0 %v1454, 64
    %v1457 = vpop.permute.xlu0 %1456
    %v1459 = vmul.f32 %v1453, %v1457
    %1461 = vrot.lane.b32.xlu0 %v1459, 64
    %v1462 = vpop.permute.xlu0 %1461
    %v1464 = vadd.f32 %v1446, %v1462
    %v1465 = vtanh.pop %v1464
    %v1466 = vsub.f32 1.0, %v1453
    %1468 = vrot.lane.b32.xlu0 %v1465, 96
    %v1469 = vpop.permute.xlu0 %1468
    %v1471 = vmul.f32 %v1466, %v1469
    %v1472 = vmul.f32 %v1453, %v1370
    %v1473 = vadd.f32 %v1471, %v1472
    %1475 = vrot.lane.b32.xlu0 %v1473, 96
    %v1476 = vpop.permute.xlu0 %1475
    %v1477 = vsel %vm33, %v1476, 0
    %1479 = vmatprep.subr.mxu0 0.0
    %1480 = vmatpush1.msra.mxu0 0.0
    %1481 = vmatprep.subr.mxu0 0.0
    %1482 = vmatpush1.msra.mxu0 0.0
    %1483 = vmatprep.subr.mxu0 0.0
    %1484 = vmatpush1.msra.mxu0 0.0
    %1485 = vmatprep.subr.mxu0 0.0
    %1486 = vmatpush1.msra.mxu0 0.0
    %1487 = vmatprep.subr.mxu0 0.0
    %1488 = vmatpush1.msra.mxu0 0.0
    %1489 = vmatprep.subr.mxu0 0.0
    %1490 = vmatpush1.msra.mxu0 0.0
    %1491 = vmatprep.subr.mxu0 0.0
    %1492 = vmatpush1.msra.mxu0 0.0
    %1493 = vmatprep.subr.mxu0 0.0
    %1494 = vmatpush1.msra.mxu0 0.0
    %1495 = vmatprep.subr.mxu0 0.0
    %1496 = vmatpush1.msra.mxu0 0.0
    %1497 = vmatprep.subr.mxu0 0.0
    %1498 = vmatpush1.msra.mxu0 0.0
    %1499 = vmatprep.subr.mxu0 0.0
    %1500 = vmatpush1.msra.mxu0 0.0
    %1501 = vmatprep.subr.mxu0 0.0
    %1502 = vmatpush1.msra.mxu0 0.0
    %1503 = vmatprep.subr.mxu0 0.0
    %1504 = vmatpush1.msra.mxu0 %v1118
    %1505 = vmatprep.subr.mxu0 0.0
    %1506 = vmatpush1.msra.mxu0 %v1117
    %1507 = vmatprep.subr.mxu0 0.0
    %1508 = vmatpush1.msra.mxu0 %v1116
    %1509 = vmatprep.subr.mxu0 0.0
    %1510 = vmatpush1.msra.mxu0 %v1115
    %1511 = vmatprep.subr.mxu0 0.0
    %1512 = vmatpush2.msra.mxu0 0.0
    %1513 = vmatprep.subr.mxu0 0.0
    %1514 = vmatpush2.msra.mxu0 0.0
    %1515 = vmatprep.subr.mxu0 0.0
    %1516 = vmatpush2.msra.mxu0 0.0
    %1517 = vmatprep.subr.mxu0 0.0
    %1518 = vmatpush2.msra.mxu0 0.0
    %1519 = vmatprep.subr.mxu0 0.0
    %1520 = vmatpush2.msra.mxu0 0.0
    %1521 = vmatprep.subr.mxu0 0.0
    %1522 = vmatpush2.msra.mxu0 0.0
    %1523 = vmatprep.subr.mxu0 0.0
    %1524 = vmatpush2.msra.mxu0 0.0
    %1525 = vmatprep.subr.mxu0 0.0
    %1526 = vmatpush2.msra.mxu0 0.0
    %1527 = vmatprep.subr.mxu0 0.0
    %1528 = vmatpush2.msra.mxu0 0.0
    %1529 = vmatprep.subr.mxu0 0.0
    %1530 = vmatpush2.msra.mxu0 0.0
    %1531 = vmatprep.subr.mxu0 0.0
    %1532 = vmatpush2.msra.mxu0 0.0
    %1533 = vmatprep.subr.mxu0 0.0
    %1534 = vmatpush2.msra.mxu0 0.0
    %1535 = vmatprep.subr.mxu0 0.0
    %1536 = vmatpush2.msra.mxu0 0.0
    %1537 = vmatprep.subr.mxu0 0.0
    %1538 = vmatpush2.msra.mxu0 0.0
    %1539 = vmatprep.subr.mxu0 0.0
    %1540 = vmatpush2.msra.mxu0 0.0
    %1541 = vmatprep.subr.mxu0 0.0
    %1542 = vmatpush2.msra.mxu0 0.0
    %1543 = vmatprep.mubr.f32.mxu0 0.0
    %1544 = vmatmul.mubr.f32.gmra.mxu0 %v1477
    %v1545 = vpop.f32.mrf.mxu0
    %v1546 = vadd.f32 0.0, %v1545
    %v1547 = vpop.f32.mrf.mxu0
    %1548 = vdwg.mxu0
    %v1549 = vld [vmem:[#allocation3 + $0x10] sm:$0xff]
    %v1550 = vadd.f32 %v1549, %v1546
    %v1551 = vxor.u32 %v1550, 2147483648
    %v1552 = vmul.f32 %v1551, 1.442695
    %v1553 = vpow.pop %v1552
    %v1554 = vadd.f32 %v1553, 1.0
    %v1555 = vrcp.pop %v1554
    %v1556 = vmul.f32 1.0, %v1555
    %v1557 = vadd.f32 %v1546, %v1123
    %1559 = vrot.lane.b32.xlu0 %v1557, 64
    %v1560 = vpop.permute.xlu0 %1559
    %v1562 = vmul.f32 %v1556, %v1560
    %1564 = vrot.lane.b32.xlu0 %v1562, 64
    %v1565 = vpop.permute.xlu0 %1564
    %v1567 = vadd.f32 %v1549, %v1565
    %v1568 = vtanh.pop %v1567
    %v1569 = vsub.f32 1.0, %v1556
    %1571 = vrot.lane.b32.xlu0 %v1568, 96
    %v1572 = vpop.permute.xlu0 %1571
    %v1574 = vmul.f32 %v1569, %v1572
    %v1575 = vmul.f32 %v1556, %v1473
    %v1576 = vadd.f32 %v1574, %v1575
    %1578 = vrot.lane.b32.xlu0 %v1576, 96
    %v1579 = vpop.permute.xlu0 %1578
    %v1580 = vsel %vm33, %v1579, 0
    %1582 = vmatprep.subr.mxu0 0.0
    %1583 = vmatpush1.msra.mxu0 0.0
    %1584 = vmatprep.subr.mxu0 0.0
    %1585 = vmatpush1.msra.mxu0 0.0
    %1586 = vmatprep.subr.mxu0 0.0
    %1587 = vmatpush1.msra.mxu0 0.0
    %1588 = vmatprep.subr.mxu0 0.0
    %1589 = vmatpush1.msra.mxu0 0.0
    %1590 = vmatprep.subr.mxu0 0.0
    %1591 = vmatpush1.msra.mxu0 0.0
    %1592 = vmatprep.subr.mxu0 0.0
    %1593 = vmatpush1.msra.mxu0 0.0
    %1594 = vmatprep.subr.mxu0 0.0
    %1595 = vmatpush1.msra.mxu0 0.0
    %1596 = vmatprep.subr.mxu0 0.0
    %1597 = vmatpush1.msra.mxu0 0.0
    %1598 = vmatprep.subr.mxu0 0.0
    %1599 = vmatpush1.msra.mxu0 0.0
    %1600 = vmatprep.subr.mxu0 0.0
    %1601 = vmatpush1.msra.mxu0 0.0
    %1602 = vmatprep.subr.mxu0 0.0
    %1603 = vmatpush1.msra.mxu0 0.0
    %1604 = vmatprep.subr.mxu0 0.0
    %1605 = vmatpush1.msra.mxu0 0.0
    %1606 = vmatprep.subr.mxu0 0.0
    %1607 = vmatpush1.msra.mxu0 %v1118
    %1608 = vmatprep.subr.mxu0 0.0
    %1609 = vmatpush1.msra.mxu0 %v1117
    %1610 = vmatprep.subr.mxu0 0.0
    %1611 = vmatpush1.msra.mxu0 %v1116
    %1612 = vmatprep.subr.mxu0 0.0
    %1613 = vmatpush1.msra.mxu0 %v1115
    %1614 = vmatprep.subr.mxu0 0.0
    %1615 = vmatpush2.msra.mxu0 0.0
    %1616 = vmatprep.subr.mxu0 0.0
    %1617 = vmatpush2.msra.mxu0 0.0
    %1618 = vmatprep.subr.mxu0 0.0
    %1619 = vmatpush2.msra.mxu0 0.0
    %1620 = vmatprep.subr.mxu0 0.0
    %1621 = vmatpush2.msra.mxu0 0.0
    %1622 = vmatprep.subr.mxu0 0.0
    %1623 = vmatpush2.msra.mxu0 0.0
    %1624 = vmatprep.subr.mxu0 0.0
    %1625 = vmatpush2.msra.mxu0 0.0
    %1626 = vmatprep.subr.mxu0 0.0
    %1627 = vmatpush2.msra.mxu0 0.0
    %1628 = vmatprep.subr.mxu0 0.0
    %1629 = vmatpush2.msra.mxu0 0.0
    %1630 = vmatprep.subr.mxu0 0.0
    %1631 = vmatpush2.msra.mxu0 0.0
    %1632 = vmatprep.subr.mxu0 0.0
    %1633 = vmatpush2.msra.mxu0 0.0
    %1634 = vmatprep.subr.mxu0 0.0
    %1635 = vmatpush2.msra.mxu0 0.0
    %1636 = vmatprep.subr.mxu0 0.0
    %1637 = vmatpush2.msra.mxu0 0.0
    %1638 = vmatprep.subr.mxu0 0.0
    %1639 = vmatpush2.msra.mxu0 0.0
    %1640 = vmatprep.subr.mxu0 0.0
    %1641 = vmatpush2.msra.mxu0 0.0
    %1642 = vmatprep.subr.mxu0 0.0
    %1643 = vmatpush2.msra.mxu0 0.0
    %1644 = vmatprep.subr.mxu0 0.0
    %1645 = vmatpush2.msra.mxu0 0.0
    %1646 = vmatprep.mubr.f32.mxu0 0.0
    %1647 = vmatmul.mubr.f32.gmra.mxu0 %v1580
    %v1648 = vpop.f32.mrf.mxu0
    %v1649 = vadd.f32 0.0, %v1648
    %v1650 = vpop.f32.mrf.mxu0
    %1651 = vdwg.mxu0
    %v1652 = vld [vmem:[#allocation3 + $0x18] sm:$0xff]
    %v1653 = vadd.f32 %v1652, %v1649
    %v1654 = vxor.u32 %v1653, 2147483648
    %v1655 = vmul.f32 %v1654, 1.442695
    %v1656 = vpow.pop %v1655
    %v1657 = vadd.f32 %v1656, 1.0
    %v1658 = vrcp.pop %v1657
    %v1659 = vmul.f32 1.0, %v1658
    %v1660 = vadd.f32 %v1649, %v1123
    %1662 = vrot.lane.b32.xlu0 %v1660, 64
    %v1663 = vpop.permute.xlu0 %1662
    %v1665 = vmul.f32 %v1659, %v1663
    %1667 = vrot.lane.b32.xlu0 %v1665, 64
    %v1668 = vpop.permute.xlu0 %1667
    %v1670 = vadd.f32 %v1652, %v1668
    %v1671 = vtanh.pop %v1670
    %v1672 = vsub.f32 1.0, %v1659
    %1674 = vrot.lane.b32.xlu0 %v1671, 96
    %v1675 = vpop.permute.xlu0 %1674
    %v1677 = vmul.f32 %v1672, %v1675
    %v1678 = vmul.f32 %v1659, %v1576
    %v1679 = vadd.f32 %v1677, %v1678
    %1681 = vrot.lane.b32.xlu0 %v1679, 96
    %v1682 = vpop.permute.xlu0 %1681
    %v1683 = vsel %vm33, %v1682, 0
    %1685 = vmatprep.subr.mxu0 0.0
    %1686 = vmatpush1.msra.mxu0 0.0
    %1687 = vmatprep.subr.mxu0 0.0
    %1688 = vmatpush1.msra.mxu0 0.0
    %1689 = vmatprep.subr.mxu0 0.0
    %1690 = vmatpush1.msra.mxu0 0.0
    %1691 = vmatprep.subr.mxu0 0.0
    %1692 = vmatpush1.msra.mxu0 0.0
    %1693 = vmatprep.subr.mxu0 0.0
    %1694 = vmatpush1.msra.mxu0 0.0
    %1695 = vmatprep.subr.mxu0 0.0
    %1696 = vmatpush1.msra.mxu0 0.0
    %1697 = vmatprep.subr.mxu0 0.0
    %1698 = vmatpush1.msra.mxu0 0.0
    %1699 = vmatprep.subr.mxu0 0.0
    %1700 = vmatpush1.msra.mxu0 0.0
    %1701 = vmatprep.subr.mxu0 0.0
    %1702 = vmatpush1.msra.mxu0 0.0
    %1703 = vmatprep.subr.mxu0 0.0
    %1704 = vmatpush1.msra.mxu0 0.0
    %1705 = vmatprep.subr.mxu0 0.0
    %1706 = vmatpush1.msra.mxu0 0.0
    %1707 = vmatprep.subr.mxu0 0.0
    %1708 = vmatpush1.msra.mxu0 0.0
    %1709 = vmatprep.subr.mxu0 0.0
    %1710 = vmatpush1.msra.mxu0 %v1118
    %1711 = vmatprep.subr.mxu0 0.0
    %1712 = vmatpush1.msra.mxu0 %v1117
    %1713 = vmatprep.subr.mxu0 0.0
    %1714 = vmatpush1.msra.mxu0 %v1116
    %1715 = vmatprep.subr.mxu0 0.0
    %1716 = vmatpush1.msra.mxu0 %v1115
    %1717 = vmatprep.subr.mxu0 0.0
    %1718 = vmatpush2.msra.mxu0 0.0
    %1719 = vmatprep.subr.mxu0 0.0
    %1720 = vmatpush2.msra.mxu0 0.0
    %1721 = vmatprep.subr.mxu0 0.0
    %1722 = vmatpush2.msra.mxu0 0.0
    %1723 = vmatprep.subr.mxu0 0.0
    %1724 = vmatpush2.msra.mxu0 0.0
    %1725 = vmatprep.subr.mxu0 0.0
    %1726 = vmatpush2.msra.mxu0 0.0
    %1727 = vmatprep.subr.mxu0 0.0
    %1728 = vmatpush2.msra.mxu0 0.0
    %1729 = vmatprep.subr.mxu0 0.0
    %1730 = vmatpush2.msra.mxu0 0.0
    %1731 = vmatprep.subr.mxu0 0.0
    %1732 = vmatpush2.msra.mxu0 0.0
    %1733 = vmatprep.subr.mxu0 0.0
    %1734 = vmatpush2.msra.mxu0 0.0
    %1735 = vmatprep.subr.mxu0 0.0
    %1736 = vmatpush2.msra.mxu0 0.0
    %1737 = vmatprep.subr.mxu0 0.0
    %1738 = vmatpush2.msra.mxu0 0.0
    %1739 = vmatprep.subr.mxu0 0.0
    %1740 = vmatpush2.msra.mxu0 0.0
    %1741 = vmatprep.subr.mxu0 0.0
    %1742 = vmatpush2.msra.mxu0 0.0
    %1743 = vmatprep.subr.mxu0 0.0
    %1744 = vmatpush2.msra.mxu0 0.0
    %1745 = vmatprep.subr.mxu0 0.0
    %1746 = vmatpush2.msra.mxu0 0.0
    %1747 = vmatprep.subr.mxu0 0.0
    %1748 = vmatpush2.msra.mxu0 0.0
    %1749 = vmatprep.mubr.f32.mxu0 0.0
    %1750 = vmatmul.mubr.f32.gmra.mxu0 %v1683
    %v1751 = vpop.f32.mrf.mxu0
    %v1752 = vadd.f32 0.0, %v1751
    %v1753 = vpop.f32.mrf.mxu0
    %1754 = vdwg.mxu0
    %v1755 = vld [vmem:[#allocation3 + $0x20] sm:$0xff]
    %v1756 = vadd.f32 %v1755, %v1752
    %v1757 = vxor.u32 %v1756, 2147483648
    %v1758 = vmul.f32 %v1757, 1.442695
    %v1759 = vpow.pop %v1758
    %v1760 = vadd.f32 %v1759, 1.0
    %v1761 = vrcp.pop %v1760
    %v1762 = vmul.f32 1.0, %v1761
    %v1763 = vadd.f32 %v1752, %v1123
    %1765 = vrot.lane.b32.xlu0 %v1763, 64
    %v1766 = vpop.permute.xlu0 %1765
    %v1768 = vmul.f32 %v1762, %v1766
    %1770 = vrot.lane.b32.xlu0 %v1768, 64
    %v1771 = vpop.permute.xlu0 %1770
    %v1773 = vadd.f32 %v1755, %v1771
    %v1774 = vtanh.pop %v1773
    %v1775 = vsub.f32 1.0, %v1762
    %1777 = vrot.lane.b32.xlu0 %v1774, 96
    %v1778 = vpop.permute.xlu0 %1777
    %v1780 = vmul.f32 %v1775, %v1778
    %v1781 = vmul.f32 %v1762, %v1679
    %v1782 = vadd.f32 %v1780, %v1781
    %1784 = vrot.lane.b32.xlu0 %v1782, 96
    %v1785 = vpop.permute.xlu0 %1784
    %v1786 = vsel %vm33, %v1785, 0
    %1788 = vmatprep.subr.mxu0 0.0
    %1789 = vmatpush1.msra.mxu0 0.0
    %1790 = vmatprep.subr.mxu0 0.0
    %1791 = vmatpush1.msra.mxu0 0.0
    %1792 = vmatprep.subr.mxu0 0.0
    %1793 = vmatpush1.msra.mxu0 0.0
    %1794 = vmatprep.subr.mxu0 0.0
    %1795 = vmatpush1.msra.mxu0 0.0
    %1796 = vmatprep.subr.mxu0 0.0
    %1797 = vmatpush1.msra.mxu0 0.0
    %1798 = vmatprep.subr.mxu0 0.0
    %1799 = vmatpush1.msra.mxu0 0.0
    %1800 = vmatprep.subr.mxu0 0.0
    %1801 = vmatpush1.msra.mxu0 0.0
    %1802 = vmatprep.subr.mxu0 0.0
    %1803 = vmatpush1.msra.mxu0 0.0
    %1804 = vmatprep.subr.mxu0 0.0
    %1805 = vmatpush1.msra.mxu0 0.0
    %1806 = vmatprep.subr.mxu0 0.0
    %1807 = vmatpush1.msra.mxu0 0.0
    %1808 = vmatprep.subr.mxu0 0.0
    %1809 = vmatpush1.msra.mxu0 0.0
    %1810 = vmatprep.subr.mxu0 0.0
    %1811 = vmatpush1.msra.mxu0 0.0
    %1812 = vmatprep.subr.mxu0 0.0
    %1813 = vmatpush1.msra.mxu0 %v1118
    %1814 = vmatprep.subr.mxu0 0.0
    %1815 = vmatpush1.msra.mxu0 %v1117
    %1816 = vmatprep.subr.mxu0 0.0
    %1817 = vmatpush1.msra.mxu0 %v1116
    %1818 = vmatprep.subr.mxu0 0.0
    %1819 = vmatpush1.msra.mxu0 %v1115
    %1820 = vmatprep.subr.mxu0 0.0
    %1821 = vmatpush2.msra.mxu0 0.0
    %1822 = vmatprep.subr.mxu0 0.0
    %1823 = vmatpush2.msra.mxu0 0.0
    %1824 = vmatprep.subr.mxu0 0.0
    %1825 = vmatpush2.msra.mxu0 0.0
    %1826 = vmatprep.subr.mxu0 0.0
    %1827 = vmatpush2.msra.mxu0 0.0
    %1828 = vmatprep.subr.mxu0 0.0
    %1829 = vmatpush2.msra.mxu0 0.0
    %1830 = vmatprep.subr.mxu0 0.0
    %1831 = vmatpush2.msra.mxu0 0.0
    %1832 = vmatprep.subr.mxu0 0.0
    %1833 = vmatpush2.msra.mxu0 0.0
    %1834 = vmatprep.subr.mxu0 0.0
    %1835 = vmatpush2.msra.mxu0 0.0
    %1836 = vmatprep.subr.mxu0 0.0
    %1837 = vmatpush2.msra.mxu0 0.0
    %1838 = vmatprep.subr.mxu0 0.0
    %1839 = vmatpush2.msra.mxu0 0.0
    %1840 = vmatprep.subr.mxu0 0.0
    %1841 = vmatpush2.msra.mxu0 0.0
    %1842 = vmatprep.subr.mxu0 0.0
    %1843 = vmatpush2.msra.mxu0 0.0
    %1844 = vmatprep.subr.mxu0 0.0
    %1845 = vmatpush2.msra.mxu0 0.0
    %1846 = vmatprep.subr.mxu0 0.0
    %1847 = vmatpush2.msra.mxu0 0.0
    %1848 = vmatprep.subr.mxu0 0.0
    %1849 = vmatpush2.msra.mxu0 0.0
    %1850 = vmatprep.subr.mxu0 0.0
    %1851 = vmatpush2.msra.mxu0 0.0
    %1852 = vmatprep.mubr.f32.mxu0 0.0
    %1853 = vmatmul.mubr.f32.gmra.mxu0 %v1786
    %v1854 = vpop.f32.mrf.mxu0
    %v1855 = vadd.f32 0.0, %v1854
    %v1856 = vpop.f32.mrf.mxu0
    %1857 = vdwg.mxu0
    %v1858 = vld [vmem:[#allocation3 + $0x28] sm:$0xff]
    %v1859 = vadd.f32 %v1858, %v1855
    %v1860 = vxor.u32 %v1859, 2147483648
    %v1861 = vmul.f32 %v1860, 1.442695
    %v1862 = vpow.pop %v1861
    %v1863 = vadd.f32 %v1862, 1.0
    %v1864 = vrcp.pop %v1863
    %v1865 = vmul.f32 1.0, %v1864
    %v1866 = vadd.f32 %v1855, %v1123
    %1868 = vrot.lane.b32.xlu0 %v1866, 64
    %v1869 = vpop.permute.xlu0 %1868
    %v1871 = vmul.f32 %v1865, %v1869
    %1873 = vrot.lane.b32.xlu0 %v1871, 64
    %v1874 = vpop.permute.xlu0 %1873
    %v1876 = vadd.f32 %v1858, %v1874
    %v1877 = vtanh.pop %v1876
    %v1878 = vsub.f32 1.0, %v1865
    %1880 = vrot.lane.b32.xlu0 %v1877, 96
    %v1881 = vpop.permute.xlu0 %1880
    %v1883 = vmul.f32 %v1878, %v1881
    %v1884 = vmul.f32 %v1865, %v1782
    %v1885 = vadd.f32 %v1883, %v1884
    %1887 = vrot.lane.b32.xlu0 %v1885, 96
    %v1888 = vpop.permute.xlu0 %1887
    %v1889 = vsel %vm33, %v1888, 0
    %1891 = vmatprep.subr.mxu0 0.0
    %1892 = vmatpush1.msra.mxu0 0.0
    %1893 = vmatprep.subr.mxu0 0.0
    %1894 = vmatpush1.msra.mxu0 0.0
    %1895 = vmatprep.subr.mxu0 0.0
    %1896 = vmatpush1.msra.mxu0 0.0
    %1897 = vmatprep.subr.mxu0 0.0
    %1898 = vmatpush1.msra.mxu0 0.0
    %1899 = vmatprep.subr.mxu0 0.0
    %1900 = vmatpush1.msra.mxu0 0.0
    %1901 = vmatprep.subr.mxu0 0.0
    %1902 = vmatpush1.msra.mxu0 0.0
    %1903 = vmatprep.subr.mxu0 0.0
    %1904 = vmatpush1.msra.mxu0 0.0
    %1905 = vmatprep.subr.mxu0 0.0
    %1906 = vmatpush1.msra.mxu0 0.0
    %1907 = vmatprep.subr.mxu0 0.0
    %1908 = vmatpush1.msra.mxu0 0.0
    %1909 = vmatprep.subr.mxu0 0.0
    %1910 = vmatpush1.msra.mxu0 0.0
    %1911 = vmatprep.subr.mxu0 0.0
    %1912 = vmatpush1.msra.mxu0 0.0
    %1913 = vmatprep.subr.mxu0 0.0
    %1914 = vmatpush1.msra.mxu0 0.0
    %1915 = vmatprep.subr.mxu0 0.0
    %1916 = vmatpush1.msra.mxu0 %v1118
    %1917 = vmatprep.subr.mxu0 0.0
    %1918 = vmatpush1.msra.mxu0 %v1117
    %1919 = vmatprep.subr.mxu0 0.0
    %1920 = vmatpush1.msra.mxu0 %v1116
    %1921 = vmatprep.subr.mxu0 0.0
    %1922 = vmatpush1.msra.mxu0 %v1115
    %1923 = vmatprep.subr.mxu0 0.0
    %1924 = vmatpush2.msra.mxu0 0.0
    %1925 = vmatprep.subr.mxu0 0.0
    %1926 = vmatpush2.msra.mxu0 0.0
    %1927 = vmatprep.subr.mxu0 0.0
    %1928 = vmatpush2.msra.mxu0 0.0
    %1929 = vmatprep.subr.mxu0 0.0
    %1930 = vmatpush2.msra.mxu0 0.0
    %1931 = vmatprep.subr.mxu0 0.0
    %1932 = vmatpush2.msra.mxu0 0.0
    %1933 = vmatprep.subr.mxu0 0.0
    %1934 = vmatpush2.msra.mxu0 0.0
    %1935 = vmatprep.subr.mxu0 0.0
    %1936 = vmatpush2.msra.mxu0 0.0
    %1937 = vmatprep.subr.mxu0 0.0
    %1938 = vmatpush2.msra.mxu0 0.0
    %1939 = vmatprep.subr.mxu0 0.0
    %1940 = vmatpush2.msra.mxu0 0.0
    %1941 = vmatprep.subr.mxu0 0.0
    %1942 = vmatpush2.msra.mxu0 0.0
    %1943 = vmatprep.subr.mxu0 0.0
    %1944 = vmatpush2.msra.mxu0 0.0
    %1945 = vmatprep.subr.mxu0 0.0
    %1946 = vmatpush2.msra.mxu0 0.0
    %1947 = vmatprep.subr.mxu0 0.0
    %1948 = vmatpush2.msra.mxu0 0.0
    %1949 = vmatprep.subr.mxu0 0.0
    %1950 = vmatpush2.msra.mxu0 0.0
    %1951 = vmatprep.subr.mxu0 0.0
    %1952 = vmatpush2.msra.mxu0 0.0
    %1953 = vmatprep.subr.mxu0 0.0
    %1954 = vmatpush2.msra.mxu0 0.0
    %1955 = vmatprep.mubr.f32.mxu0 0.0
    %1956 = vmatmul.mubr.f32.gmra.mxu0 %v1889
    %v1957 = vpop.f32.mrf.mxu0
    %v1958 = vadd.f32 0.0, %v1957
    %v1959 = vpop.f32.mrf.mxu0
    %1960 = vdwg.mxu0
    %v1961 = vld [vmem:[#allocation3 + $0x30] sm:$0xff]
    %v1962 = vadd.f32 %v1961, %v1958
    %v1963 = vxor.u32 %v1962, 2147483648
    %v1964 = vmul.f32 %v1963, 1.442695
    %v1965 = vpow.pop %v1964
    %v1966 = vadd.f32 %v1965, 1.0
    %v1967 = vrcp.pop %v1966
    %v1968 = vmul.f32 1.0, %v1967
    %v1969 = vadd.f32 %v1958, %v1123
    %1971 = vrot.lane.b32.xlu0 %v1969, 64
    %v1972 = vpop.permute.xlu0 %1971
    %v1974 = vmul.f32 %v1968, %v1972
    %1976 = vrot.lane.b32.xlu0 %v1974, 64
    %v1977 = vpop.permute.xlu0 %1976
    %v1979 = vadd.f32 %v1961, %v1977
    %v1980 = vtanh.pop %v1979
    %v1981 = vsub.f32 1.0, %v1968
    %1983 = vrot.lane.b32.xlu0 %v1980, 96
    %v1984 = vpop.permute.xlu0 %1983
    %v1986 = vmul.f32 %v1981, %v1984
    %v1987 = vmul.f32 %v1968, %v1885
    %v1988 = vadd.f32 %v1986, %v1987
    %1990 = vrot.lane.b32.xlu0 %v1988, 96
    %v1991 = vpop.permute.xlu0 %1990
    %v1992 = vsel %vm33, %v1991, 0
    %1994 = vmatprep.subr.mxu0 0.0
    %1995 = vmatpush1.msra.mxu0 0.0
    %1996 = vmatprep.subr.mxu0 0.0
    %1997 = vmatpush1.msra.mxu0 0.0
    %1998 = vmatprep.subr.mxu0 0.0
    %1999 = vmatpush1.msra.mxu0 0.0
    %2000 = vmatprep.subr.mxu0 0.0
    %2001 = vmatpush1.msra.mxu0 0.0
    %2002 = vmatprep.subr.mxu0 0.0
    %2003 = vmatpush1.msra.mxu0 0.0
    %2004 = vmatprep.subr.mxu0 0.0
    %2005 = vmatpush1.msra.mxu0 0.0
    %2006 = vmatprep.subr.mxu0 0.0
    %2007 = vmatpush1.msra.mxu0 0.0
    %2008 = vmatprep.subr.mxu0 0.0
    %2009 = vmatpush1.msra.mxu0 0.0
    %2010 = vmatprep.subr.mxu0 0.0
    %2011 = vmatpush1.msra.mxu0 0.0
    %2012 = vmatprep.subr.mxu0 0.0
    %2013 = vmatpush1.msra.mxu0 0.0
    %2014 = vmatprep.subr.mxu0 0.0
    %2015 = vmatpush1.msra.mxu0 0.0
    %2016 = vmatprep.subr.mxu0 0.0
    %2017 = vmatpush1.msra.mxu0 0.0
    %2018 = vmatprep.subr.mxu0 0.0
    %2019 = vmatpush1.msra.mxu0 %v1118
    %2020 = vmatprep.subr.mxu0 0.0
    %2021 = vmatpush1.msra.mxu0 %v1117
    %2022 = vmatprep.subr.mxu0 0.0
    %2023 = vmatpush1.msra.mxu0 %v1116
    %2024 = vmatprep.subr.mxu0 0.0
    %2025 = vmatpush1.msra.mxu0 %v1115
    %2026 = vmatprep.subr.mxu0 0.0
    %2027 = vmatpush2.msra.mxu0 0.0
    %2028 = vmatprep.subr.mxu0 0.0
    %2029 = vmatpush2.msra.mxu0 0.0
    %2030 = vmatprep.subr.mxu0 0.0
    %2031 = vmatpush2.msra.mxu0 0.0
    %2032 = vmatprep.subr.mxu0 0.0
    %2033 = vmatpush2.msra.mxu0 0.0
    %2034 = vmatprep.subr.mxu0 0.0
    %2035 = vmatpush2.msra.mxu0 0.0
    %2036 = vmatprep.subr.mxu0 0.0
    %2037 = vmatpush2.msra.mxu0 0.0
    %2038 = vmatprep.subr.mxu0 0.0
    %2039 = vmatpush2.msra.mxu0 0.0
    %2040 = vmatprep.subr.mxu0 0.0
    %2041 = vmatpush2.msra.mxu0 0.0
    %2042 = vmatprep.subr.mxu0 0.0
    %2043 = vmatpush2.msra.mxu0 0.0
    %2044 = vmatprep.subr.mxu0 0.0
    %2045 = vmatpush2.msra.mxu0 0.0
    %2046 = vmatprep.subr.mxu0 0.0
    %2047 = vmatpush2.msra.mxu0 0.0
    %2048 = vmatprep.subr.mxu0 0.0
    %2049 = vmatpush2.msra.mxu0 0.0
    %2050 = vmatprep.subr.mxu0 0.0
    %2051 = vmatpush2.msra.mxu0 0.0
    %2052 = vmatprep.subr.mxu0 0.0
    %2053 = vmatpush2.msra.mxu0 0.0
    %2054 = vmatprep.subr.mxu0 0.0
    %2055 = vmatpush2.msra.mxu0 0.0
    %2056 = vmatprep.subr.mxu0 0.0
    %2057 = vmatpush2.msra.mxu0 0.0
    %2058 = vmatprep.mubr.f32.mxu0 0.0
    %2059 = vmatmul.mubr.f32.gmra.mxu0 %v1992
    %v2060 = vpop.f32.mrf.mxu0
    %v2061 = vadd.f32 0.0, %v2060
    %v2062 = vpop.f32.mrf.mxu0
    %2063 = vdwg.mxu0
    %v2064 = vld [vmem:[#allocation3 + $0x38] sm:$0xff]
    %v2065 = vadd.f32 %v2064, %v2061
    %v2066 = vxor.u32 %v2065, 2147483648
    %v2067 = vmul.f32 %v2066, 1.442695
    %v2068 = vpow.pop %v2067
    %v2069 = vadd.f32 %v2068, 1.0
    %v2070 = vrcp.pop %v2069
    %v2071 = vmul.f32 1.0, %v2070
    %v2072 = vadd.f32 %v2061, %v1123
    %2074 = vrot.lane.b32.xlu0 %v2072, 64
    %v2075 = vpop.permute.xlu0 %2074
    %v2077 = vmul.f32 %v2071, %v2075
    %2079 = vrot.lane.b32.xlu0 %v2077, 64
    %v2080 = vpop.permute.xlu0 %2079
    %v2082 = vadd.f32 %v2064, %v2080
    %v2083 = vtanh.pop %v2082
    %v2084 = vsub.f32 1.0, %v2071
    %2086 = vrot.lane.b32.xlu0 %v2083, 96
    %v2087 = vpop.permute.xlu0 %2086
    %v2089 = vmul.f32 %v2084, %v2087
    %v2090 = vmul.f32 %v2071, %v1988
    %v2091 = vadd.f32 %v2089, %v2090
    %v2092 = vld [vmem:[%s4] sm:$0xff]
    %v2093 = vld [vmem:[%s4 + $0x8] sm:$0xff]
    %v2094 = vld [vmem:[%s4 + $0x10] sm:$0xff]
    %v2095 = vld [vmem:[%s4 + $0x18] sm:$0xff]
    %v2096 = vld [vmem:[%s4 + $0x20] sm:$0xff]
    %v2097 = vld [vmem:[%s4 + $0x28] sm:$0xff]
    %v2098 = vld [vmem:[%s4 + $0x30] sm:$0xff]
    %v2099 = vld [vmem:[%s4 + $0x38] sm:$0xff]
    %v2100 = vld [vmem:[%s4 + $0x40] sm:$0x3]
    %v2101 = vlaneseq
    %v2102 = vshrl.u32 %v2101, 7
    %v2103 = vsub.s32 0, %v2102
    %v2104 = vrot.slane %v2100, %v2103
    %2106 = vrot.lane.b32.xlu0 %v2091, 96
    %v2107 = vpop.permute.xlu0 %2106
    %v2108 = vsel %vm33, %v2107, 0
    %2110 = vmatprep.subr.mxu0 0.0
    %2111 = vmatpush1.msra.mxu0 0.0
    %2112 = vmatprep.subr.mxu0 0.0
    %2113 = vmatpush1.msra.mxu0 0.0
    %2114 = vmatprep.subr.mxu0 0.0
    %2115 = vmatpush1.msra.mxu0 0.0
    %2116 = vmatprep.subr.mxu0 0.0
    %2117 = vmatpush1.msra.mxu0 0.0
    %2118 = vmatprep.subr.mxu0 0.0
    %2119 = vmatpush1.msra.mxu0 0.0
    %2120 = vmatprep.subr.mxu0 0.0
    %2121 = vmatpush1.msra.mxu0 0.0
    %2122 = vmatprep.subr.mxu0 0.0
    %2123 = vmatpush1.msra.mxu0 0.0
    %2124 = vmatprep.subr.mxu0 0.0
    %2125 = vmatpush1.msra.mxu0 0.0
    %2126 = vmatprep.subr.mxu0 0.0
    %2127 = vmatpush1.msra.mxu0 0.0
    %2128 = vmatprep.subr.mxu0 0.0
    %2129 = vmatpush1.msra.mxu0 0.0
    %2130 = vmatprep.subr.mxu0 0.0
    %2131 = vmatpush1.msra.mxu0 0.0
    %2132 = vmatprep.subr.mxu0 0.0
    %2133 = vmatpush1.msra.mxu0 0.0
    %2134 = vmatprep.subr.mxu0 0.0
    %2135 = vmatpush1.msra.mxu0 %v2095
    %2136 = vmatprep.subr.mxu0 0.0
    %2137 = vmatpush1.msra.mxu0 %v2094
    %2138 = vmatprep.subr.mxu0 0.0
    %2139 = vmatpush1.msra.mxu0 %v2093
    %2140 = vmatprep.subr.mxu0 0.0
    %2141 = vmatpush1.msra.mxu0 %v2092
    %2142 = vmatprep.subr.mxu0 0.0
    %2143 = vmatpush2.msra.mxu0 0.0
    %2144 = vmatprep.subr.mxu0 0.0
    %2145 = vmatpush2.msra.mxu0 0.0
    %2146 = vmatprep.subr.mxu0 0.0
    %2147 = vmatpush2.msra.mxu0 0.0
    %2148 = vmatprep.subr.mxu0 0.0
    %2149 = vmatpush2.msra.mxu0 0.0
    %2150 = vmatprep.subr.mxu0 0.0
    %2151 = vmatpush2.msra.mxu0 0.0
    %2152 = vmatprep.subr.mxu0 0.0
    %2153 = vmatpush2.msra.mxu0 0.0
    %2154 = vmatprep.subr.mxu0 0.0
    %2155 = vmatpush2.msra.mxu0 0.0
    %2156 = vmatprep.subr.mxu0 0.0
    %2157 = vmatpush2.msra.mxu0 0.0
    %2158 = vmatprep.subr.mxu0 0.0
    %2159 = vmatpush2.msra.mxu0 0.0
    %2160 = vmatprep.subr.mxu0 0.0
    %2161 = vmatpush2.msra.mxu0 0.0
    %2162 = vmatprep.subr.mxu0 0.0
    %2163 = vmatpush2.msra.mxu0 0.0
    %2164 = vmatprep.subr.mxu0 0.0
    %2165 = vmatpush2.msra.mxu0 0.0
    %2166 = vmatprep.subr.mxu0 0.0
    %2167 = vmatpush2.msra.mxu0 0.0
    %2168 = vmatprep.subr.mxu0 0.0
    %2169 = vmatpush2.msra.mxu0 0.0
    %2170 = vmatprep.subr.mxu0 0.0
    %2171 = vmatpush2.msra.mxu0 0.0
    %2172 = vmatprep.subr.mxu0 0.0
    %2173 = vmatpush2.msra.mxu0 0.0
    %2174 = vmatprep.mubr.f32.mxu0 0.0
    %2175 = vmatmul.mubr.f32.gmra.mxu0 %v2108
    %v2176 = vpop.f32.mrf.mxu0
    %v2177 = vadd.f32 %v2104, %v2176
    %v2178 = vpop.f32.mrf.mxu0
    %2179 = vdwg.mxu0
    %v2180 = vmax.f32 %v2177, 0.0
    %v2181 = vlaneseq
    %v2182 = vshrl.u32 %v2181, 7
    %v2183 = vsub.s32 1, %v2182
    %v2184 = vrot.slane %v2100, %v2183
    %v2186 = vsel %vm33, %v2180, 0
    %2188 = vmatprep.subr.mxu0 0.0
    %2189 = vmatpush1.msra.mxu0 0.0
    %2190 = vmatprep.subr.mxu0 0.0
    %2191 = vmatpush1.msra.mxu0 0.0
    %2192 = vmatprep.subr.mxu0 0.0
    %2193 = vmatpush1.msra.mxu0 0.0
    %2194 = vmatprep.subr.mxu0 0.0
    %2195 = vmatpush1.msra.mxu0 0.0
    %2196 = vmatprep.subr.mxu0 0.0
    %2197 = vmatpush1.msra.mxu0 0.0
    %2198 = vmatprep.subr.mxu0 0.0
    %2199 = vmatpush1.msra.mxu0 0.0
    %2200 = vmatprep.subr.mxu0 0.0
    %2201 = vmatpush1.msra.mxu0 0.0
    %2202 = vmatprep.subr.mxu0 0.0
    %2203 = vmatpush1.msra.mxu0 0.0
    %2204 = vmatprep.subr.mxu0 0.0
    %2205 = vmatpush1.msra.mxu0 0.0
    %2206 = vmatprep.subr.mxu0 0.0
    %2207 = vmatpush1.msra.mxu0 0.0
    %2208 = vmatprep.subr.mxu0 0.0
    %2209 = vmatpush1.msra.mxu0 0.0
    %2210 = vmatprep.subr.mxu0 0.0
    %2211 = vmatpush1.msra.mxu0 0.0
    %2212 = vmatprep.subr.mxu0 0.0
    %2213 = vmatpush1.msra.mxu0 %v2099
    %2214 = vmatprep.subr.mxu0 0.0
    %2215 = vmatpush1.msra.mxu0 %v2098
    %2216 = vmatprep.subr.mxu0 0.0
    %2217 = vmatpush1.msra.mxu0 %v2097
    %2218 = vmatprep.subr.mxu0 0.0
    %2219 = vmatpush1.msra.mxu0 %v2096
    %2220 = vmatprep.subr.mxu0 0.0
    %2221 = vmatpush2.msra.mxu0 0.0
    %2222 = vmatprep.subr.mxu0 0.0
    %2223 = vmatpush2.msra.mxu0 0.0
    %2224 = vmatprep.subr.mxu0 0.0
    %2225 = vmatpush2.msra.mxu0 0.0
    %2226 = vmatprep.subr.mxu0 0.0
    %2227 = vmatpush2.msra.mxu0 0.0
    %2228 = vmatprep.subr.mxu0 0.0
    %2229 = vmatpush2.msra.mxu0 0.0
    %2230 = vmatprep.subr.mxu0 0.0
    %2231 = vmatpush2.msra.mxu0 0.0
    %2232 = vmatprep.subr.mxu0 0.0
    %2233 = vmatpush2.msra.mxu0 0.0
    %2234 = vmatprep.subr.mxu0 0.0
    %2235 = vmatpush2.msra.mxu0 0.0
    %2236 = vmatprep.subr.mxu0 0.0
    %2237 = vmatpush2.msra.mxu0 0.0
    %2238 = vmatprep.subr.mxu0 0.0
    %2239 = vmatpush2.msra.mxu0 0.0
    %2240 = vmatprep.subr.mxu0 0.0
    %2241 = vmatpush2.msra.mxu0 0.0
    %2242 = vmatprep.subr.mxu0 0.0
    %2243 = vmatpush2.msra.mxu0 0.0
    %2244 = vmatprep.subr.mxu0 0.0
    %2245 = vmatpush2.msra.mxu0 0.0
    %2246 = vmatprep.subr.mxu0 0.0
    %2247 = vmatpush2.msra.mxu0 0.0
    %2248 = vmatprep.subr.mxu0 0.0
    %2249 = vmatpush2.msra.mxu0 0.0
    %2250 = vmatprep.subr.mxu0 0.0
    %2251 = vmatpush2.msra.mxu0 0.0
    %2252 = vmatprep.mubr.f32.mxu0 0.0
    %2253 = vmatmul.mubr.f32.gmra.mxu0 %v2186
    %v2254 = vpop.f32.mrf.mxu0
    %v2255 = vadd.f32 %v2184, %v2254
    %v2256 = vpop.f32.mrf.mxu0
    %2257 = vdwg.mxu0
    %vm2258 = vcmask 15360
    %2259 = vst.msk [vmem:[%s5] sm:$0xff] %vm2258, %v2255
    // Predicated region
    $region26: #{tpu_custom_call.1} parent=1 // pred_check
      _
    $region27: #{tpu_custom_call.1} parent=1 // pred_check_branch
      %2261 = sbr.rel (0) target = $region29
    $region28: #{tpu_custom_call.1} parent=1 // pred_region
      _
    $region29: #{tpu_custom_call.1} parent=1 // pred_fallthru
      _
    // Predicated region
    $region30: #{tpu_custom_call.1} parent=1 // pred_check
      _
    $region31: #{tpu_custom_call.1} parent=1 // pred_check_branch
      %2263 = sbr.rel (0) target = $region33
    $region32: #{tpu_custom_call.1} parent=1 // pred_region
      _
    $region33: #{tpu_custom_call.1} parent=1 // pred_fallthru
      _
    %2264 = vsyncpa [#allocation5], 1

</llo_original>
